<compile_context>
chip_gen: v6e
topology: v6e:2x2x1
jax: 0.10.0
libtpu: 0.0.40
codegen_flags: <defaults>
</compile_context>

<pallas_src>
import functools
import math

import jax
import jax.numpy as jnp
from jax.experimental import pallas as pl
from jax.experimental.pallas import tpu as pltpu


_VMEM_LIMIT = 32 * 1024 * 1024  # tiles below are sized to fit v7x's smaller VMEM


def _pick_tile(dim, target):
    """Largest tile <= target that divides dim (full dim if dim <= target)."""
    t = min(dim, target)
    assert dim % t == 0, f"dim {dim} not divisible by tile {t}"
    return t


# ----------------------------- tiled matmul -----------------------------

def _matmul_kernel(x_ref, w_ref, o_ref, acc_ref):
    @pl.when(pl.program_id(2) == 0)
    def _():
        acc_ref[...] = jnp.zeros_like(acc_ref)

    # bf16 (or whatever dtype comes in) operands straight to the MXU, f32 accum.
    acc_ref[...] += jnp.dot(x_ref[...], w_ref[...],
                            preferred_element_type=jnp.float32)

    @pl.when(pl.program_id(2) == pl.num_programs(2) - 1)
    def _():
        o_ref[...] = acc_ref[...].astype(o_ref.dtype)


def matmul(x, w, *, out_dtype=None, tm=256, tn=256, tk=512):
    """y = x @ w, tiled + double-buffered, f32 accumulation."""
    M, K = x.shape
    K2, N = w.shape
    assert K == K2
    out_dtype = out_dtype or x.dtype
    tm, tn, tk = _pick_tile(M, tm), _pick_tile(N, tn), _pick_tile(K, tk)
    return pl.pallas_call(
        _matmul_kernel,
        out_shape=jax.ShapeDtypeStruct((M, N), out_dtype),
        grid=(M // tm, N // tn, K // tk),
        in_specs=[pl.BlockSpec((tm, tk), lambda i, j, k: (i, k)),
                  pl.BlockSpec((tk, tn), lambda i, j, k: (k, j))],
        out_specs=pl.BlockSpec((tm, tn), lambda i, j, k: (i, j)),
        scratch_shapes=[pltpu.VMEM((tm, tn), jnp.float32)],
        compiler_params=pltpu.CompilerParams(
            dimension_semantics=("parallel", "parallel", "arbitrary"),
            vmem_limit_bytes=_VMEM_LIMIT),
    )(x, w)


# ------------------ fused output-projection + MLP kernel ------------------

def _out_mlp_kernel(a_ref, wo_ref, bo_ref, w1_ref, b1_ref, w2_ref, b2_ref,
                    o_ref):
    # attn-out projection
    t = jnp.dot(a_ref[...], wo_ref[...], preferred_element_type=jnp.float32)
    t = t + bo_ref[...].astype(jnp.float32)
    # MLP: Linear -> Dropout(0) -> ReLU -> Linear -> Dropout(0)
    h = jnp.dot(t.astype(w1_ref.dtype), w1_ref[...],
                preferred_element_type=jnp.float32)
    h = jnp.maximum(h + b1_ref[...].astype(jnp.float32), 0.0)
    y = jnp.dot(h.astype(w2_ref.dtype), w2_ref[...],
                preferred_element_type=jnp.float32)
    o_ref[...] = (y + b2_ref[...].astype(jnp.float32)).astype(o_ref.dtype)


def out_proj_mlp(a, wo, bo, w1, b1, w2, b2, *, out_dtype, tm=256):
    """y = relu((a @ Wo + bo) @ W1 + b1) @ W2 + b2, hidden kept in VMEM."""
    M, HV = a.shape
    D = wo.shape[1]
    Dh = w1.shape[1]
    tm = _pick_tile(M, tm)
    return pl.pallas_call(
        _out_mlp_kernel,
        out_shape=jax.ShapeDtypeStruct((M, D), out_dtype),
        grid=(M // tm,),
        in_specs=[pl.BlockSpec((tm, HV), lambda i: (i, 0)),
                  pl.BlockSpec((HV, D), lambda i: (0, 0)),
                  pl.BlockSpec((1, D), lambda i: (0, 0)),
                  pl.BlockSpec((D, Dh), lambda i: (0, 0)),
                  pl.BlockSpec((1, Dh), lambda i: (0, 0)),
                  pl.BlockSpec((Dh, D), lambda i: (0, 0)),
                  pl.BlockSpec((1, D), lambda i: (0, 0))],
        out_specs=pl.BlockSpec((tm, D), lambda i: (i, 0)),
        compiler_params=pltpu.CompilerParams(
            dimension_semantics=("parallel",),
            vmem_limit_bytes=_VMEM_LIMIT),
    )(a, wo, bo, w1, b1, w2, b2)


# ----------------------------- LayerNorm -----------------------------

def _layernorm_kernel(x_ref, g_ref, b_ref, o_ref, *, eps):
    x = x_ref[...].astype(jnp.float32)
    mu = jnp.mean(x, axis=-1, keepdims=True)
    var = jnp.mean(jnp.square(x - mu), axis=-1, keepdims=True)
    y = (x - mu) * jax.lax.rsqrt(var + eps)
    o_ref[...] = (y * g_ref[...].astype(jnp.float32)
                  + b_ref[...].astype(jnp.float32)).astype(o_ref.dtype)


def layer_norm(x2d, gamma, beta, eps=1e-5, tm=512):
    M, D = x2d.shape
    tm = _pick_tile(M, tm)
    return pl.pallas_call(
        functools.partial(_layernorm_kernel, eps=eps),
        out_shape=jax.ShapeDtypeStruct((M, D), x2d.dtype),
        grid=(M // tm,),
        in_specs=[pl.BlockSpec((tm, D), lambda i: (i, 0)),
                  pl.BlockSpec((1, D), lambda i: (0, 0)),
                  pl.BlockSpec((1, D), lambda i: (0, 0))],
        out_specs=pl.BlockSpec((tm, D), lambda i: (i, 0)),
        compiler_params=pltpu.CompilerParams(
            dimension_semantics=("parallel",),
            vmem_limit_bytes=_VMEM_LIMIT),
    )(x2d, gamma.reshape(1, D), beta.reshape(1, D))


# ------------------- compressive-memory attention kernel -------------------

def _elu1(x):
    # elu(x) + 1; clamp the exp argument so the unselected branch never infs.
    return jnp.where(x > 0, x + 1.0, jnp.exp(jnp.minimum(x, 0.0)))


def _cm_attn_kernel(q_ref, k_ref, v_ref, beta_ref, o_ref, mem_ref, z_ref, *,
                    seg_len, n_seg, num_heads, dim_key, dim_value):
    """CompressiveMemory attention for one batch row (all heads batched).

    q_ref/k_ref : (C, H*dk)   lane-dense, straight from the fused QKV matmul
    v_ref/o_ref : (C, H*dv)   lane-dense
    beta_ref    : (1, H*dv)
    mem_ref     : (H*dk, dv)  f32 scratch  (recurrent compressive memory)
    z_ref       : (H, dk)     f32 scratch  (recurrent normalizer)
    """
    dk, dv = dim_key, dim_value
    mem_ref[...] = jnp.zeros_like(mem_ref)
    z_ref[...] = jnp.full_like(z_ref, 1.0 / dk)
    beta = jax.nn.sigmoid(beta_ref[...].astype(jnp.float32))       # (1, H*dv)
    scale = 1.0 / math.sqrt(dk)

    # TODO(synk): for large n_seg switch to lax.fori_loop with pl.ds slicing;
    # static unroll is fine for the small segment counts used here.
    for s in range(n_seg):
        lo = s * seg_len
        q_s = q_ref[lo:lo + seg_len, :]                            # (L, H*dk)
        k_s = k_ref[lo:lo + seg_len, :]
        v_s = v_ref[lo:lo + seg_len, :]                            # (L, H*dv)
        outs = []
        for h in range(num_heads):                                 # heads share one grid step / DMA
            qh = q_s[:, h * dk:(h + 1) * dk]                       # (L, dk) bf16
            kh = k_s[:, h * dk:(h + 1) * dk]
            vh = v_s[:, h * dv:(h + 1) * dv]                       # (L, dv)

            # --- segment-local (non-causal) dot-product attention ---
            sc = jax.lax.dot_general(
                qh, kh, (((1,), (1,)), ((), ())),
                preferred_element_type=jnp.float32) * scale        # (L, L)
            sc = sc - jnp.max(sc, axis=-1, keepdims=True)
            p = jnp.exp(sc)
            p = p * pl.reciprocal(jnp.sum(p, axis=-1, keepdims=True), approx=True)
            att_dot = jnp.dot(p.astype(vh.dtype), vh,
                              preferred_element_type=jnp.float32)  # (L, dv)

            # --- compressive-memory retrieval (state from previous segments) ---
            sigma_q = _elu1(qh.astype(jnp.float32))                # (L, dk)
            sigma_k = _elu1(kh.astype(jnp.float32))
            vf = vh.astype(jnp.float32)
            mem_h = mem_ref[h * dk:(h + 1) * dk, :]                # (dk, dv)
            zh = z_ref[h:h + 1, :]                                 # (1, dk)

            att_mem = jnp.dot(sigma_q, mem_h,
                              preferred_element_type=jnp.float32)  # (L, dv)
            denom = jnp.sum(sigma_q * zh, axis=-1, keepdims=True)  # (L, 1) VPU sum
            att_mem = att_mem * pl.reciprocal(denom, approx=True)

            # --- memory / normalizer update ("linear" rule) ---
            mem_ref[h * dk:(h + 1) * dk, :] = mem_h + jax.lax.dot_general(
                sigma_k, vf, (((0,), (0,)), ((), ())),
                preferred_element_type=jnp.float32)                # (dk, dv)
            z_ref[h:h + 1, :] = zh + jnp.sum(sigma_k, axis=0, keepdims=True)

            beta_h = beta[:, h * dv:(h + 1) * dv]                  # (1, dv)
            outs.append(beta_h * att_mem + (1.0 - beta_h) * att_dot)

        # single lane-dense store per segment: (L, H*dv)
        o_ref[lo:lo + seg_len, :] = jnp.concatenate(outs, axis=-1).astype(o_ref.dtype)


def compressive_attention(q, k, v, betas, *, seg_len, num_heads, dim_key,
                          dim_value):
    """q,k: (B,C,H*dk)  v: (B,C,H*dv)  betas: (1,H*dv)  ->  (B,C,H*dv)."""
    B, C, HK = q.shape
    HV = v.shape[-1]
    n_seg = C // seg_len
    kern = functools.partial(_cm_attn_kernel, seg_len=seg_len, n_seg=n_seg,
                             num_heads=num_heads, dim_key=dim_key,
                             dim_value=dim_value)
    return pl.pallas_call(
        kern,
        out_shape=jax.ShapeDtypeStruct((B, C, HV), q.dtype),
        grid=(B,),
        in_specs=[
            pl.BlockSpec((None, C, HK), lambda b: (b, 0, 0)),
            pl.BlockSpec((None, C, HK), lambda b: (b, 0, 0)),
            pl.BlockSpec((None, C, HV), lambda b: (b, 0, 0)),
            pl.BlockSpec((1, HV), lambda b: (0, 0)),
        ],
        out_specs=pl.BlockSpec((None, C, HV), lambda b: (b, 0, 0)),
        scratch_shapes=[pltpu.VMEM((num_heads * dim_key, dim_value), jnp.float32),
                        pltpu.VMEM((num_heads, dim_key), jnp.float32)],
        # state is re-initialized every grid step -> no cross-iteration carry,
        # so "parallel" is safe and lets v7x shard batches across its 2 TCs.
        compiler_params=pltpu.CompilerParams(
            dimension_semantics=("parallel",),
            vmem_limit_bytes=_VMEM_LIMIT),
    )(q, k, v, betas)


# ----------------------------- parameters -----------------------------

def init_params(key, dim_input, dim_hidden, dim_key, dim_value, num_heads):
    ks = jax.random.split(key, 10)
    s = 0.05
    f32 = jnp.float32
    return {
        # CompressiveMemory projections
        "Wq": jax.random.normal(ks[0], (dim_input, num_heads * dim_key), f32) * s,
        "Wk": jax.random.normal(ks[1], (dim_input, num_heads * dim_key), f32) * s,
        "Wv": jax.random.normal(ks[2], (dim_input, num_heads * dim_value), f32) * s,
        "Wo": jax.random.normal(ks[3], (num_heads * dim_value, dim_input), f32) * s,
        "bo": jnp.zeros((1, dim_input), f32),
        "betas": jax.random.normal(ks[4], (num_heads, 1, dim_value), f32),
        # MLP  (Linear -> Dropout(0) -> ReLU -> Linear -> Dropout(0))
        "W1": jax.random.normal(ks[5], (dim_input, dim_hidden), f32) * s,
        "b1": jnp.zeros((1, dim_hidden), f32),
        "W2": jax.random.normal(ks[6], (dim_hidden, dim_input), f32) * s,
        "b2": jnp.zeros((1, dim_input), f32),
        # LayerNorm
        "ln_g": jnp.ones((dim_input,), f32),
        "ln_b": jnp.zeros((dim_input,), f32),
        # MoD token-routing projection
        "Wp": jax.random.normal(ks[7], (dim_input, 1), f32) * s,
        "bp": jnp.zeros((1, 1), f32),
    }


# ----------------------------- forward pass -----------------------------

def mod_infini_transformer_forward(params, x, *, full_segment_len,
                                   sampling_factor, num_heads, dim_key,
                                   dim_value, compute_dtype=jnp.bfloat16):
    """Training-path forward_ of MoDInfiniTransformer (dropout = 0).

    Returns (out (B,S,D), sample_mask (B*S,1) float, sample_scores (B*S,1)).
    """
    B, S, D = x.shape
    seg_len = math.ceil(full_segment_len / sampling_factor)   # reduced seg len
    assert S % full_segment_len == 0
    n_full_seg = S // full_segment_len
    C = seg_len * n_full_seg                                   # tokens kept / row
    HK = num_heads * dim_key
    HV = num_heads * dim_value

    # --- MoD routing scores (D -> 1: left to XLA; a dedicated Pallas kernel
    #     would only emit 1-lane masked stores) ---
    scores = (x.reshape(B * S, D) @ params["Wp"] + params["bp"]).reshape(B, S)

    # --- per-full-segment top-k selection (training branch of the module) ---
    scores_seg = scores.reshape(B, n_full_seg, full_segment_len)
    _, top_idx = jax.lax.top_k(scores_seg, seg_len)            # (B, nseg, seg_len)
    mask = (jnp.sum(jax.nn.one_hot(top_idx, full_segment_len, dtype=jnp.float32),
                    axis=-2) > 0.5).reshape(B, S)              # bool (B, S)

    # gather selected tokens in original sequence order (boolean-mask semantics)
    order = jnp.argsort(jnp.where(mask, 0, 1), axis=1, stable=True)[:, :C]
    x_sel = jnp.take_along_axis(x, order[:, :, None], axis=1)  # (B, C, D)

    # --- fused QKV projection: one pass over the selected activations ---
    w_qkv = jnp.concatenate([params["Wq"], params["Wk"], params["Wv"]],
                            axis=1).astype(compute_dtype)      # (D, 2*HK+HV)
    xs = x_sel.reshape(B * C, D).astype(compute_dtype)
    qkv = matmul(xs, w_qkv)                                    # (B*C, 2*HK+HV)
    q = qkv[:, :HK].reshape(B, C, HK)
    k = qkv[:, HK:2 * HK].reshape(B, C, HK)
    v = qkv[:, 2 * HK:].reshape(B, C, HV)

    # --- CompressiveMemory attention on selected tokens (Pallas) ---
    betas = params["betas"].reshape(1, HV)
    att = compressive_attention(q, k, v, betas, seg_len=seg_len,
                                num_heads=num_heads, dim_key=dim_key,
                                dim_value=dim_value)           # (B, C, HV)

    # --- fused output projection + MLP (dropout p=0 -> identity) ---
    y = out_proj_mlp(att.reshape(B * C, HV),
                     params["Wo"].astype(compute_dtype), params["bo"],
                     params["W1"].astype(compute_dtype), params["b1"],
                     params["W2"].astype(compute_dtype), params["b2"],
                     out_dtype=x.dtype).reshape(B, C, D)

    # --- scatter-add back into x at the selected positions, then LayerNorm ---
    x_upd = x.at[jnp.arange(B)[:, None], order].add(y)
    out = layer_norm(x_upd.reshape(B * S, D),
                     params["ln_g"], params["ln_b"]).reshape(B, S, D)

    mask_flat = mask.reshape(-1, 1).astype(jnp.float32)
    scores_flat = scores.reshape(-1, 1)
    return out, mask_flat, scores_flat


# ----------------------------- main -----------------------------

if __name__ == "__main__":
    B, S = 2, 16
    dim_input, dim_hidden = 32, 64
    dim_key = dim_value = 16
    num_heads = 2
    full_segment_len = 8
    sampling_factor = 2

    key = jax.random.PRNGKey(0)
    kx, kp = jax.random.split(key)
    x = jax.random.normal(kx, (B, S, dim_input), jnp.float32)
    params = init_params(kp, dim_input, dim_hidden, dim_key, dim_value, num_heads)

    fwd = jax.jit(functools.partial(
        mod_infini_transformer_forward,
        full_segment_len=full_segment_len,
        sampling_factor=sampling_factor,
        num_heads=num_heads, dim_key=dim_key, dim_value=dim_value))

    out, sample_mask, sample_scores = fwd(params, x)
    jax.block_until_ready((out, sample_mask, sample_scores))

    assert out.shape == (B, S, dim_input)
    assert sample_mask.shape == (B * S, 1)
    assert sample_scores.shape == (B * S, 1)
    assert bool(jnp.all(jnp.isfinite(out)))
    print("KERNEL_OK")
</pallas_src>

<mosaic_0001>
module attributes {stable_mosaic.version = 11 : i64} {
  func.func @_matmul_kernel(%arg0: i32, %arg1: i32, %arg2: i32, %arg3: memref<16x32xbf16, #tpu.memory_space<vmem>>, %arg4: memref<32x96xbf16, #tpu.memory_space<vmem>>, %arg5: memref<16x96xbf16, #tpu.memory_space<vmem>>, %arg6: memref<16x96xf32, #tpu.memory_space<vmem>>) attributes {dimension_semantics = [#tpu.dimension_semantics<parallel>, #tpu.dimension_semantics<parallel>, #tpu.dimension_semantics<arbitrary>], iteration_bounds = array<i64: 1, 1, 1>, scalar_prefetch = 0 : i64, scratch_operands = 1 : i64, tpu.core_type = #tpu.core_type<tc>, window_params = [{transform_indices = @transform_0, window_bounds = array<i64: 16, 32>}, {transform_indices = @transform_1, window_bounds = array<i64: 32, 96>}, {transform_indices = @transform_2, window_bounds = array<i64: 16, 96>}]} {
    %c0_i32 = arith.constant 0 : i32
    %0 = arith.cmpi eq, %arg2, %c0_i32 : i32
    %1 = arith.extui %0 : i1 to i32
    %c0_i32_0 = arith.constant 0 : i32
    %2 = arith.cmpi ne, %1, %c0_i32_0 : i32
    scf.if %2 {
      %cst_10 = arith.constant 0.000000e+00 : f32
      %12 = vector.broadcast %cst_10 : f32 to vector<16x96xf32>
      %c0_11 = arith.constant 0 : index
      %c0_12 = arith.constant 0 : index
      %13 = vector.load %arg6[%c0_11, %c0_12] : memref<16x96xf32, #tpu.memory_space<vmem>>, vector<16x96xf32>
      tpu.vector_store %arg6[%c0_11, %c0_12], %12 {strides = array<i32>} : memref<16x96xf32, #tpu.memory_space<vmem>>, vector<16x96xf32>,
    } else {
    }
    %c0 = arith.constant 0 : index
    %c0_1 = arith.constant 0 : index
    %3 = vector.load %arg6[%c0, %c0_1] : memref<16x96xf32, #tpu.memory_space<vmem>>, vector<16x96xf32>
    %c0_2 = arith.constant 0 : index
    %c0_3 = arith.constant 0 : index
    %4 = vector.load %arg3[%c0_2, %c0_3] : memref<16x32xbf16, #tpu.memory_space<vmem>>, vector<16x32xbf16>
    %c0_4 = arith.constant 0 : index
    %c0_5 = arith.constant 0 : index
    %5 = vector.load %arg4[%c0_4, %c0_5] : memref<32x96xbf16, #tpu.memory_space<vmem>>, vector<32x96xbf16>
    %cst = arith.constant dense<0.000000e+00> : vector<16x96xf32>
    %6 = tpu.matmul %4, %5, %cst {dimension_numbers = #tpu.dot_dimension_numbers<[1], [0], [0], [1], [0, 0, 1, 1], [], []>} : vector<16x32xbf16>, vector<32x96xbf16>, vector<16x96xf32> -> vector<16x96xf32>
    %7 = arith.addf %3, %6 : vector<16x96xf32>
    %c0_6 = arith.constant 0 : index
    %c0_7 = arith.constant 0 : index
    %8 = vector.load %arg6[%c0_6, %c0_7] : memref<16x96xf32, #tpu.memory_space<vmem>>, vector<16x96xf32>
    tpu.vector_store %arg6[%c0_6, %c0_7], %7 {strides = array<i32>} : memref<16x96xf32, #tpu.memory_space<vmem>>, vector<16x96xf32>,
    %c0_i32_8 = arith.constant 0 : i32
    %9 = arith.cmpi eq, %arg2, %c0_i32_8 : i32
    %10 = arith.extui %9 : i1 to i32
    %c0_i32_9 = arith.constant 0 : i32
    %11 = arith.cmpi ne, %10, %c0_i32_9 : i32
    scf.if %11 {
      %c0_10 = arith.constant 0 : index
      %c0_11 = arith.constant 0 : index
      %12 = vector.load %arg6[%c0_10, %c0_11] : memref<16x96xf32, #tpu.memory_space<vmem>>, vector<16x96xf32>
      %13 = arith.truncf %12 : vector<16x96xf32> to vector<16x96xbf16>
      %c0_12 = arith.constant 0 : index
      %c0_13 = arith.constant 0 : index
      %14 = vector.load %arg5[%c0_12, %c0_13] : memref<16x96xbf16, #tpu.memory_space<vmem>>, vector<16x96xbf16>
      tpu.vector_store %arg5[%c0_12, %c0_13], %13 {strides = array<i32>} : memref<16x96xbf16, #tpu.memory_space<vmem>>, vector<16x96xbf16>,
    } else {
    }
    return
  }
  func.func @transform_0(%arg0: i32, %arg1: i32, %arg2: i32) -> (i32, i32) {
    %c0_i32 = arith.constant 0 : i32
    return %arg0, %arg2 : i32, i32
  }
  func.func @transform_1(%arg0: i32, %arg1: i32, %arg2: i32) -> (i32, i32) {
    %c0_i32 = arith.constant 0 : i32
    return %arg2, %arg1 : i32, i32
  }
  func.func @transform_2(%arg0: i32, %arg1: i32, %arg2: i32) -> (i32, i32) {
    %c0_i32 = arith.constant 0 : i32
    return %arg0, %arg1 : i32, i32
  }
}

module attributes {stable_mosaic.version = 11 : i64} {
  func.func @_cm_attn_kernel(%arg0: i32, %arg1: memref<1x8x32xbf16, #tpu.memory_space<vmem>>, %arg2: memref<1x8x32xbf16, #tpu.memory_space<vmem>>, %arg3: memref<1x8x32xbf16, #tpu.memory_space<vmem>>, %arg4: memref<1x32xf32, #tpu.memory_space<vmem>>, %arg5: memref<1x8x32xbf16, #tpu.memory_space<vmem>>, %arg6: memref<32x16xf32, #tpu.memory_space<vmem>>, %arg7: memref<2x16xf32, #tpu.memory_space<vmem>>) attributes {dimension_semantics = [#tpu.dimension_semantics<parallel>], iteration_bounds = array<i64: 2>, scalar_prefetch = 0 : i64, scratch_operands = 2 : i64, tpu.core_type = #tpu.core_type<tc>, window_params = [{transform_indices = @transform_0, window_bounds = array<i64: 1, 8, 32>}, {transform_indices = @transform_1, window_bounds = array<i64: 1, 8, 32>}, {transform_indices = @transform_2, window_bounds = array<i64: 1, 8, 32>}, {pipeline_mode = #tpu.pipeline_mode<synchronous>, transform_indices = @transform_3, window_bounds = array<i64: 1, 32>}, {transform_indices = @transform_4, window_bounds = array<i64: 1, 8, 32>}]} {
    %cst = arith.constant 0.000000e+00 : f32
    %0 = vector.broadcast %cst : f32 to vector<32x16xf32>
    %c0 = arith.constant 0 : index
    %c0_0 = arith.constant 0 : index
    %1 = vector.load %arg6[%c0, %c0_0] : memref<32x16xf32, #tpu.memory_space<vmem>>, vector<32x16xf32>
    tpu.vector_store %arg6[%c0, %c0_0], %0 {strides = array<i32>} : memref<32x16xf32, #tpu.memory_space<vmem>>, vector<32x16xf32>,
    %cst_1 = arith.constant 6.250000e-02 : f32
    %2 = vector.broadcast %cst_1 : f32 to vector<2x16xf32>
    %c0_2 = arith.constant 0 : index
    %c0_3 = arith.constant 0 : index
    %3 = vector.load %arg7[%c0_2, %c0_3] : memref<2x16xf32, #tpu.memory_space<vmem>>, vector<2x16xf32>
    tpu.vector_store %arg7[%c0_2, %c0_3], %2 {strides = array<i32>} : memref<2x16xf32, #tpu.memory_space<vmem>>, vector<2x16xf32>,
    %c0_4 = arith.constant 0 : index
    %c0_5 = arith.constant 0 : index
    %4 = vector.load %arg4[%c0_4, %c0_5] : memref<1x32xf32, #tpu.memory_space<vmem>>, vector<1x32xf32>
    %5 = arith.negf %4 : vector<1x32xf32>
    %6 = math.exp %5 : vector<1x32xf32>
    %cst_6 = arith.constant 1.000000e+00 : f32
    %7 = vector.broadcast %cst_6 : f32 to vector<1x32xf32>
    %8 = arith.addf %7, %6 : vector<1x32xf32>
    %9 = arith.divf %7, %8 : vector<1x32xf32>
    %c0_7 = arith.constant 0 : index
    %c0_8 = arith.constant 0 : index
    %c0_9 = arith.constant 0 : index
    %10 = vector.load %arg1[%c0_7, %c0_8, %c0_9] : memref<1x8x32xbf16, #tpu.memory_space<vmem>>, vector<1x4x32xbf16>
    %11 = vector.shape_cast %10 : vector<1x4x32xbf16> to vector<4x32xbf16>
    %c0_10 = arith.constant 0 : index
    %c0_11 = arith.constant 0 : index
    %c0_12 = arith.constant 0 : index
    %12 = vector.load %arg2[%c0_10, %c0_11, %c0_12] : memref<1x8x32xbf16, #tpu.memory_space<vmem>>, vector<1x4x32xbf16>
    %13 = vector.shape_cast %12 : vector<1x4x32xbf16> to vector<4x32xbf16>
    %c0_13 = arith.constant 0 : index
    %c0_14 = arith.constant 0 : index
    %c0_15 = arith.constant 0 : index
    %14 = vector.load %arg3[%c0_13, %c0_14, %c0_15] : memref<1x8x32xbf16, #tpu.memory_space<vmem>>, vector<1x4x32xbf16>
    %15 = vector.shape_cast %14 : vector<1x4x32xbf16> to vector<4x32xbf16>
    %16 = vector.extract_strided_slice %11 {offsets = [0, 0], sizes = [4, 16], strides = [1, 1]} : vector<4x32xbf16> to vector<4x16xbf16>
    %17 = vector.extract_strided_slice %13 {offsets = [0, 0], sizes = [4, 16], strides = [1, 1]} : vector<4x32xbf16> to vector<4x16xbf16>
    %18 = vector.extract_strided_slice %15 {offsets = [0, 0], sizes = [4, 16], strides = [1, 1]} : vector<4x32xbf16> to vector<4x16xbf16>
    %cst_16 = arith.constant dense<0.000000e+00> : vector<4x4xf32>
    %19 = tpu.matmul %16, %17, %cst_16 {dimension_numbers = #tpu.dot_dimension_numbers<[1], [1], [0], [0], [0, 0, 1, 0], [], []>} : vector<4x16xbf16>, vector<4x16xbf16>, vector<4x4xf32> -> vector<4x4xf32>
    %cst_17 = arith.constant 2.500000e-01 : f32
    %20 = vector.broadcast %cst_17 : f32 to vector<4x4xf32>
    %21 = arith.mulf %19, %20 : vector<4x4xf32>
    %cst_18 = arith.constant dense<0xFF800000> : vector<4xf32>
    %22 = vector.multi_reduction <maximumf>, %21, %cst_18 [1] : vector<4x4xf32> to vector<4xf32>
    %23 = vector.shape_cast %22 : vector<4xf32> to vector<4x1xf32>
    %24 = vector.broadcast %23 : vector<4x1xf32> to vector<4x4xf32>
    %25 = arith.subf %21, %24 : vector<4x4xf32>
    %26 = math.exp %25 : vector<4x4xf32>
    %cst_19 = arith.constant dense<0.000000e+00> : vector<4xf32>
    %27 = vector.multi_reduction <add>, %26, %cst_19 [1] : vector<4x4xf32> to vector<4xf32>
    %28 = vector.shape_cast %27 : vector<4xf32> to vector<4x1xf32>
    %29 = tpu.reciprocal %28 {approx = true} : vector<4x1xf32> -> vector<4x1xf32>
    %30 = vector.broadcast %29 : vector<4x1xf32> to vector<4x4xf32>
    %31 = arith.mulf %26, %30 : vector<4x4xf32>
    %32 = arith.truncf %31 : vector<4x4xf32> to vector<4x4xbf16>
    %cst_20 = arith.constant dense<0.000000e+00> : vector<4x16xf32>
    %33 = tpu.matmul %32, %18, %cst_20 {dimension_numbers = #tpu.dot_dimension_numbers<[1], [0], [0], [1], [0, 0, 1, 1], [], []>} : vector<4x4xbf16>, vector<4x16xbf16>, vector<4x16xf32> -> vector<4x16xf32>
    %34 = arith.extf %16 : vector<4x16xbf16> to vector<4x16xf32>
    %cst_21 = arith.constant 0.000000e+00 : f32
    %35 = vector.broadcast %cst_21 : f32 to vector<4x16xf32>
    %36 = arith.cmpf ogt, %34, %35 : vector<4x16xf32>
    %cst_22 = arith.constant 1.000000e+00 : f32
    %37 = vector.broadcast %cst_22 : f32 to vector<4x16xf32>
    %38 = arith.addf %34, %37 : vector<4x16xf32>
    %cst_23 = arith.constant 0.000000e+00 : f32
    %39 = vector.broadcast %cst_23 : f32 to vector<4x16xf32>
    %40 = arith.minimumf %34, %39 : vector<4x16xf32>
    %41 = math.exp %40 : vector<4x16xf32>
    %42 = arith.select %36, %38, %41 : vector<4x16xi1>, vector<4x16xf32>
    %43 = arith.extf %17 : vector<4x16xbf16> to vector<4x16xf32>
    %cst_24 = arith.constant 0.000000e+00 : f32
    %44 = vector.broadcast %cst_24 : f32 to vector<4x16xf32>
    %45 = arith.cmpf ogt, %43, %44 : vector<4x16xf32>
    %cst_25 = arith.constant 1.000000e+00 : f32
    %46 = vector.broadcast %cst_25 : f32 to vector<4x16xf32>
    %47 = arith.addf %43, %46 : vector<4x16xf32>
    %cst_26 = arith.constant 0.000000e+00 : f32
    %48 = vector.broadcast %cst_26 : f32 to vector<4x16xf32>
    %49 = arith.minimumf %43, %48 : vector<4x16xf32>
    %50 = math.exp %49 : vector<4x16xf32>
    %51 = arith.select %45, %47, %50 : vector<4x16xi1>, vector<4x16xf32>
    %52 = arith.extf %18 : vector<4x16xbf16> to vector<4x16xf32>
    %c0_27 = arith.constant 0 : index
    %c0_28 = arith.constant 0 : index
    %53 = vector.load %arg6[%c0_27, %c0_28] : memref<32x16xf32, #tpu.memory_space<vmem>>, vector<16x16xf32>
    %c0_29 = arith.constant 0 : index
    %c0_30 = arith.constant 0 : index
    %54 = vector.load %arg7[%c0_29, %c0_30] : memref<2x16xf32, #tpu.memory_space<vmem>>, vector<1x16xf32>
    %cst_31 = arith.constant dense<0.000000e+00> : vector<4x16xf32>
    %55 = tpu.matmul %42, %53, %cst_31 {dimension_numbers = #tpu.dot_dimension_numbers<[1], [0], [0], [1], [0, 0, 1, 1], [], []>} : vector<4x16xf32>, vector<16x16xf32>, vector<4x16xf32> -> vector<4x16xf32>
    %56 = vector.broadcast %54 : vector<1x16xf32> to vector<4x16xf32>
    %57 = arith.mulf %42, %56 : vector<4x16xf32>
    %cst_32 = arith.constant dense<0.000000e+00> : vector<4xf32>
    %58 = vector.multi_reduction <add>, %57, %cst_32 [1] : vector<4x16xf32> to vector<4xf32>
    %59 = vector.shape_cast %58 : vector<4xf32> to vector<4x1xf32>
    %60 = tpu.reciprocal %59 {approx = true} : vector<4x1xf32> -> vector<4x1xf32>
    %61 = vector.broadcast %60 : vector<4x1xf32> to vector<4x16xf32>
    %62 = arith.mulf %55, %61 : vector<4x16xf32>
    %cst_33 = arith.constant dense<0.000000e+00> : vector<16x16xf32>
    %63 = tpu.matmul %51, %52, %cst_33 {dimension_numbers = #tpu.dot_dimension_numbers<[0], [0], [1], [1], [0, 1, 1, 1], [], []>} : vector<4x16xf32>, vector<4x16xf32>, vector<16x16xf32> -> vector<16x16xf32>
    %64 = arith.addf %53, %63 : vector<16x16xf32>
    %c0_34 = arith.constant 0 : index
    %c0_35 = arith.constant 0 : index
    %65 = vector.load %arg6[%c0_34, %c0_35] : memref<32x16xf32, #tpu.memory_space<vmem>>, vector<16x16xf32>
    tpu.vector_store %arg6[%c0_34, %c0_35], %64 {strides = array<i32>} : memref<32x16xf32, #tpu.memory_space<vmem>>, vector<16x16xf32>,
    %cst_36 = arith.constant dense<0.000000e+00> : vector<16xf32>
    %66 = vector.multi_reduction <add>, %51, %cst_36 [0] : vector<4x16xf32> to vector<16xf32>
    %67 = vector.shape_cast %66 : vector<16xf32> to vector<1x16xf32>
    %68 = arith.addf %54, %67 : vector<1x16xf32>
    %c0_37 = arith.constant 0 : index
    %c0_38 = arith.constant 0 : index
    %69 = vector.load %arg7[%c0_37, %c0_38] : memref<2x16xf32, #tpu.memory_space<vmem>>, vector<1x16xf32>
    tpu.vector_store %arg7[%c0_37, %c0_38], %68 {strides = array<i32>} : memref<2x16xf32, #tpu.memory_space<vmem>>, vector<1x16xf32>,
    %70 = vector.extract_strided_slice %9 {offsets = [0, 0], sizes = [1, 16], strides = [1, 1]} : vector<1x32xf32> to vector<1x16xf32>
    %71 = vector.broadcast %70 : vector<1x16xf32> to vector<4x16xf32>
    %72 = arith.mulf %71, %62 : vector<4x16xf32>
    %cst_39 = arith.constant 1.000000e+00 : f32
    %73 = vector.broadcast %cst_39 : f32 to vector<1x16xf32>
    %74 = arith.subf %73, %70 : vector<1x16xf32>
    %75 = vector.broadcast %74 : vector<1x16xf32> to vector<4x16xf32>
    %76 = arith.mulf %75, %33 : vector<4x16xf32>
    %77 = arith.addf %72, %76 : vector<4x16xf32>
    %78 = vector.extract_strided_slice %11 {offsets = [0, 16], sizes = [4, 16], strides = [1, 1]} : vector<4x32xbf16> to vector<4x16xbf16>
    %79 = vector.extract_strided_slice %13 {offsets = [0, 16], sizes = [4, 16], strides = [1, 1]} : vector<4x32xbf16> to vector<4x16xbf16>
    %80 = vector.extract_strided_slice %15 {offsets = [0, 16], sizes = [4, 16], strides = [1, 1]} : vector<4x32xbf16> to vector<4x16xbf16>
    %cst_40 = arith.constant dense<0.000000e+00> : vector<4x4xf32>
    %81 = tpu.matmul %78, %79, %cst_40 {dimension_numbers = #tpu.dot_dimension_numbers<[1], [1], [0], [0], [0, 0, 1, 0], [], []>} : vector<4x16xbf16>, vector<4x16xbf16>, vector<4x4xf32> -> vector<4x4xf32>
    %cst_41 = arith.constant 2.500000e-01 : f32
    %82 = vector.broadcast %cst_41 : f32 to vector<4x4xf32>
    %83 = arith.mulf %81, %82 : vector<4x4xf32>
    %cst_42 = arith.constant dense<0xFF800000> : vector<4xf32>
    %84 = vector.multi_reduction <maximumf>, %83, %cst_42 [1] : vector<4x4xf32> to vector<4xf32>
    %85 = vector.shape_cast %84 : vector<4xf32> to vector<4x1xf32>
    %86 = vector.broadcast %85 : vector<4x1xf32> to vector<4x4xf32>
    %87 = arith.subf %83, %86 : vector<4x4xf32>
    %88 = math.exp %87 : vector<4x4xf32>
    %cst_43 = arith.constant dense<0.000000e+00> : vector<4xf32>
    %89 = vector.multi_reduction <add>, %88, %cst_43 [1] : vector<4x4xf32> to vector<4xf32>
    %90 = vector.shape_cast %89 : vector<4xf32> to vector<4x1xf32>
    %91 = tpu.reciprocal %90 {approx = true} : vector<4x1xf32> -> vector<4x1xf32>
    %92 = vector.broadcast %91 : vector<4x1xf32> to vector<4x4xf32>
    %93 = arith.mulf %88, %92 : vector<4x4xf32>
    %94 = arith.truncf %93 : vector<4x4xf32> to vector<4x4xbf16>
    %cst_44 = arith.constant dense<0.000000e+00> : vector<4x16xf32>
    %95 = tpu.matmul %94, %80, %cst_44 {dimension_numbers = #tpu.dot_dimension_numbers<[1], [0], [0], [1], [0, 0, 1, 1], [], []>} : vector<4x4xbf16>, vector<4x16xbf16>, vector<4x16xf32> -> vector<4x16xf32>
    %96 = arith.extf %78 : vector<4x16xbf16> to vector<4x16xf32>
    %cst_45 = arith.constant 0.000000e+00 : f32
    %97 = vector.broadcast %cst_45 : f32 to vector<4x16xf32>
    %98 = arith.cmpf ogt, %96, %97 : vector<4x16xf32>
    %cst_46 = arith.constant 1.000000e+00 : f32
    %99 = vector.broadcast %cst_46 : f32 to vector<4x16xf32>
    %100 = arith.addf %96, %99 : vector<4x16xf32>
    %cst_47 = arith.constant 0.000000e+00 : f32
    %101 = vector.broadcast %cst_47 : f32 to vector<4x16xf32>
    %102 = arith.minimumf %96, %101 : vector<4x16xf32>
    %103 = math.exp %102 : vector<4x16xf32>
    %104 = arith.select %98, %100, %103 : vector<4x16xi1>, vector<4x16xf32>
    %105 = arith.extf %79 : vector<4x16xbf16> to vector<4x16xf32>
    %cst_48 = arith.constant 0.000000e+00 : f32
    %106 = vector.broadcast %cst_48 : f32 to vector<4x16xf32>
    %107 = arith.cmpf ogt, %105, %106 : vector<4x16xf32>
    %cst_49 = arith.constant 1.000000e+00 : f32
    %108 = vector.broadcast %cst_49 : f32 to vector<4x16xf32>
    %109 = arith.addf %105, %108 : vector<4x16xf32>
    %cst_50 = arith.constant 0.000000e+00 : f32
    %110 = vector.broadcast %cst_50 : f32 to vector<4x16xf32>
    %111 = arith.minimumf %105, %110 : vector<4x16xf32>
    %112 = math.exp %111 : vector<4x16xf32>
    %113 = arith.select %107, %109, %112 : vector<4x16xi1>, vector<4x16xf32>
    %114 = arith.extf %80 : vector<4x16xbf16> to vector<4x16xf32>
    %c16 = arith.constant 16 : index
    %c0_51 = arith.constant 0 : index
    %115 = vector.load %arg6[%c16, %c0_51] : memref<32x16xf32, #tpu.memory_space<vmem>>, vector<16x16xf32>
    %c1 = arith.constant 1 : index
    %c0_52 = arith.constant 0 : index
    %116 = vector.load %arg7[%c1, %c0_52] : memref<2x16xf32, #tpu.memory_space<vmem>>, vector<1x16xf32>
    %cst_53 = arith.constant dense<0.000000e+00> : vector<4x16xf32>
    %117 = tpu.matmul %104, %115, %cst_53 {dimension_numbers = #tpu.dot_dimension_numbers<[1], [0], [0], [1], [0, 0, 1, 1], [], []>} : vector<4x16xf32>, vector<16x16xf32>, vector<4x16xf32> -> vector<4x16xf32>
    %118 = vector.broadcast %116 : vector<1x16xf32> to vector<4x16xf32>
    %119 = arith.mulf %104, %118 : vector<4x16xf32>
    %cst_54 = arith.constant dense<0.000000e+00> : vector<4xf32>
    %120 = vector.multi_reduction <add>, %119, %cst_54 [1] : vector<4x16xf32> to vector<4xf32>
    %121 = vector.shape_cast %120 : vector<4xf32> to vector<4x1xf32>
    %122 = tpu.reciprocal %121 {approx = true} : vector<4x1xf32> -> vector<4x1xf32>
    %123 = vector.broadcast %122 : vector<4x1xf32> to vector<4x16xf32>
    %124 = arith.mulf %117, %123 : vector<4x16xf32>
    %cst_55 = arith.constant dense<0.000000e+00> : vector<16x16xf32>
    %125 = tpu.matmul %113, %114, %cst_55 {dimension_numbers = #tpu.dot_dimension_numbers<[0], [0], [1], [1], [0, 1, 1, 1], [], []>} : vector<4x16xf32>, vector<4x16xf32>, vector<16x16xf32> -> vector<16x16xf32>
    %126 = arith.addf %115, %125 : vector<16x16xf32>
    %c16_56 = arith.constant 16 : index
    %c0_57 = arith.constant 0 : index
    %127 = vector.load %arg6[%c16_56, %c0_57] : memref<32x16xf32, #tpu.memory_space<vmem>>, vector<16x16xf32>
    tpu.vector_store %arg6[%c16_56, %c0_57], %126 {strides = array<i32>} : memref<32x16xf32, #tpu.memory_space<vmem>>, vector<16x16xf32>,
    %cst_58 = arith.constant dense<0.000000e+00> : vector<16xf32>
    %128 = vector.multi_reduction <add>, %113, %cst_58 [0] : vector<4x16xf32> to vector<16xf32>
    %129 = vector.shape_cast %128 : vector<16xf32> to vector<1x16xf32>
    %130 = arith.addf %116, %129 : vector<1x16xf32>
    %c1_59 = arith.constant 1 : index
    %c0_60 = arith.constant 0 : index
    %131 = vector.load %arg7[%c1_59, %c0_60] : memref<2x16xf32, #tpu.memory_space<vmem>>, vector<1x16xf32>
    tpu.vector_store %arg7[%c1_59, %c0_60], %130 {strides = array<i32>} : memref<2x16xf32, #tpu.memory_space<vmem>>, vector<1x16xf32>,
    %132 = vector.extract_strided_slice %9 {offsets = [0, 16], sizes = [1, 16], strides = [1, 1]} : vector<1x32xf32> to vector<1x16xf32>
    %133 = vector.broadcast %132 : vector<1x16xf32> to vector<4x16xf32>
    %134 = arith.mulf %133, %124 : vector<4x16xf32>
    %cst_61 = arith.constant 1.000000e+00 : f32
    %135 = vector.broadcast %cst_61 : f32 to vector<1x16xf32>
    %136 = arith.subf %135, %132 : vector<1x16xf32>
    %137 = vector.broadcast %136 : vector<1x16xf32> to vector<4x16xf32>
    %138 = arith.mulf %137, %95 : vector<4x16xf32>
    %139 = arith.addf %134, %138 : vector<4x16xf32>
    %140 = tpu.concatenate %77, %139 in 1 : vector<4x16xf32>, vector<4x16xf32> -> vector<4x32xf32>
    %141 = arith.truncf %140 : vector<4x32xf32> to vector<4x32xbf16>
    %c0_62 = arith.constant 0 : index
    %c0_63 = arith.constant 0 : index
    %c0_64 = arith.constant 0 : index
    %142 = vector.load %arg5[%c0_62, %c0_63, %c0_64] : memref<1x8x32xbf16, #tpu.memory_space<vmem>>, vector<1x4x32xbf16>
    %143 = vector.shape_cast %142 : vector<1x4x32xbf16> to vector<4x32xbf16>
    %144 = vector.shape_cast %141 : vector<4x32xbf16> to vector<1x4x32xbf16>
    tpu.vector_store %arg5[%c0_62, %c0_63, %c0_64], %144 {strides = array<i32>} : memref<1x8x32xbf16, #tpu.memory_space<vmem>>, vector<1x4x32xbf16>,
    %c0_65 = arith.constant 0 : index
    %c4 = arith.constant 4 : index
    %c0_66 = arith.constant 0 : index
    %145 = vector.load %arg1[%c0_65, %c4, %c0_66] : memref<1x8x32xbf16, #tpu.memory_space<vmem>>, vector<1x4x32xbf16>
    %146 = vector.shape_cast %145 : vector<1x4x32xbf16> to vector<4x32xbf16>
    %c0_67 = arith.constant 0 : index
    %c4_68 = arith.constant 4 : index
    %c0_69 = arith.constant 0 : index
    %147 = vector.load %arg2[%c0_67, %c4_68, %c0_69] : memref<1x8x32xbf16, #tpu.memory_space<vmem>>, vector<1x4x32xbf16>
    %148 = vector.shape_cast %147 : vector<1x4x32xbf16> to vector<4x32xbf16>
    %c0_70 = arith.constant 0 : index
    %c4_71 = arith.constant 4 : index
    %c0_72 = arith.constant 0 : index
    %149 = vector.load %arg3[%c0_70, %c4_71, %c0_72] : memref<1x8x32xbf16, #tpu.memory_space<vmem>>, vector<1x4x32xbf16>
    %150 = vector.shape_cast %149 : vector<1x4x32xbf16> to vector<4x32xbf16>
    %151 = vector.extract_strided_slice %146 {offsets = [0, 0], sizes = [4, 16], strides = [1, 1]} : vector<4x32xbf16> to vector<4x16xbf16>
    %152 = vector.extract_strided_slice %148 {offsets = [0, 0], sizes = [4, 16], strides = [1, 1]} : vector<4x32xbf16> to vector<4x16xbf16>
    %153 = vector.extract_strided_slice %150 {offsets = [0, 0], sizes = [4, 16], strides = [1, 1]} : vector<4x32xbf16> to vector<4x16xbf16>
    %cst_73 = arith.constant dense<0.000000e+00> : vector<4x4xf32>
    %154 = tpu.matmul %151, %152, %cst_73 {dimension_numbers = #tpu.dot_dimension_numbers<[1], [1], [0], [0], [0, 0, 1, 0], [], []>} : vector<4x16xbf16>, vector<4x16xbf16>, vector<4x4xf32> -> vector<4x4xf32>
    %cst_74 = arith.constant 2.500000e-01 : f32
    %155 = vector.broadcast %cst_74 : f32 to vector<4x4xf32>
    %156 = arith.mulf %154, %155 : vector<4x4xf32>
    %cst_75 = arith.constant dense<0xFF800000> : vector<4xf32>
    %157 = vector.multi_reduction <maximumf>, %156, %cst_75 [1] : vector<4x4xf32> to vector<4xf32>
    %158 = vector.shape_cast %157 : vector<4xf32> to vector<4x1xf32>
    %159 = vector.broadcast %158 : vector<4x1xf32> to vector<4x4xf32>
    %160 = arith.subf %156, %159 : vector<4x4xf32>
    %161 = math.exp %160 : vector<4x4xf32>
    %cst_76 = arith.constant dense<0.000000e+00> : vector<4xf32>
    %162 = vector.multi_reduction <add>, %161, %cst_76 [1] : vector<4x4xf32> to vector<4xf32>
    %163 = vector.shape_cast %162 : vector<4xf32> to vector<4x1xf32>
    %164 = tpu.reciprocal %163 {approx = true} : vector<4x1xf32> -> vector<4x1xf32>
    %165 = vector.broadcast %164 : vector<4x1xf32> to vector<4x4xf32>
    %166 = arith.mulf %161, %165 : vector<4x4xf32>
    %167 = arith.truncf %166 : vector<4x4xf32> to vector<4x4xbf16>
    %cst_77 = arith.constant dense<0.000000e+00> : vector<4x16xf32>
    %168 = tpu.matmul %167, %153, %cst_77 {dimension_numbers = #tpu.dot_dimension_numbers<[1], [0], [0], [1], [0, 0, 1, 1], [], []>} : vector<4x4xbf16>, vector<4x16xbf16>, vector<4x16xf32> -> vector<4x16xf32>
    %169 = arith.extf %151 : vector<4x16xbf16> to vector<4x16xf32>
    %cst_78 = arith.constant 0.000000e+00 : f32
    %170 = vector.broadcast %cst_78 : f32 to vector<4x16xf32>
    %171 = arith.cmpf ogt, %169, %170 : vector<4x16xf32>
    %cst_79 = arith.constant 1.000000e+00 : f32
    %172 = vector.broadcast %cst_79 : f32 to vector<4x16xf32>
    %173 = arith.addf %169, %172 : vector<4x16xf32>
    %cst_80 = arith.constant 0.000000e+00 : f32
    %174 = vector.broadcast %cst_80 : f32 to vector<4x16xf32>
    %175 = arith.minimumf %169, %174 : vector<4x16xf32>
    %176 = math.exp %175 : vector<4x16xf32>
    %177 = arith.select %171, %173, %176 : vector<4x16xi1>, vector<4x16xf32>
    %178 = arith.extf %152 : vector<4x16xbf16> to vector<4x16xf32>
    %cst_81 = arith.constant 0.000000e+00 : f32
    %179 = vector.broadcast %cst_81 : f32 to vector<4x16xf32>
    %180 = arith.cmpf ogt, %178, %179 : vector<4x16xf32>
    %cst_82 = arith.constant 1.000000e+00 : f32
    %181 = vector.broadcast %cst_82 : f32 to vector<4x16xf32>
    %182 = arith.addf %178, %181 : vector<4x16xf32>
    %cst_83 = arith.constant 0.000000e+00 : f32
    %183 = vector.broadcast %cst_83 : f32 to vector<4x16xf32>
    %184 = arith.minimumf %178, %183 : vector<4x16xf32>
    %185 = math.exp %184 : vector<4x16xf32>
    %186 = arith.select %180, %182, %185 : vector<4x16xi1>, vector<4x16xf32>
    %187 = arith.extf %153 : vector<4x16xbf16> to vector<4x16xf32>
    %c0_84 = arith.constant 0 : index
    %c0_85 = arith.constant 0 : index
    %188 = vector.load %arg6[%c0_84, %c0_85] : memref<32x16xf32, #tpu.memory_space<vmem>>, vector<16x16xf32>
    %c0_86 = arith.constant 0 : index
    %c0_87 = arith.constant 0 : index
    %189 = vector.load %arg7[%c0_86, %c0_87] : memref<2x16xf32, #tpu.memory_space<vmem>>, vector<1x16xf32>
    %cst_88 = arith.constant dense<0.000000e+00> : vector<4x16xf32>
    %190 = tpu.matmul %177, %188, %cst_88 {dimension_numbers = #tpu.dot_dimension_numbers<[1], [0], [0], [1], [0, 0, 1, 1], [], []>} : vector<4x16xf32>, vector<16x16xf32>, vector<4x16xf32> -> vector<4x16xf32>
    %191 = vector.broadcast %189 : vector<1x16xf32> to vector<4x16xf32>
    %192 = arith.mulf %177, %191 : vector<4x16xf32>
    %cst_89 = arith.constant dense<0.000000e+00> : vector<4xf32>
    %193 = vector.multi_reduction <add>, %192, %cst_89 [1] : vector<4x16xf32> to vector<4xf32>
    %194 = vector.shape_cast %193 : vector<4xf32> to vector<4x1xf32>
    %195 = tpu.reciprocal %194 {approx = true} : vector<4x1xf32> -> vector<4x1xf32>
    %196 = vector.broadcast %195 : vector<4x1xf32> to vector<4x16xf32>
    %197 = arith.mulf %190, %196 : vector<4x16xf32>
    %cst_90 = arith.constant dense<0.000000e+00> : vector<16x16xf32>
    %198 = tpu.matmul %186, %187, %cst_90 {dimension_numbers = #tpu.dot_dimension_numbers<[0], [0], [1], [1], [0, 1, 1, 1], [], []>} : vector<4x16xf32>, vector<4x16xf32>, vector<16x16xf32> -> vector<16x16xf32>
    %199 = arith.addf %188, %198 : vector<16x16xf32>
    %c0_91 = arith.constant 0 : index
    %c0_92 = arith.constant 0 : index
    %200 = vector.load %arg6[%c0_91, %c0_92] : memref<32x16xf32, #tpu.memory_space<vmem>>, vector<16x16xf32>
    tpu.vector_store %arg6[%c0_91, %c0_92], %199 {strides = array<i32>} : memref<32x16xf32, #tpu.memory_space<vmem>>, vector<16x16xf32>,
    %cst_93 = arith.constant dense<0.000000e+00> : vector<16xf32>
    %201 = vector.multi_reduction <add>, %186, %cst_93 [0] : vector<4x16xf32> to vector<16xf32>
    %202 = vector.shape_cast %201 : vector<16xf32> to vector<1x16xf32>
    %203 = arith.addf %189, %202 : vector<1x16xf32>
    %c0_94 = arith.constant 0 : index
    %c0_95 = arith.constant 0 : index
    %204 = vector.load %arg7[%c0_94, %c0_95] : memref<2x16xf32, #tpu.memory_space<vmem>>, vector<1x16xf32>
    tpu.vector_store %arg7[%c0_94, %c0_95], %203 {strides = array<i32>} : memref<2x16xf32, #tpu.memory_space<vmem>>, vector<1x16xf32>,
    %205 = vector.extract_strided_slice %9 {offsets = [0, 0], sizes = [1, 16], strides = [1, 1]} : vector<1x32xf32> to vector<1x16xf32>
    %206 = vector.broadcast %205 : vector<1x16xf32> to vector<4x16xf32>
    %207 = arith.mulf %206, %197 : vector<4x16xf32>
    %cst_96 = arith.constant 1.000000e+00 : f32
    %208 = vector.broadcast %cst_96 : f32 to vector<1x16xf32>
    %209 = arith.subf %208, %205 : vector<1x16xf32>
    %210 = vector.broadcast %209 : vector<1x16xf32> to vector<4x16xf32>
    %211 = arith.mulf %210, %168 : vector<4x16xf32>
    %212 = arith.addf %207, %211 : vector<4x16xf32>
    %213 = vector.extract_strided_slice %146 {offsets = [0, 16], sizes = [4, 16], strides = [1, 1]} : vector<4x32xbf16> to vector<4x16xbf16>
    %214 = vector.extract_strided_slice %148 {offsets = [0, 16], sizes = [4, 16], strides = [1, 1]} : vector<4x32xbf16> to vector<4x16xbf16>
    %215 = vector.extract_strided_slice %150 {offsets = [0, 16], sizes = [4, 16], strides = [1, 1]} : vector<4x32xbf16> to vector<4x16xbf16>
    %cst_97 = arith.constant dense<0.000000e+00> : vector<4x4xf32>
    %216 = tpu.matmul %213, %214, %cst_97 {dimension_numbers = #tpu.dot_dimension_numbers<[1], [1], [0], [0], [0, 0, 1, 0], [], []>} : vector<4x16xbf16>, vector<4x16xbf16>, vector<4x4xf32> -> vector<4x4xf32>
    %cst_98 = arith.constant 2.500000e-01 : f32
    %217 = vector.broadcast %cst_98 : f32 to vector<4x4xf32>
    %218 = arith.mulf %216, %217 : vector<4x4xf32>
    %cst_99 = arith.constant dense<0xFF800000> : vector<4xf32>
    %219 = vector.multi_reduction <maximumf>, %218, %cst_99 [1] : vector<4x4xf32> to vector<4xf32>
    %220 = vector.shape_cast %219 : vector<4xf32> to vector<4x1xf32>
    %221 = vector.broadcast %220 : vector<4x1xf32> to vector<4x4xf32>
    %222 = arith.subf %218, %221 : vector<4x4xf32>
    %223 = math.exp %222 : vector<4x4xf32>
    %cst_100 = arith.constant dense<0.000000e+00> : vector<4xf32>
    %224 = vector.multi_reduction <add>, %223, %cst_100 [1] : vector<4x4xf32> to vector<4xf32>
    %225 = vector.shape_cast %224 : vector<4xf32> to vector<4x1xf32>
    %226 = tpu.reciprocal %225 {approx = true} : vector<4x1xf32> -> vector<4x1xf32>
    %227 = vector.broadcast %226 : vector<4x1xf32> to vector<4x4xf32>
    %228 = arith.mulf %223, %227 : vector<4x4xf32>
    %229 = arith.truncf %228 : vector<4x4xf32> to vector<4x4xbf16>
    %cst_101 = arith.constant dense<0.000000e+00> : vector<4x16xf32>
    %230 = tpu.matmul %229, %215, %cst_101 {dimension_numbers = #tpu.dot_dimension_numbers<[1], [0], [0], [1], [0, 0, 1, 1], [], []>} : vector<4x4xbf16>, vector<4x16xbf16>, vector<4x16xf32> -> vector<4x16xf32>
    %231 = arith.extf %213 : vector<4x16xbf16> to vector<4x16xf32>
    %cst_102 = arith.constant 0.000000e+00 : f32
    %232 = vector.broadcast %cst_102 : f32 to vector<4x16xf32>
    %233 = arith.cmpf ogt, %231, %232 : vector<4x16xf32>
    %cst_103 = arith.constant 1.000000e+00 : f32
    %234 = vector.broadcast %cst_103 : f32 to vector<4x16xf32>
    %235 = arith.addf %231, %234 : vector<4x16xf32>
    %cst_104 = arith.constant 0.000000e+00 : f32
    %236 = vector.broadcast %cst_104 : f32 to vector<4x16xf32>
    %237 = arith.minimumf %231, %236 : vector<4x16xf32>
    %238 = math.exp %237 : vector<4x16xf32>
    %239 = arith.select %233, %235, %238 : vector<4x16xi1>, vector<4x16xf32>
    %240 = arith.extf %214 : vector<4x16xbf16> to vector<4x16xf32>
    %cst_105 = arith.constant 0.000000e+00 : f32
    %241 = vector.broadcast %cst_105 : f32 to vector<4x16xf32>
    %242 = arith.cmpf ogt, %240, %241 : vector<4x16xf32>
    %cst_106 = arith.constant 1.000000e+00 : f32
    %243 = vector.broadcast %cst_106 : f32 to vector<4x16xf32>
    %244 = arith.addf %240, %243 : vector<4x16xf32>
    %cst_107 = arith.constant 0.000000e+00 : f32
    %245 = vector.broadcast %cst_107 : f32 to vector<4x16xf32>
    %246 = arith.minimumf %240, %245 : vector<4x16xf32>
    %247 = math.exp %246 : vector<4x16xf32>
    %248 = arith.select %242, %244, %247 : vector<4x16xi1>, vector<4x16xf32>
    %249 = arith.extf %215 : vector<4x16xbf16> to vector<4x16xf32>
    %c16_108 = arith.constant 16 : index
    %c0_109 = arith.constant 0 : index
    %250 = vector.load %arg6[%c16_108, %c0_109] : memref<32x16xf32, #tpu.memory_space<vmem>>, vector<16x16xf32>
    %c1_110 = arith.constant 1 : index
    %c0_111 = arith.constant 0 : index
    %251 = vector.load %arg7[%c1_110, %c0_111] : memref<2x16xf32, #tpu.memory_space<vmem>>, vector<1x16xf32>
    %cst_112 = arith.constant dense<0.000000e+00> : vector<4x16xf32>
    %252 = tpu.matmul %239, %250, %cst_112 {dimension_numbers = #tpu.dot_dimension_numbers<[1], [0], [0], [1], [0, 0, 1, 1], [], []>} : vector<4x16xf32>, vector<16x16xf32>, vector<4x16xf32> -> vector<4x16xf32>
    %253 = vector.broadcast %251 : vector<1x16xf32> to vector<4x16xf32>
    %254 = arith.mulf %239, %253 : vector<4x16xf32>
    %cst_113 = arith.constant dense<0.000000e+00> : vector<4xf32>
    %255 = vector.multi_reduction <add>, %254, %cst_113 [1] : vector<4x16xf32> to vector<4xf32>
    %256 = vector.shape_cast %255 : vector<4xf32> to vector<4x1xf32>
    %257 = tpu.reciprocal %256 {approx = true} : vector<4x1xf32> -> vector<4x1xf32>
    %258 = vector.broadcast %257 : vector<4x1xf32> to vector<4x16xf32>
    %259 = arith.mulf %252, %258 : vector<4x16xf32>
    %cst_114 = arith.constant dense<0.000000e+00> : vector<16x16xf32>
    %260 = tpu.matmul %248, %249, %cst_114 {dimension_numbers = #tpu.dot_dimension_numbers<[0], [0], [1], [1], [0, 1, 1, 1], [], []>} : vector<4x16xf32>, vector<4x16xf32>, vector<16x16xf32> -> vector<16x16xf32>
    %261 = arith.addf %250, %260 : vector<16x16xf32>
    %c16_115 = arith.constant 16 : index
    %c0_116 = arith.constant 0 : index
    %262 = vector.load %arg6[%c16_115, %c0_116] : memref<32x16xf32, #tpu.memory_space<vmem>>, vector<16x16xf32>
    tpu.vector_store %arg6[%c16_115, %c0_116], %261 {strides = array<i32>} : memref<32x16xf32, #tpu.memory_space<vmem>>, vector<16x16xf32>,
    %cst_117 = arith.constant dense<0.000000e+00> : vector<16xf32>
    %263 = vector.multi_reduction <add>, %248, %cst_117 [0] : vector<4x16xf32> to vector<16xf32>
    %264 = vector.shape_cast %263 : vector<16xf32> to vector<1x16xf32>
    %265 = arith.addf %251, %264 : vector<1x16xf32>
    %c1_118 = arith.constant 1 : index
    %c0_119 = arith.constant 0 : index
    %266 = vector.load %arg7[%c1_118, %c0_119] : memref<2x16xf32, #tpu.memory_space<vmem>>, vector<1x16xf32>
    tpu.vector_store %arg7[%c1_118, %c0_119], %265 {strides = array<i32>} : memref<2x16xf32, #tpu.memory_space<vmem>>, vector<1x16xf32>,
    %267 = vector.extract_strided_slice %9 {offsets = [0, 16], sizes = [1, 16], strides = [1, 1]} : vector<1x32xf32> to vector<1x16xf32>
    %268 = vector.broadcast %267 : vector<1x16xf32> to vector<4x16xf32>
    %269 = arith.mulf %268, %259 : vector<4x16xf32>
    %cst_120 = arith.constant 1.000000e+00 : f32
    %270 = vector.broadcast %cst_120 : f32 to vector<1x16xf32>
    %271 = arith.subf %270, %267 : vector<1x16xf32>
    %272 = vector.broadcast %271 : vector<1x16xf32> to vector<4x16xf32>
    %273 = arith.mulf %272, %230 : vector<4x16xf32>
    %274 = arith.addf %269, %273 : vector<4x16xf32>
    %275 = tpu.concatenate %212, %274 in 1 : vector<4x16xf32>, vector<4x16xf32> -> vector<4x32xf32>
    %276 = arith.truncf %275 : vector<4x32xf32> to vector<4x32xbf16>
    %c0_121 = arith.constant 0 : index
    %c4_122 = arith.constant 4 : index
    %c0_123 = arith.constant 0 : index
    %277 = vector.load %arg5[%c0_121, %c4_122, %c0_123] : memref<1x8x32xbf16, #tpu.memory_space<vmem>>, vector<1x4x32xbf16>
    %278 = vector.shape_cast %277 : vector<1x4x32xbf16> to vector<4x32xbf16>
    %279 = vector.shape_cast %276 : vector<4x32xbf16> to vector<1x4x32xbf16>
    tpu.vector_store %arg5[%c0_121, %c4_122, %c0_123], %279 {strides = array<i32>} : memref<1x8x32xbf16, #tpu.memory_space<vmem>>, vector<1x4x32xbf16>,
    return
  }
  func.func @transform_0(%arg0: i32) -> (i32, i32, i32) {
    %c0_i32 = arith.constant 0 : i32
    %c0_i32_0 = arith.constant 0 : i32
    %c0_i32_1 = arith.constant 0 : i32
    return %arg0, %c0_i32, %c0_i32_0 : i32, i32, i32
  }
  func.func @transform_1(%arg0: i32) -> (i32, i32, i32) {
    %c0_i32 = arith.constant 0 : i32
    %c0_i32_0 = arith.constant 0 : i32
    %c0_i32_1 = arith.constant 0 : i32
    return %arg0, %c0_i32, %c0_i32_0 : i32, i32, i32
  }
  func.func @transform_2(%arg0: i32) -> (i32, i32, i32) {
    %c0_i32 = arith.constant 0 : i32
    %c0_i32_0 = arith.constant 0 : i32
    %c0_i32_1 = arith.constant 0 : i32
    return %arg0, %c0_i32, %c0_i32_0 : i32, i32, i32
  }
  func.func @transform_3(%arg0: i32) -> (i32, i32) {
    %c0_i32 = arith.constant 0 : i32
    %c0_i32_0 = arith.constant 0 : i32
    %c0_i32_1 = arith.constant 0 : i32
    return %c0_i32, %c0_i32_0 : i32, i32
  }
  func.func @transform_4(%arg0: i32) -> (i32, i32, i32) {
    %c0_i32 = arith.constant 0 : i32
    %c0_i32_0 = arith.constant 0 : i32
    %c0_i32_1 = arith.constant 0 : i32
    return %arg0, %c0_i32, %c0_i32_0 : i32, i32, i32
  }
}

module attributes {stable_mosaic.version = 11 : i64} {
  func.func @_out_mlp_kernel(%arg0: i32, %arg1: memref<16x32xbf16, #tpu.memory_space<vmem>>, %arg2: memref<32x32xbf16, #tpu.memory_space<vmem>>, %arg3: memref<1x32xf32, #tpu.memory_space<vmem>>, %arg4: memref<32x64xbf16, #tpu.memory_space<vmem>>, %arg5: memref<1x64xf32, #tpu.memory_space<vmem>>, %arg6: memref<64x32xbf16, #tpu.memory_space<vmem>>, %arg7: memref<1x32xf32, #tpu.memory_space<vmem>>, %arg8: memref<16x32xf32, #tpu.memory_space<vmem>>) attributes {dimension_semantics = [#tpu.dimension_semantics<parallel>], iteration_bounds = array<i64: 1>, scalar_prefetch = 0 : i64, scratch_operands = 0 : i64, tpu.core_type = #tpu.core_type<tc>, window_params = [{transform_indices = @transform_0, window_bounds = array<i64: 16, 32>}, {pipeline_mode = #tpu.pipeline_mode<synchronous>, transform_indices = @transform_1, window_bounds = array<i64: 32, 32>}, {pipeline_mode = #tpu.pipeline_mode<synchronous>, transform_indices = @transform_2, window_bounds = array<i64: 1, 32>}, {pipeline_mode = #tpu.pipeline_mode<synchronous>, transform_indices = @transform_3, window_bounds = array<i64: 32, 64>}, {pipeline_mode = #tpu.pipeline_mode<synchronous>, transform_indices = @transform_4, window_bounds = array<i64: 1, 64>}, {pipeline_mode = #tpu.pipeline_mode<synchronous>, transform_indices = @transform_5, window_bounds = array<i64: 64, 32>}, {pipeline_mode = #tpu.pipeline_mode<synchronous>, transform_indices = @transform_6, window_bounds = array<i64: 1, 32>}, {transform_indices = @transform_7, window_bounds = array<i64: 16, 32>}]} {
    %c0 = arith.constant 0 : index
    %c0_0 = arith.constant 0 : index
    %0 = vector.load %arg1[%c0, %c0_0] : memref<16x32xbf16, #tpu.memory_space<vmem>>, vector<16x32xbf16>
    %c0_1 = arith.constant 0 : index
    %c0_2 = arith.constant 0 : index
    %1 = vector.load %arg2[%c0_1, %c0_2] : memref<32x32xbf16, #tpu.memory_space<vmem>>, vector<32x32xbf16>
    %cst = arith.constant dense<0.000000e+00> : vector<16x32xf32>
    %2 = tpu.matmul %0, %1, %cst {dimension_numbers = #tpu.dot_dimension_numbers<[1], [0], [0], [1], [0, 0, 1, 1], [], []>} : vector<16x32xbf16>, vector<32x32xbf16>, vector<16x32xf32> -> vector<16x32xf32>
    %c0_3 = arith.constant 0 : index
    %c0_4 = arith.constant 0 : index
    %3 = vector.load %arg3[%c0_3, %c0_4] : memref<1x32xf32, #tpu.memory_space<vmem>>, vector<1x32xf32>
    %4 = vector.broadcast %3 : vector<1x32xf32> to vector<16x32xf32>
    %5 = arith.addf %2, %4 : vector<16x32xf32>
    %6 = arith.truncf %5 : vector<16x32xf32> to vector<16x32xbf16>
    %c0_5 = arith.constant 0 : index
    %c0_6 = arith.constant 0 : index
    %7 = vector.load %arg4[%c0_5, %c0_6] : memref<32x64xbf16, #tpu.memory_space<vmem>>, vector<32x64xbf16>
    %cst_7 = arith.constant dense<0.000000e+00> : vector<16x64xf32>
    %8 = tpu.matmul %6, %7, %cst_7 {dimension_numbers = #tpu.dot_dimension_numbers<[1], [0], [0], [1], [0, 0, 1, 1], [], []>} : vector<16x32xbf16>, vector<32x64xbf16>, vector<16x64xf32> -> vector<16x64xf32>
    %c0_8 = arith.constant 0 : index
    %c0_9 = arith.constant 0 : index
    %9 = vector.load %arg5[%c0_8, %c0_9] : memref<1x64xf32, #tpu.memory_space<vmem>>, vector<1x64xf32>
    %10 = vector.broadcast %9 : vector<1x64xf32> to vector<16x64xf32>
    %11 = arith.addf %8, %10 : vector<16x64xf32>
    %cst_10 = arith.constant 0.000000e+00 : f32
    %12 = vector.broadcast %cst_10 : f32 to vector<16x64xf32>
    %13 = arith.maximumf %11, %12 : vector<16x64xf32>
    %14 = arith.truncf %13 : vector<16x64xf32> to vector<16x64xbf16>
    %c0_11 = arith.constant 0 : index
    %c0_12 = arith.constant 0 : index
    %15 = vector.load %arg6[%c0_11, %c0_12] : memref<64x32xbf16, #tpu.memory_space<vmem>>, vector<64x32xbf16>
    %cst_13 = arith.constant dense<0.000000e+00> : vector<16x32xf32>
    %16 = tpu.matmul %14, %15, %cst_13 {dimension_numbers = #tpu.dot_dimension_numbers<[1], [0], [0], [1], [0, 0, 1, 1], [], []>} : vector<16x64xbf16>, vector<64x32xbf16>, vector<16x32xf32> -> vector<16x32xf32>
    %c0_14 = arith.constant 0 : index
    %c0_15 = arith.constant 0 : index
    %17 = vector.load %arg7[%c0_14, %c0_15] : memref<1x32xf32, #tpu.memory_space<vmem>>, vector<1x32xf32>
    %18 = vector.broadcast %17 : vector<1x32xf32> to vector<16x32xf32>
    %19 = arith.addf %16, %18 : vector<16x32xf32>
    %c0_16 = arith.constant 0 : index
    %c0_17 = arith.constant 0 : index
    %20 = vector.load %arg8[%c0_16, %c0_17] : memref<16x32xf32, #tpu.memory_space<vmem>>, vector<16x32xf32>
    tpu.vector_store %arg8[%c0_16, %c0_17], %19 {strides = array<i32>} : memref<16x32xf32, #tpu.memory_space<vmem>>, vector<16x32xf32>,
    return
  }
  func.func @transform_0(%arg0: i32) -> (i32, i32) {
    %c0_i32 = arith.constant 0 : i32
    %c0_i32_0 = arith.constant 0 : i32
    return %arg0, %c0_i32 : i32, i32
  }
  func.func @transform_1(%arg0: i32) -> (i32, i32) {
    %c0_i32 = arith.constant 0 : i32
    %c0_i32_0 = arith.constant 0 : i32
    %c0_i32_1 = arith.constant 0 : i32
    return %c0_i32, %c0_i32_0 : i32, i32
  }
  func.func @transform_2(%arg0: i32) -> (i32, i32) {
    %c0_i32 = arith.constant 0 : i32
    %c0_i32_0 = arith.constant 0 : i32
    %c0_i32_1 = arith.constant 0 : i32
    return %c0_i32, %c0_i32_0 : i32, i32
  }
  func.func @transform_3(%arg0: i32) -> (i32, i32) {
    %c0_i32 = arith.constant 0 : i32
    %c0_i32_0 = arith.constant 0 : i32
    %c0_i32_1 = arith.constant 0 : i32
    return %c0_i32, %c0_i32_0 : i32, i32
  }
  func.func @transform_4(%arg0: i32) -> (i32, i32) {
    %c0_i32 = arith.constant 0 : i32
    %c0_i32_0 = arith.constant 0 : i32
    %c0_i32_1 = arith.constant 0 : i32
    return %c0_i32, %c0_i32_0 : i32, i32
  }
  func.func @transform_5(%arg0: i32) -> (i32, i32) {
    %c0_i32 = arith.constant 0 : i32
    %c0_i32_0 = arith.constant 0 : i32
    %c0_i32_1 = arith.constant 0 : i32
    return %c0_i32, %c0_i32_0 : i32, i32
  }
  func.func @transform_6(%arg0: i32) -> (i32, i32) {
    %c0_i32 = arith.constant 0 : i32
    %c0_i32_0 = arith.constant 0 : i32
    %c0_i32_1 = arith.constant 0 : i32
    return %c0_i32, %c0_i32_0 : i32, i32
  }
  func.func @transform_7(%arg0: i32) -> (i32, i32) {
    %c0_i32 = arith.constant 0 : i32
    %c0_i32_0 = arith.constant 0 : i32
    return %arg0, %c0_i32 : i32, i32
  }
}

module attributes {stable_mosaic.version = 11 : i64} {
  func.func @_layernorm_kernel(%arg0: i32, %arg1: memref<32x32xf32, #tpu.memory_space<vmem>>, %arg2: memref<1x32xf32, #tpu.memory_space<vmem>>, %arg3: memref<1x32xf32, #tpu.memory_space<vmem>>, %arg4: memref<32x32xf32, #tpu.memory_space<vmem>>) attributes {dimension_semantics = [#tpu.dimension_semantics<parallel>], iteration_bounds = array<i64: 1>, scalar_prefetch = 0 : i64, scratch_operands = 0 : i64, tpu.core_type = #tpu.core_type<tc>, window_params = [{transform_indices = @transform_0, window_bounds = array<i64: 32, 32>}, {pipeline_mode = #tpu.pipeline_mode<synchronous>, transform_indices = @transform_1, window_bounds = array<i64: 1, 32>}, {pipeline_mode = #tpu.pipeline_mode<synchronous>, transform_indices = @transform_2, window_bounds = array<i64: 1, 32>}, {transform_indices = @transform_3, window_bounds = array<i64: 32, 32>}]} {
    %c0 = arith.constant 0 : index
    %c0_0 = arith.constant 0 : index
    %0 = vector.load %arg1[%c0, %c0_0] : memref<32x32xf32, #tpu.memory_space<vmem>>, vector<32x32xf32>
    %cst = arith.constant dense<0.000000e+00> : vector<32xf32>
    %1 = vector.multi_reduction <add>, %0, %cst [1] : vector<32x32xf32> to vector<32xf32>
    %2 = vector.shape_cast %1 : vector<32xf32> to vector<32x1xf32>
    %cst_1 = arith.constant 3.200000e+01 : f32
    %3 = vector.broadcast %cst_1 : f32 to vector<32x1xf32>
    %4 = arith.divf %2, %3 : vector<32x1xf32>
    %5 = vector.broadcast %4 : vector<32x1xf32> to vector<32x32xf32>
    %6 = arith.subf %0, %5 : vector<32x32xf32>
    %7 = arith.mulf %6, %6 : vector<32x32xf32>
    %cst_2 = arith.constant dense<0.000000e+00> : vector<32xf32>
    %8 = vector.multi_reduction <add>, %7, %cst_2 [1] : vector<32x32xf32> to vector<32xf32>
    %9 = vector.shape_cast %8 : vector<32xf32> to vector<32x1xf32>
    %cst_3 = arith.constant 3.200000e+01 : f32
    %10 = vector.broadcast %cst_3 : f32 to vector<32x1xf32>
    %11 = arith.divf %9, %10 : vector<32x1xf32>
    %12 = vector.broadcast %4 : vector<32x1xf32> to vector<32x32xf32>
    %13 = arith.subf %0, %12 : vector<32x32xf32>
    %cst_4 = arith.constant 9.99999974E-6 : f32
    %14 = vector.broadcast %cst_4 : f32 to vector<32x1xf32>
    %15 = arith.addf %11, %14 : vector<32x1xf32>
    %16 = math.rsqrt %15 : vector<32x1xf32>
    %17 = vector.broadcast %16 : vector<32x1xf32> to vector<32x32xf32>
    %18 = arith.mulf %13, %17 : vector<32x32xf32>
    %c0_5 = arith.constant 0 : index
    %c0_6 = arith.constant 0 : index
    %19 = vector.load %arg2[%c0_5, %c0_6] : memref<1x32xf32, #tpu.memory_space<vmem>>, vector<1x32xf32>
    %20 = vector.broadcast %19 : vector<1x32xf32> to vector<32x32xf32>
    %21 = arith.mulf %18, %20 : vector<32x32xf32>
    %c0_7 = arith.constant 0 : index
    %c0_8 = arith.constant 0 : index
    %22 = vector.load %arg3[%c0_7, %c0_8] : memref<1x32xf32, #tpu.memory_space<vmem>>, vector<1x32xf32>
    %23 = vector.broadcast %22 : vector<1x32xf32> to vector<32x32xf32>
    %24 = arith.addf %21, %23 : vector<32x32xf32>
    %c0_9 = arith.constant 0 : index
    %c0_10 = arith.constant 0 : index
    %25 = vector.load %arg4[%c0_9, %c0_10] : memref<32x32xf32, #tpu.memory_space<vmem>>, vector<32x32xf32>
    tpu.vector_store %arg4[%c0_9, %c0_10], %24 {strides = array<i32>} : memref<32x32xf32, #tpu.memory_space<vmem>>, vector<32x32xf32>,
    return
  }
  func.func @transform_0(%arg0: i32) -> (i32, i32) {
    %c0_i32 = arith.constant 0 : i32
    %c0_i32_0 = arith.constant 0 : i32
    return %arg0, %c0_i32 : i32, i32
  }
  func.func @transform_1(%arg0: i32) -> (i32, i32) {
    %c0_i32 = arith.constant 0 : i32
    %c0_i32_0 = arith.constant 0 : i32
    %c0_i32_1 = arith.constant 0 : i32
    return %c0_i32, %c0_i32_0 : i32, i32
  }
  func.func @transform_2(%arg0: i32) -> (i32, i32) {
    %c0_i32 = arith.constant 0 : i32
    %c0_i32_0 = arith.constant 0 : i32
    %c0_i32_1 = arith.constant 0 : i32
    return %c0_i32, %c0_i32_0 : i32, i32
  }
  func.func @transform_3(%arg0: i32) -> (i32, i32) {
    %c0_i32 = arith.constant 0 : i32
    %c0_i32_0 = arith.constant 0 : i32
    return %arg0, %c0_i32 : i32, i32
  }
}

</mosaic_0001>

<llo_original>
// kernel: mod_infini_transformer_forward.6
$region0: #{mod_infini_transformer_forward.6}
  #allocation0 [shape = 'u32[]', space=smem, size = 0x4, offset = 0x4, fixed_abs, tag = 'smem constant byte address 0x4 - core index']
  #allocation1 [shape = 'u32[144,128]{1,0:T(1,128)}', space=vmem, size = 0x12000, scoped, tag = 'internal scratch']
  %s0 = inlined_call_operand.vmem [shape: bf16[16,32], index: 0, kind: input, shape index: {}]
  %s1 = inlined_call_operand.vmem [shape: bf16[32,32], index: 1, kind: input, shape index: {}]
  %s2 = inlined_call_operand.vmem [shape: f32[1,32], index: 2, kind: input, shape index: {}]
  %s3 = inlined_call_operand.vmem [shape: bf16[32,64], index: 3, kind: input, shape index: {}]
  %s4 = inlined_call_operand.vmem [shape: f32[1,64], index: 4, kind: input, shape index: {}]
  %s5 = inlined_call_operand.vmem [shape: bf16[64,32], index: 5, kind: input, shape index: {}]
  %s6 = inlined_call_operand.vmem [shape: f32[1,32], index: 6, kind: input, shape index: {}]
  %s7 = inlined_call_operand.vmem [shape: f32[16,32], index: 7, kind: output, shape index: {}]
  %s8 = sld [smem:[#allocation0]]
  $region38: #{mod_infini_transformer_forward.6} parent=0
    _
  %s10 = ssub.s32 1, %s8
  %s11 = scalar_select 0, %s10, %s8
  // Predicated region
  $region2: #{mod_infini_transformer_forward.6} parent=0 // pred_check
    _
  $region3: #{mod_infini_transformer_forward.6} parent=0 // pred_check_branch
    %13 = sbr.rel (0) target = $region5
  $region4: #{mod_infini_transformer_forward.6} parent=0 // pred_region
    _
  $region5: #{mod_infini_transformer_forward.6} parent=0 // pred_fallthru
    _
  // Predicated region
  $region6: #{mod_infini_transformer_forward.6} parent=0 // pred_check
    _
  $region7: #{mod_infini_transformer_forward.6} parent=0 // pred_check_branch
    %15 = sbr.rel (0) target = $region9
  $region8: #{mod_infini_transformer_forward.6} parent=0 // pred_region
    _
  $region9: #{mod_infini_transformer_forward.6} parent=0 // pred_fallthru
    _
  // Predicated region
  $region10: #{mod_infini_transformer_forward.6} parent=0 // pred_check
    _
  $region11: #{mod_infini_transformer_forward.6} parent=0 // pred_check_branch
    %17 = sbr.rel (0) target = $region13
  $region12: #{mod_infini_transformer_forward.6} parent=0 // pred_region
    _
  $region13: #{mod_infini_transformer_forward.6} parent=0 // pred_fallthru
    _
  // Predicated region
  $region14: #{mod_infini_transformer_forward.6} parent=0 // pred_check
    _
  $region15: #{mod_infini_transformer_forward.6} parent=0 // pred_check_branch
    %19 = sbr.rel (0) target = $region17
  $region16: #{mod_infini_transformer_forward.6} parent=0 // pred_region
    _
  $region17: #{mod_infini_transformer_forward.6} parent=0 // pred_fallthru
    _
  // Predicated region
  $region18: #{mod_infini_transformer_forward.6} parent=0 // pred_check
    _
  $region19: #{mod_infini_transformer_forward.6} parent=0 // pred_check_branch
    %21 = sbr.rel (0) target = $region21
  $region20: #{mod_infini_transformer_forward.6} parent=0 // pred_region
    _
  $region21: #{mod_infini_transformer_forward.6} parent=0 // pred_fallthru
    _
  // Predicated region
  $region22: #{mod_infini_transformer_forward.6} parent=0 // pred_check
    _
  $region23: #{mod_infini_transformer_forward.6} parent=0 // pred_check_branch
    %23 = sbr.rel (0) target = $region25
  $region24: #{mod_infini_transformer_forward.6} parent=0 // pred_region
    _
  $region25: #{mod_infini_transformer_forward.6} parent=0 // pred_fallthru
    _
  // Predicated region
  $region26: #{mod_infini_transformer_forward.6} parent=0 // pred_check
    _
  $region27: #{mod_infini_transformer_forward.6} parent=0 // pred_check_branch
    %25 = sbr.rel (0) target = $region29
  $region28: #{mod_infini_transformer_forward.6} parent=0 // pred_region
    _
  $region29: #{mod_infini_transformer_forward.6} parent=0 // pred_fallthru
    _
  %v27 = vld [vmem:[%s0] sm:$0xf]
  %v28 = vld [vmem:[%s0 + $0x4] sm:$0xf]
  %v29 = vld [vmem:[%s1] sm:$0xf]
  %v30 = vld [vmem:[%s1 + $0x4] sm:$0xf]
  %v31 = vld [vmem:[%s1 + $0x8] sm:$0xf]
  %v32 = vld [vmem:[%s1 + $0xc] sm:$0xf]
  %v33 = vld [vmem:[%s2] sm:$0x1]
  %v35 = vlaneseq
  %v36 = vshrl.u32 %v35, 7
  %v37 = vsub.s32 0, %v36
  %v38 = vrot.slane %v33, %v37
  %v42 = vunpack.c.l.b16 %v27
  %v43 = vunpack.c.l.b16 %v28
  %v44 = vpack.c.b16 %v43, %v42
  %v49 = vunpack.c.l.b16 %v29
  %v50 = vunpack.c.l.b16 %v30
  %v51 = vunpack.c.l.b16 %v31
  %v52 = vunpack.c.l.b16 %v32
  %v53 = vpack.c.b16 %v50, %v49
  %v54 = vpack.c.b16 %v52, %v51
  %vm57 = vcmask 261120
  %v59 = vsel %vm57, %v44, 0
  %61 = vmatprep.subr.bf16.mxu0 0
  %62 = vmatpush1.bf16.msra.mxu0 0
  %63 = vmatprep.subr.bf16.mxu0 0
  %64 = vmatpush1.bf16.msra.mxu0 0
  %65 = vmatprep.subr.bf16.mxu0 0
  %66 = vmatpush1.bf16.msra.mxu0 0
  %67 = vmatprep.subr.bf16.mxu0 0
  %68 = vmatpush1.bf16.msra.mxu0 0
  %69 = vmatprep.subr.bf16.mxu0 0
  %70 = vmatpush1.bf16.msra.mxu0 0
  %71 = vmatprep.subr.bf16.mxu0 0
  %72 = vmatpush1.bf16.msra.mxu0 0
  %73 = vmatprep.subr.bf16.mxu0 0
  %74 = vmatpush1.bf16.msra.mxu0 %v54
  %75 = vmatprep.subr.bf16.mxu0 0
  %76 = vmatpush1.bf16.msra.mxu0 %v53
  %77 = vmatprep.subr.bf16.mxu0 0
  %78 = vmatpush2.bf16.msra.mxu0 0
  %79 = vmatprep.subr.bf16.mxu0 0
  %80 = vmatpush2.bf16.msra.mxu0 0
  %81 = vmatprep.subr.bf16.mxu0 0
  %82 = vmatpush2.bf16.msra.mxu0 0
  %83 = vmatprep.subr.bf16.mxu0 0
  %84 = vmatpush2.bf16.msra.mxu0 0
  %85 = vmatprep.subr.bf16.mxu0 0
  %86 = vmatpush2.bf16.msra.mxu0 0
  %87 = vmatprep.subr.bf16.mxu0 0
  %88 = vmatpush2.bf16.msra.mxu0 0
  %89 = vmatprep.subr.bf16.mxu0 0
  %90 = vmatpush2.bf16.msra.mxu0 0
  %91 = vmatprep.subr.bf16.mxu0 0
  %92 = vmatpush2.bf16.msra.mxu0 0
  %93 = vmatprep.mubr.bf16.mxu0 0
  %94 = vmatmul.mubr.bf16.gmra.mxu0 %v59
  %v95 = vpop.f32.mrf.mxu0
  %v96 = vadd.f32 %v38, %v95
  %v97 = vpop.f32.mrf.mxu0
  %v98 = vpop.f32.mrf.mxu0
  %v99 = vadd.f32 %v38, %v98
  %v100 = vpop.f32.mrf.mxu0
  %101 = vdwg.mxu0
  %v102 = vpack.c.bf16 %v99, %v96
  %v103 = vld [vmem:[%s3] sm:$0xf]
  %v104 = vld [vmem:[%s3 + $0x4] sm:$0xf]
  %v105 = vld [vmem:[%s3 + $0x8] sm:$0xf]
  %v106 = vld [vmem:[%s3 + $0xc] sm:$0xf]
  %v107 = vld [vmem:[%s4] sm:$0x1]
  %v109 = vlaneseq
  %v110 = vshrl.u32 %v109, 7
  %v111 = vsub.s32 0, %v110
  %v112 = vrot.slane %v107, %v111
  %v118 = vunpack.c.l.b16 %v103
  %v119 = vunpack.c.l.b16 %v104
  %v120 = vunpack.c.l.b16 %v105
  %v121 = vunpack.c.l.b16 %v106
  %v122 = vpack.c.b16 %v119, %v118
  %v123 = vpack.c.b16 %v121, %v120
  %v127 = vsel %vm57, %v102, 0
  %129 = vmatprep.subr.bf16.mxu0 0
  %130 = vmatpush1.bf16.msra.mxu0 0
  %131 = vmatprep.subr.bf16.mxu0 0
  %132 = vmatpush1.bf16.msra.mxu0 0
  %133 = vmatprep.subr.bf16.mxu0 0
  %134 = vmatpush1.bf16.msra.mxu0 0
  %135 = vmatprep.subr.bf16.mxu0 0
  %136 = vmatpush1.bf16.msra.mxu0 0
  %137 = vmatprep.subr.bf16.mxu0 0
  %138 = vmatpush1.bf16.msra.mxu0 0
  %139 = vmatprep.subr.bf16.mxu0 0
  %140 = vmatpush1.bf16.msra.mxu0 0
  %141 = vmatprep.subr.bf16.mxu0 0
  %142 = vmatpush1.bf16.msra.mxu0 %v123
  %143 = vmatprep.subr.bf16.mxu0 0
  %144 = vmatpush1.bf16.msra.mxu0 %v122
  %145 = vmatprep.subr.bf16.mxu0 0
  %146 = vmatpush2.bf16.msra.mxu0 0
  %147 = vmatprep.subr.bf16.mxu0 0
  %148 = vmatpush2.bf16.msra.mxu0 0
  %149 = vmatprep.subr.bf16.mxu0 0
  %150 = vmatpush2.bf16.msra.mxu0 0
  %151 = vmatprep.subr.bf16.mxu0 0
  %152 = vmatpush2.bf16.msra.mxu0 0
  %153 = vmatprep.subr.bf16.mxu0 0
  %154 = vmatpush2.bf16.msra.mxu0 0
  %155 = vmatprep.subr.bf16.mxu0 0
  %156 = vmatpush2.bf16.msra.mxu0 0
  %157 = vmatprep.subr.bf16.mxu0 0
  %158 = vmatpush2.bf16.msra.mxu0 0
  %159 = vmatprep.subr.bf16.mxu0 0
  %160 = vmatpush2.bf16.msra.mxu0 0
  %161 = vmatprep.mubr.bf16.mxu0 0
  %162 = vmatmul.mubr.bf16.gmra.mxu0 %v127
  %v163 = vpop.f32.mrf.mxu0
  %v164 = vadd.f32 %v112, %v163
  %v165 = vpop.f32.mrf.mxu0
  %v166 = vpop.f32.mrf.mxu0
  %v167 = vadd.f32 %v112, %v166
  %v168 = vpop.f32.mrf.mxu0
  %169 = vdwg.mxu0
  %v170 = vmax.f32 %v164, 0.0
  %v171 = vmax.f32 %v167, 0.0
  %v172 = vpack.c.bf16 %v171, %v170
  %v173 = vld [vmem:[%s5] sm:$0xf]
  %v174 = vld [vmem:[%s5 + $0x4] sm:$0xf]
  %v175 = vld [vmem:[%s5 + $0x8] sm:$0xf]
  %v176 = vld [vmem:[%s5 + $0xc] sm:$0xf]
  %v177 = vld [vmem:[%s5 + $0x10] sm:$0xf]
  %v178 = vld [vmem:[%s5 + $0x14] sm:$0xf]
  %v179 = vld [vmem:[%s5 + $0x18] sm:$0xf]
  %v180 = vld [vmem:[%s5 + $0x1c] sm:$0xf]
  %v181 = vld [vmem:[%s6] sm:$0x1]
  %v183 = vlaneseq
  %v184 = vshrl.u32 %v183, 7
  %v185 = vsub.s32 0, %v184
  %v186 = vrot.slane %v181, %v185
  %v196 = vunpack.c.l.b16 %v173
  %v197 = vunpack.c.l.b16 %v174
  %v198 = vunpack.c.l.b16 %v175
  %v199 = vunpack.c.l.b16 %v176
  %v200 = vunpack.c.l.b16 %v177
  %v201 = vunpack.c.l.b16 %v178
  %v202 = vunpack.c.l.b16 %v179
  %v203 = vunpack.c.l.b16 %v180
  %v204 = vpack.c.b16 %v197, %v196
  %v205 = vpack.c.b16 %v199, %v198
  %v206 = vpack.c.b16 %v201, %v200
  %v207 = vpack.c.b16 %v203, %v202
  %vm212 = vcmask 523264
  %v214 = vsel %vm212, %v172, 0
  %216 = vmatprep.subr.bf16.mxu0 0
  %217 = vmatpush1.bf16.msra.mxu0 0
  %218 = vmatprep.subr.bf16.mxu0 0
  %219 = vmatpush1.bf16.msra.mxu0 0
  %220 = vmatprep.subr.bf16.mxu0 0
  %221 = vmatpush1.bf16.msra.mxu0 0
  %222 = vmatprep.subr.bf16.mxu0 0
  %223 = vmatpush1.bf16.msra.mxu0 0
  %224 = vmatprep.subr.bf16.mxu0 0
  %225 = vmatpush1.bf16.msra.mxu0 %v207
  %226 = vmatprep.subr.bf16.mxu0 0
  %227 = vmatpush1.bf16.msra.mxu0 %v206
  %228 = vmatprep.subr.bf16.mxu0 0
  %229 = vmatpush1.bf16.msra.mxu0 %v205
  %230 = vmatprep.subr.bf16.mxu0 0
  %231 = vmatpush1.bf16.msra.mxu0 %v204
  %232 = vmatprep.subr.bf16.mxu0 0
  %233 = vmatpush2.bf16.msra.mxu0 0
  %234 = vmatprep.subr.bf16.mxu0 0
  %235 = vmatpush2.bf16.msra.mxu0 0
  %236 = vmatprep.subr.bf16.mxu0 0
  %237 = vmatpush2.bf16.msra.mxu0 0
  %238 = vmatprep.subr.bf16.mxu0 0
  %239 = vmatpush2.bf16.msra.mxu0 0
  %240 = vmatprep.subr.bf16.mxu0 0
  %241 = vmatpush2.bf16.msra.mxu0 0
  %242 = vmatprep.subr.bf16.mxu0 0
  %243 = vmatpush2.bf16.msra.mxu0 0
  %244 = vmatprep.subr.bf16.mxu0 0
  %245 = vmatpush2.bf16.msra.mxu0 0
  %246 = vmatprep.subr.bf16.mxu0 0
  %247 = vmatpush2.bf16.msra.mxu0 0
  %248 = vmatprep.mubr.bf16.mxu0 0
  %249 = vmatmul.mubr.bf16.gmra.mxu0 %v214
  %v250 = vpop.f32.mrf.mxu0
  %v251 = vadd.f32 %v186, %v250
  %v252 = vpop.f32.mrf.mxu0
  %v253 = vpop.f32.mrf.mxu0
  %v254 = vadd.f32 %v186, %v253
  %v255 = vpop.f32.mrf.mxu0
  %256 = vdwg.mxu0
  %257 = vst.msk [vmem:[%s7] sm:$0xff] %vm57, %v251
  %258 = vst.msk [vmem:[%s7 + $0x8] sm:$0xff] %vm57, %v254
  // Predicated region
  $region30: #{mod_infini_transformer_forward.6} parent=0 // pred_check
    _
  $region31: #{mod_infini_transformer_forward.6} parent=0 // pred_check_branch
    %260 = sbr.rel (0) target = $region33
  $region32: #{mod_infini_transformer_forward.6} parent=0 // pred_region
    _
  $region33: #{mod_infini_transformer_forward.6} parent=0 // pred_fallthru
    _
  // Predicated region
  $region34: #{mod_infini_transformer_forward.6} parent=0 // pred_check
    _
  $region35: #{mod_infini_transformer_forward.6} parent=0 // pred_check_branch
    %262 = sbr.rel (0) target = $region37
  $region36: #{mod_infini_transformer_forward.6} parent=0 // pred_region
    _
  $region37: #{mod_infini_transformer_forward.6} parent=0 // pred_fallthru
    _

// kernel: mod_infini_transformer_forward.4
$region0: #{mod_infini_transformer_forward.4}
  #allocation0 [shape = 'u32[]', space=smem, size = 0x4, offset = 0x4, fixed_abs, tag = 'smem constant byte address 0x4 - core index']
  #allocation1 [shape = 'u32[144,128]{1,0:T(1,128)}', space=vmem, size = 0x12000, scoped, tag = 'internal scratch']
  #allocation2 [shape = 'f32[16,96]{1,0:T(8,128)}', space=vmem, size = 0x2000, scoped, tag = 'scratch operand']
  %s0 = inlined_call_operand.vmem [shape: bf16[16,32], index: 0, kind: input, shape index: {}]
  %s1 = inlined_call_operand.vmem [shape: bf16[32,96], index: 1, kind: input, shape index: {}]
  %s2 = inlined_call_operand.vmem [shape: bf16[16,96], index: 2, kind: output, shape index: {}]
  %s3 = sld [smem:[#allocation0]]
  $region26: #{mod_infini_transformer_forward.4} parent=0
    _
  %s5 = ssub.s32 1, %s3
  %s6 = scalar_select 0, %s5, %s3
  // Predicated region
  $region2: #{mod_infini_transformer_forward.4} parent=0 // pred_check
    _
  $region3: #{mod_infini_transformer_forward.4} parent=0 // pred_check_branch
    %8 = sbr.rel (0) target = $region5
  $region4: #{mod_infini_transformer_forward.4} parent=0 // pred_region
    _
  $region5: #{mod_infini_transformer_forward.4} parent=0 // pred_fallthru
    _
  // Predicated region
  $region6: #{mod_infini_transformer_forward.4} parent=0 // pred_check
    _
  $region7: #{mod_infini_transformer_forward.4} parent=0 // pred_check_branch
    %10 = sbr.rel (0) target = $region9
  $region8: #{mod_infini_transformer_forward.4} parent=0 // pred_region
    _
  $region9: #{mod_infini_transformer_forward.4} parent=0 // pred_fallthru
    _
  %p12 = scmp.eq.s32.totalorder 0, 0
  // Predicated region
  $region10: #{mod_infini_transformer_forward.4} parent=0 // pred_check
    %p13 = pneg %p12
  $region11: #{mod_infini_transformer_forward.4} parent=0 // pred_check_branch
    %15 = sbr.rel (%p13) target = $region13
  $region12: #{mod_infini_transformer_forward.4} parent=0 // pred_region
    %vm16 = vcmask 785408
    %17 = vst.msk [vmem:[#allocation2] sm:$0xff] %vm16, 0.0
    %18 = vst.msk [vmem:[#allocation2 + $0x8] sm:$0xff] %vm16, 0.0
  $region13: #{mod_infini_transformer_forward.4} parent=0 // pred_fallthru
    _
  %v19 = vld [vmem:[#allocation2] sm:$0xff]
  %v20 = vld [vmem:[#allocation2 + $0x8] sm:$0xff]
  %v21 = vld [vmem:[%s0] sm:$0xf]
  %v22 = vld [vmem:[%s0 + $0x4] sm:$0xf]
  %v23 = vld [vmem:[%s1] sm:$0xf]
  %v24 = vld [vmem:[%s1 + $0x4] sm:$0xf]
  %v25 = vld [vmem:[%s1 + $0x8] sm:$0xf]
  %v26 = vld [vmem:[%s1 + $0xc] sm:$0xf]
  %v29 = vunpack.c.l.b16 %v21
  %v30 = vunpack.c.l.b16 %v22
  %v31 = vpack.c.b16 %v30, %v29
  %v36 = vunpack.c.l.b16 %v23
  %v37 = vunpack.c.l.b16 %v24
  %v38 = vunpack.c.l.b16 %v25
  %v39 = vunpack.c.l.b16 %v26
  %v40 = vpack.c.b16 %v37, %v36
  %v41 = vpack.c.b16 %v39, %v38
  %vm44 = vcmask 261120
  %v46 = vsel %vm44, %v31, 0
  %48 = vmatprep.subr.bf16.mxu0 0
  %49 = vmatpush1.bf16.msra.mxu0 0
  %50 = vmatprep.subr.bf16.mxu0 0
  %51 = vmatpush1.bf16.msra.mxu0 0
  %52 = vmatprep.subr.bf16.mxu0 0
  %53 = vmatpush1.bf16.msra.mxu0 0
  %54 = vmatprep.subr.bf16.mxu0 0
  %55 = vmatpush1.bf16.msra.mxu0 0
  %56 = vmatprep.subr.bf16.mxu0 0
  %57 = vmatpush1.bf16.msra.mxu0 0
  %58 = vmatprep.subr.bf16.mxu0 0
  %59 = vmatpush1.bf16.msra.mxu0 0
  %60 = vmatprep.subr.bf16.mxu0 0
  %61 = vmatpush1.bf16.msra.mxu0 %v41
  %62 = vmatprep.subr.bf16.mxu0 0
  %63 = vmatpush1.bf16.msra.mxu0 %v40
  %64 = vmatprep.subr.bf16.mxu0 0
  %65 = vmatpush2.bf16.msra.mxu0 0
  %66 = vmatprep.subr.bf16.mxu0 0
  %67 = vmatpush2.bf16.msra.mxu0 0
  %68 = vmatprep.subr.bf16.mxu0 0
  %69 = vmatpush2.bf16.msra.mxu0 0
  %70 = vmatprep.subr.bf16.mxu0 0
  %71 = vmatpush2.bf16.msra.mxu0 0
  %72 = vmatprep.subr.bf16.mxu0 0
  %73 = vmatpush2.bf16.msra.mxu0 0
  %74 = vmatprep.subr.bf16.mxu0 0
  %75 = vmatpush2.bf16.msra.mxu0 0
  %76 = vmatprep.subr.bf16.mxu0 0
  %77 = vmatpush2.bf16.msra.mxu0 0
  %78 = vmatprep.subr.bf16.mxu0 0
  %79 = vmatpush2.bf16.msra.mxu0 0
  %80 = vmatprep.mubr.bf16.mxu0 0
  %81 = vmatmul.mubr.bf16.gmra.mxu0 %v46
  %v82 = vpop.f32.mrf.mxu0
  %v83 = vadd.f32 0.0, %v82
  %v84 = vpop.f32.mrf.mxu0
  %v85 = vpop.f32.mrf.mxu0
  %v86 = vadd.f32 0.0, %v85
  %v87 = vpop.f32.mrf.mxu0
  %88 = vdwg.mxu0
  %v89 = vadd.f32 %v19, %v83
  %v90 = vadd.f32 %v20, %v86
  %vm91 = vcmask 785408
  %92 = vst.msk [vmem:[#allocation2] sm:$0xff] %vm91, %v89
  %93 = vst.msk [vmem:[#allocation2 + $0x8] sm:$0xff] %vm91, %v90
  // Predicated region
  $region14: #{mod_infini_transformer_forward.4} parent=0 // pred_check
    %p94 = pneg %p12
  $region15: #{mod_infini_transformer_forward.4} parent=0 // pred_check_branch
    %96 = sbr.rel (%p94) target = $region17
  $region16: #{mod_infini_transformer_forward.4} parent=0 // pred_region
    %v97 = vld [vmem:[#allocation2] sm:$0xff]
    %v98 = vld [vmem:[#allocation2 + $0x8] sm:$0xff]
    %v99 = vpack.c.bf16 %v98, %v97
    %v101 = vunpack.c.l.b16 %v99
    %v102 = vunpack.c.h.b16 %v99
    %v103 = vpack.c.b16 %v101, %v101
    %v104 = vpack.c.b16 %v102, %v102
    %vm107 = vcmask 781312
    %108 = vst.msk [vmem:[%s2] sm:$0xf] %vm107, %v103
    %109 = vst.msk [vmem:[%s2 + $0x4] sm:$0xf] %vm107, %v104
  $region17: #{mod_infini_transformer_forward.4} parent=0 // pred_fallthru
    _
  // Predicated region
  $region18: #{mod_infini_transformer_forward.4} parent=0 // pred_check
    _
  $region19: #{mod_infini_transformer_forward.4} parent=0 // pred_check_branch
    %111 = sbr.rel (0) target = $region21
  $region20: #{mod_infini_transformer_forward.4} parent=0 // pred_region
    _
  $region21: #{mod_infini_transformer_forward.4} parent=0 // pred_fallthru
    _
  // Predicated region
  $region22: #{mod_infini_transformer_forward.4} parent=0 // pred_check
    _
  $region23: #{mod_infini_transformer_forward.4} parent=0 // pred_check_branch
    %113 = sbr.rel (0) target = $region25
  $region24: #{mod_infini_transformer_forward.4} parent=0 // pred_region
    _
  $region25: #{mod_infini_transformer_forward.4} parent=0 // pred_fallthru
    _

// kernel: mod_infini_transformer_forward.5
$region0: #{mod_infini_transformer_forward.5}
  #allocation0 [shape = 'u32[]', space=smem, size = 0x4, offset = 0x4, fixed_abs, tag = 'smem constant byte address 0x4 - core index']
  #allocation1 [shape = 'u32[144,128]{1,0:T(1,128)}', space=vmem, size = 0x12000, scoped, tag = 'internal scratch']
  #allocation2 [shape = 'f32[32,16]{1,0:T(8,128)}', space=vmem, size = 0x4000, scoped, tag = 'scratch operand']
  #allocation3 [shape = 'f32[2,16]{1,0:T(2,128)}', space=vmem, size = 0x400, scoped, tag = 'scratch operand']
  %s0 = inlined_call_operand.vmem [shape: bf16[2,8,32], index: 0, kind: input, shape index: {}]
  %s1 = inlined_call_operand.vmem [shape: bf16[2,8,32], index: 1, kind: input, shape index: {}]
  %s2 = inlined_call_operand.vmem [shape: bf16[2,8,32], index: 2, kind: input, shape index: {}]
  %s3 = inlined_call_operand.vmem [shape: f32[1,32], index: 3, kind: input, shape index: {}]
  %s4 = inlined_call_operand.vmem [shape: bf16[2,8,32], index: 4, kind: output, shape index: {}]
  %s5 = sld [smem:[#allocation0]]
  $region49: #{mod_infini_transformer_forward.5} parent=0
    _
  %s7 = ssub.s32 1, %s5
  %s8 = scalar_select 0, %s7, %s5
  loop: start=0, step=1, limit=4
  $region2: #{mod_infini_transformer_forward.5} parent=0 // loop_pre_header
    _
  $region3: #{mod_infini_transformer_forward.5} parent=0 // loop_header
    %s10 = sphi 0, %s14
    %p11 = scmp.ge.s32.totalorder %s10, 4
    %s20 = sphi 0, %s22
    %s23 = sphi 0, %s20
    %s24 = sphi 0, %s23
    %s40 = sphi 0, %s24
    %s46 = sphi 0, %s48
    %s49 = sphi 0, %s46
    %s50 = sphi 0, %s49
    %s66 = sphi 0, %s50
    %s72 = sphi 0, %s74
    %s75 = sphi 0, %s72
    %s76 = sphi 0, %s75
    %s92 = sphi 0, %s76
    %s96 = sphi 0, %s96
    %s98 = sphi 0, %s96
    %s99 = sphi 0, %s98
    %s113 = sphi 0, %s99
    %s119 = sphi 0, %s121
    %s122 = sphi 0, %s119
    %s123 = sphi 0, %s122
    %s139 = sphi 0, %s123
  $region4: #{mod_infini_transformer_forward.5} parent=0 // loop_header_branch
    %13 = sbr.rel (%p11) target = $region8
  $region5: #{mod_infini_transformer_forward.5} parent=0 // loop_body
    %s15 = ssub.s32 %s10, 1
    %s16 = ssub.s32 %s10, 2
    %s17 = sadd.s32 %s10, 1
    %s18 = ssub.s32 %s10, %s17
    %p19 = scmp.eq.s32.totalorder %s18, 0
    %s21 = sadd.s32 %s20, 1
    %s22 = scalar_select %p19, %s20, %s21
    %p25 = pneg %p19
    %p26 = scmp.eq.s32.totalorder %s10, 1
    %p27 = por %p25, %p26
    %p28 = scmp.ne.s32.totalorder %s20, %s23
    %p29 = scmp.eq.s32.totalorder %s10, 0
    %p30 = por %p28, %p29
    %p31 = scmp.ne.s32.totalorder %s20, %s23
    %p32 = scmp.eq.s32.totalorder %s15, 1
    %p33 = por %p31, %p32
    %p34 = scmp.ne.s32.totalorder %s23, %s24
    %p35 = scmp.eq.s32.totalorder %s15, 0
    %p36 = por %p34, %p35
    %p37 = scmp.ne.s32.totalorder %s23, %s24
    %p38 = scmp.eq.s32.totalorder %s16, 1
    %p39 = por %p37, %p38
    %p41 = scmp.ne.s32.totalorder %s24, %s40
    %p42 = scmp.eq.s32.totalorder %s16, 0
    %p43 = por %p41, %p42
    %s44 = ssub.s32 %s10, %s17
    %p45 = scmp.eq.s32.totalorder %s44, 0
    %s47 = sadd.s32 %s46, 1
    %s48 = scalar_select %p45, %s46, %s47
    %p51 = pneg %p45
    %p52 = scmp.eq.s32.totalorder %s10, 1
    %p53 = por %p51, %p52
    %p54 = scmp.ne.s32.totalorder %s46, %s49
    %p55 = scmp.eq.s32.totalorder %s10, 0
    %p56 = por %p54, %p55
    %p57 = scmp.ne.s32.totalorder %s46, %s49
    %p58 = scmp.eq.s32.totalorder %s15, 1
    %p59 = por %p57, %p58
    %p60 = scmp.ne.s32.totalorder %s49, %s50
    %p61 = scmp.eq.s32.totalorder %s15, 0
    %p62 = por %p60, %p61
    %p63 = scmp.ne.s32.totalorder %s49, %s50
    %p64 = scmp.eq.s32.totalorder %s16, 1
    %p65 = por %p63, %p64
    %p67 = scmp.ne.s32.totalorder %s50, %s66
    %p68 = scmp.eq.s32.totalorder %s16, 0
    %p69 = por %p67, %p68
    %s70 = ssub.s32 %s10, %s17
    %p71 = scmp.eq.s32.totalorder %s70, 0
    %s73 = sadd.s32 %s72, 1
    %s74 = scalar_select %p71, %s72, %s73
    %p77 = pneg %p71
    %p78 = scmp.eq.s32.totalorder %s10, 1
    %p79 = por %p77, %p78
    %p80 = scmp.ne.s32.totalorder %s72, %s75
    %p81 = scmp.eq.s32.totalorder %s10, 0
    %p82 = por %p80, %p81
    %p83 = scmp.ne.s32.totalorder %s72, %s75
    %p84 = scmp.eq.s32.totalorder %s15, 1
    %p85 = por %p83, %p84
    %p86 = scmp.ne.s32.totalorder %s75, %s76
    %p87 = scmp.eq.s32.totalorder %s15, 0
    %p88 = por %p86, %p87
    %p89 = scmp.ne.s32.totalorder %s75, %s76
    %p90 = scmp.eq.s32.totalorder %s16, 1
    %p91 = por %p89, %p90
    %p93 = scmp.ne.s32.totalorder %s76, %s92
    %p94 = scmp.eq.s32.totalorder %s16, 0
    %p95 = por %p93, %p94
    %s97 = sadd.s32 %s96, 1
    %p100 = scmp.eq.s32.totalorder %s10, 1
    %p101 = scmp.ne.s32.totalorder %s96, %s98
    %p102 = scmp.eq.s32.totalorder %s10, 0
    %p103 = por %p101, %p102
    %p104 = scmp.ne.s32.totalorder %s96, %s98
    %p105 = scmp.eq.s32.totalorder %s15, 1
    %p106 = por %p104, %p105
    %p107 = scmp.ne.s32.totalorder %s98, %s99
    %p108 = scmp.eq.s32.totalorder %s15, 0
    %p109 = por %p107, %p108
    %p110 = scmp.ne.s32.totalorder %s98, %s99
    %p111 = scmp.eq.s32.totalorder %s16, 1
    %p112 = por %p110, %p111
    %p114 = scmp.ne.s32.totalorder %s99, %s113
    %p115 = scmp.eq.s32.totalorder %s16, 0
    %p116 = por %p114, %p115
    %s117 = ssub.s32 %s10, %s17
    %p118 = scmp.eq.s32.totalorder %s117, 0
    %s120 = sadd.s32 %s119, 1
    %s121 = scalar_select %p118, %s119, %s120
    %p124 = pneg %p118
    %p125 = scmp.eq.s32.totalorder %s10, 1
    %p126 = por %p124, %p125
    %p127 = scmp.ne.s32.totalorder %s119, %s122
    %p128 = scmp.eq.s32.totalorder %s10, 0
    %p129 = por %p127, %p128
    %p130 = scmp.ne.s32.totalorder %s119, %s122
    %p131 = scmp.eq.s32.totalorder %s15, 1
    %p132 = por %p130, %p131
    %p133 = scmp.ne.s32.totalorder %s122, %s123
    %p134 = scmp.eq.s32.totalorder %s15, 0
    %p135 = por %p133, %p134
    %p136 = scmp.ne.s32.totalorder %s122, %s123
    %p137 = scmp.eq.s32.totalorder %s16, 1
    %p138 = por %p136, %p137
    %p140 = scmp.ne.s32.totalorder %s123, %s139
    %p141 = scmp.eq.s32.totalorder %s16, 0
    %p142 = por %p140, %p141
    %p143 = scmp.le.s32.totalorder 1, %s10
    %p144 = scmp.lt.s32.totalorder %s10, 3
    %p145 = pnand %p143, %p144
    %p146 = pneg %p145
    // Predicated region
    $region9: #{mod_infini_transformer_forward.5} parent=5 // pred_check
      _
    $region10: #{mod_infini_transformer_forward.5} parent=5 // pred_check_branch
      %148 = sbr.rel (%p145) target = $region12
    $region11: #{mod_infini_transformer_forward.5} parent=5 // pred_region
      %s149 = ssub.s32 %s10, 1
      // Predicated region
      $region13: #{mod_infini_transformer_forward.5} parent=11 // pred_check
        %p150 = pneg %p109
      $region14: #{mod_infini_transformer_forward.5} parent=11 // pred_check_branch
        %152 = sbr.rel (%p150) target = $region16
      $region15: #{mod_infini_transformer_forward.5} parent=11 // pred_region
        _
      $region16: #{mod_infini_transformer_forward.5} parent=11 // pred_fallthru
        _
    $region12: #{mod_infini_transformer_forward.5} parent=5 // pred_fallthru
      _
    %p153 = scmp.lt.s32.totalorder %s10, 2
    // Predicated region
    $region17: #{mod_infini_transformer_forward.5} parent=5 // pred_check
      %p154 = pneg %p153
    $region18: #{mod_infini_transformer_forward.5} parent=5 // pred_check_branch
      %156 = sbr.rel (%p154) target = $region20
    $region19: #{mod_infini_transformer_forward.5} parent=5 // pred_region
      // Predicated region
      $region21: #{mod_infini_transformer_forward.5} parent=19 // pred_check
        %p157 = pneg %p30
      $region22: #{mod_infini_transformer_forward.5} parent=19 // pred_check_branch
        %159 = sbr.rel (%p157) target = $region24
      $region23: #{mod_infini_transformer_forward.5} parent=19 // pred_region
        %p160 = scmp.lt.s32.totalorder %s10, 1
        %s161 = scalar_select %p160, %s10, 1
        %s162 = smul.addr %s161, 4
        %s163 = scalar_lea.vmem %s0, %s162
      $region24: #{mod_infini_transformer_forward.5} parent=19 // pred_fallthru
        _
      // Predicated region
      $region25: #{mod_infini_transformer_forward.5} parent=19 // pred_check
        %p164 = pneg %p56
      $region26: #{mod_infini_transformer_forward.5} parent=19 // pred_check_branch
        %166 = sbr.rel (%p164) target = $region28
      $region27: #{mod_infini_transformer_forward.5} parent=19 // pred_region
        %p167 = scmp.lt.s32.totalorder %s10, 1
        %s168 = scalar_select %p167, %s10, 1
        %s169 = smul.addr %s168, 4
        %s170 = scalar_lea.vmem %s1, %s169
      $region28: #{mod_infini_transformer_forward.5} parent=19 // pred_fallthru
        _
      // Predicated region
      $region29: #{mod_infini_transformer_forward.5} parent=19 // pred_check
        %p171 = pneg %p82
      $region30: #{mod_infini_transformer_forward.5} parent=19 // pred_check_branch
        %173 = sbr.rel (%p171) target = $region32
      $region31: #{mod_infini_transformer_forward.5} parent=19 // pred_region
        %p174 = scmp.lt.s32.totalorder %s10, 1
        %s175 = scalar_select %p174, %s10, 1
        %s176 = smul.addr %s175, 4
        %s177 = scalar_lea.vmem %s2, %s176
      $region32: #{mod_infini_transformer_forward.5} parent=19 // pred_fallthru
        _
    $region20: #{mod_infini_transformer_forward.5} parent=5 // pred_fallthru
      _
    %p178 = scmp.le.s32.totalorder 1, %s10
    %p179 = scmp.lt.s32.totalorder %s10, 3
    %p180 = pnand %p178, %p179
    %p181 = pneg %p180
    // Predicated region
    $region33: #{mod_infini_transformer_forward.5} parent=5 // pred_check
      _
    $region34: #{mod_infini_transformer_forward.5} parent=5 // pred_check_branch
      %183 = sbr.rel (%p180) target = $region36
    $region35: #{mod_infini_transformer_forward.5} parent=5 // pred_region
      %s184 = ssub.s32 %s10, 1
      %p185 = scmp.lt.s32.totalorder %s15, 1
      %s186 = scalar_select %p185, %s15, 1
      %s187 = smul.addr %s186, 4
      %s188 = scalar_lea.vmem %s0, %s187
      %p189 = pneg %p36
      %p190 = pneg %p33
      %p191 = scmp.lt.s32.totalorder %s15, 1
      %s192 = scalar_select %p191, %s15, 1
      %s193 = smul.addr %s192, 4
      %s194 = scalar_lea.vmem %s1, %s193
      %p195 = pneg %p62
      %p196 = pneg %p59
      %p197 = scmp.lt.s32.totalorder %s15, 1
      %s198 = scalar_select %p197, %s15, 1
      %s199 = smul.addr %s198, 4
      %s200 = scalar_lea.vmem %s2, %s199
      %p201 = pneg %p88
      %p202 = pneg %p85
      %p203 = pneg %p109
      %p204 = pneg %p106
      %p205 = pneg %p135
      %p206 = pneg %p132
      %p207 = scmp.lt.s32.totalorder %s15, 1
      %s208 = scalar_select %p207, %s15, 1
      %s209 = smul.addr %s208, 4
      %s210 = scalar_lea.vmem %s4, %s209
      %p211 = scmp.lt.s32.totalorder %s15, 1
      %s212 = scalar_select %p211, %s15, 1
      %s213 = smul.addr %s212, 4
      %s214 = scalar_lea.vmem %s0, %s213
      %p215 = scmp.lt.s32.totalorder %s15, 1
      %s216 = scalar_select %p215, %s15, 1
      %s217 = smul.addr %s216, 4
      %s218 = scalar_lea.vmem %s1, %s217
      %p219 = scmp.lt.s32.totalorder %s15, 1
      %s220 = scalar_select %p219, %s15, 1
      %s221 = smul.addr %s220, 4
      %s222 = scalar_lea.vmem %s2, %s221
      %p223 = scmp.lt.s32.totalorder %s15, 1
      %s224 = scalar_select %p223, %s15, 1
      %s225 = smul.addr %s224, 4
      %s226 = scalar_lea.vmem %s4, %s225
      %vm228 = vcmask 130048
      %229 = vst.msk [vmem:[#allocation2] sm:$0xff] %vm228, 0.0
      %230 = vst.msk [vmem:[#allocation2 + $0x8] sm:$0xff] %vm228, 0.0
      %231 = vst.msk [vmem:[#allocation2 + $0x10] sm:$0xff] %vm228, 0.0
      %232 = vst.msk [vmem:[#allocation2 + $0x18] sm:$0xff] %vm228, 0.0
      %vm233 = vcmask 123904
      %234 = vst.msk [vmem:[#allocation3] sm:$0x3] %vm233, 0.0625
      %v235 = vld [vmem:[%s3] sm:$0x1]
      %v236 = vxor.u32 %v235, 2147483648
      %v237 = vmul.f32 %v236, 1.442695
      %v238 = vpow.pop %v237
      %v239 = vadd.f32 %v238, 1.0
      %v240 = vrcp.pop %v239
      %v241 = vmul.f32 1.0, %v240
      %v242 = vld [vmem:[%s214] sm:$0x3]
      %v243 = vld [vmem:[%s218] sm:$0x3]
      %v244 = vld [vmem:[%s222] sm:$0x3]
      %v246 = vsel %vm228, %v242, 0
      %v249 = vsel %vm228, %v243, 0
      %251 = vmatprep.subr.bf16.mxu0 0
      %252 = vmatpush1.bf16.xpose.msra.mxu0 0
      %253 = vmatprep.subr.bf16.mxu0 0
      %254 = vmatpush1.bf16.xpose.msra.mxu0 0
      %255 = vmatprep.subr.bf16.mxu0 0
      %256 = vmatpush1.bf16.xpose.msra.mxu0 0
      %257 = vmatprep.subr.bf16.mxu0 0
      %258 = vmatpush1.bf16.xpose.msra.mxu0 0
      %259 = vmatprep.subr.bf16.mxu0 0
      %260 = vmatpush1.bf16.xpose.msra.mxu0 0
      %261 = vmatprep.subr.bf16.mxu0 0
      %262 = vmatpush1.bf16.xpose.msra.mxu0 0
      %263 = vmatprep.subr.bf16.mxu0 0
      %264 = vmatpush1.bf16.xpose.msra.mxu0 0
      %265 = vmatprep.subr.bf16.mxu0 0
      %266 = vmatpush1.bf16.xpose.msra.mxu0 %v249
      %267 = vmatprep.subr.bf16.mxu0 0
      %268 = vmatpush2.bf16.xpose.msra.mxu0 0
      %269 = vmatprep.subr.bf16.mxu0 0
      %270 = vmatpush2.bf16.xpose.msra.mxu0 0
      %271 = vmatprep.subr.bf16.mxu0 0
      %272 = vmatpush2.bf16.xpose.msra.mxu0 0
      %273 = vmatprep.subr.bf16.mxu0 0
      %274 = vmatpush2.bf16.xpose.msra.mxu0 0
      %275 = vmatprep.subr.bf16.mxu0 0
      %276 = vmatpush2.bf16.xpose.msra.mxu0 0
      %277 = vmatprep.subr.bf16.mxu0 0
      %278 = vmatpush2.bf16.xpose.msra.mxu0 0
      %279 = vmatprep.subr.bf16.mxu0 0
      %280 = vmatpush2.bf16.xpose.msra.mxu0 0
      %281 = vmatprep.subr.bf16.mxu0 0
      %282 = vmatpush2.bf16.xpose.msra.mxu0 0
      %283 = vmatprep.mubr.bf16.mxu0 0
      %284 = vmatmul.mubr.bf16.gmra.mxu0 %v246
      %v285 = vpop.f32.mrf.mxu0
      %v286 = vadd.f32 0.0, %v285
      %v287 = vpop.f32.mrf.mxu0
      %v288 = vpop.f32.mrf.mxu0
      %v289 = vpop.f32.mrf.mxu0
      %290 = vdwg.mxu0
      %v291 = vmul.f32 %v286, 0.25
      %vm292 = vcmask 27648
      %v293 = vsel %vm292, %v291, -inf
      %294 = vmax.xlane.f32.xlu0 %v293
      %v295 = vpop.xlane.xlu0 %294
      %v296 = vsub.f32 %v291, %v295
      %v297 = vmul.f32 %v296, 1.442695
      %v298 = vpow.pop %v297
      %v299 = vsel %vm292, %v298, 0.0
      %300 = vadd.xlane.f32.xlu0 %v299
      %v301 = vpop.xlane.xlu0 %300
      %v302 = vrcp.pop %v301
      %v303 = vmul.f32 %v298, %v302
      %v304 = vpack.c.bf16 %v303, %v303
      %vm305 = vcmask 31744
      %v307 = vsel %vm305, %v304, 0
      %vm309 = vcmask 1041408
      %v311 = vsel %vm309, %v244, 0
      %313 = vmatprep.subr.bf16.mxu0 0
      %314 = vmatpush1.bf16.msra.mxu0 0
      %315 = vmatprep.subr.bf16.mxu0 0
      %316 = vmatpush1.bf16.msra.mxu0 0
      %317 = vmatprep.subr.bf16.mxu0 0
      %318 = vmatpush1.bf16.msra.mxu0 0
      %319 = vmatprep.subr.bf16.mxu0 0
      %320 = vmatpush1.bf16.msra.mxu0 0
      %321 = vmatprep.subr.bf16.mxu0 0
      %322 = vmatpush1.bf16.msra.mxu0 0
      %323 = vmatprep.subr.bf16.mxu0 0
      %324 = vmatpush1.bf16.msra.mxu0 0
      %325 = vmatprep.subr.bf16.mxu0 0
      %326 = vmatpush1.bf16.msra.mxu0 0
      %327 = vmatprep.subr.bf16.mxu0 0
      %328 = vmatpush1.bf16.msra.mxu0 %v311
      %329 = vmatprep.subr.bf16.mxu0 0
      %330 = vmatpush2.bf16.msra.mxu0 0
      %331 = vmatprep.subr.bf16.mxu0 0
      %332 = vmatpush2.bf16.msra.mxu0 0
      %333 = vmatprep.subr.bf16.mxu0 0
      %334 = vmatpush2.bf16.msra.mxu0 0
      %335 = vmatprep.subr.bf16.mxu0 0
      %336 = vmatpush2.bf16.msra.mxu0 0
      %337 = vmatprep.subr.bf16.mxu0 0
      %338 = vmatpush2.bf16.msra.mxu0 0
      %339 = vmatprep.subr.bf16.mxu0 0
      %340 = vmatpush2.bf16.msra.mxu0 0
      %341 = vmatprep.subr.bf16.mxu0 0
      %342 = vmatpush2.bf16.msra.mxu0 0
      %343 = vmatprep.subr.bf16.mxu0 0
      %344 = vmatpush2.bf16.msra.mxu0 0
      %345 = vmatprep.mubr.bf16.mxu0 0
      %346 = vmatmul.mubr.bf16.gmra.mxu0 %v307
      %v347 = vpop.f32.mrf.mxu0
      %v348 = vadd.f32 0.0, %v347
      %v349 = vpop.f32.mrf.mxu0
      %v350 = vpop.f32.mrf.mxu0
      %v351 = vpop.f32.mrf.mxu0
      %352 = vdwg.mxu0
      %v353 = vunpack.c.l.bf16 %v242
      %vm354 = vcmp.gt.f32.partialorder %v353, 0.0
      %v355 = vadd.f32 %v353, 1.0
      %v356 = vmin.f32 %v353, 0.0
      %v357 = vmul.f32 %v356, 1.442695
      %v358 = vpow.pop %v357
      %v359 = vsel %vm354, %v355, %v358
      %v360 = vunpack.c.l.bf16 %v243
      %vm361 = vcmp.gt.f32.partialorder %v360, 0.0
      %v362 = vadd.f32 %v360, 1.0
      %v363 = vmin.f32 %v360, 0.0
      %v364 = vmul.f32 %v363, 1.442695
      %v365 = vpow.pop %v364
      %v366 = vsel %vm361, %v362, %v365
      %v367 = vunpack.c.l.bf16 %v244
      %v368 = vld [vmem:[#allocation2] sm:$0xff]
      %v369 = vld [vmem:[#allocation2 + $0x8] sm:$0xff]
      %v370 = vld [vmem:[#allocation3] sm:$0x1]
      %v372 = vsel %vm228, %v359, 0
      %374 = vmatprep.subr.mxu0 0.0
      %375 = vmatpush1.msra.mxu0 0.0
      %376 = vmatprep.subr.mxu0 0.0
      %377 = vmatpush1.msra.mxu0 0.0
      %378 = vmatprep.subr.mxu0 0.0
      %379 = vmatpush1.msra.mxu0 0.0
      %380 = vmatprep.subr.mxu0 0.0
      %381 = vmatpush1.msra.mxu0 0.0
      %382 = vmatprep.subr.mxu0 0.0
      %383 = vmatpush1.msra.mxu0 0.0
      %384 = vmatprep.subr.mxu0 0.0
      %385 = vmatpush1.msra.mxu0 0.0
      %386 = vmatprep.subr.mxu0 0.0
      %387 = vmatpush1.msra.mxu0 0.0
      %388 = vmatprep.subr.mxu0 0.0
      %389 = vmatpush1.msra.mxu0 0.0
      %390 = vmatprep.subr.mxu0 0.0
      %391 = vmatpush1.msra.mxu0 0.0
      %392 = vmatprep.subr.mxu0 0.0
      %393 = vmatpush1.msra.mxu0 0.0
      %394 = vmatprep.subr.mxu0 0.0
      %395 = vmatpush1.msra.mxu0 0.0
      %396 = vmatprep.subr.mxu0 0.0
      %397 = vmatpush1.msra.mxu0 0.0
      %398 = vmatprep.subr.mxu0 0.0
      %399 = vmatpush1.msra.mxu0 0.0
      %400 = vmatprep.subr.mxu0 0.0
      %401 = vmatpush1.msra.mxu0 0.0
      %402 = vmatprep.subr.mxu0 0.0
      %403 = vmatpush1.msra.mxu0 %v369
      %404 = vmatprep.subr.mxu0 0.0
      %405 = vmatpush1.msra.mxu0 %v368
      %406 = vmatprep.subr.mxu0 0.0
      %407 = vmatpush2.msra.mxu0 0.0
      %408 = vmatprep.subr.mxu0 0.0
      %409 = vmatpush2.msra.mxu0 0.0
      %410 = vmatprep.subr.mxu0 0.0
      %411 = vmatpush2.msra.mxu0 0.0
      %412 = vmatprep.subr.mxu0 0.0
      %413 = vmatpush2.msra.mxu0 0.0
      %414 = vmatprep.subr.mxu0 0.0
      %415 = vmatpush2.msra.mxu0 0.0
      %416 = vmatprep.subr.mxu0 0.0
      %417 = vmatpush2.msra.mxu0 0.0
      %418 = vmatprep.subr.mxu0 0.0
      %419 = vmatpush2.msra.mxu0 0.0
      %420 = vmatprep.subr.mxu0 0.0
      %421 = vmatpush2.msra.mxu0 0.0
      %422 = vmatprep.subr.mxu0 0.0
      %423 = vmatpush2.msra.mxu0 0.0
      %424 = vmatprep.subr.mxu0 0.0
      %425 = vmatpush2.msra.mxu0 0.0
      %426 = vmatprep.subr.mxu0 0.0
      %427 = vmatpush2.msra.mxu0 0.0
      %428 = vmatprep.subr.mxu0 0.0
      %429 = vmatpush2.msra.mxu0 0.0
      %430 = vmatprep.subr.mxu0 0.0
      %431 = vmatpush2.msra.mxu0 0.0
      %432 = vmatprep.subr.mxu0 0.0
      %433 = vmatpush2.msra.mxu0 0.0
      %434 = vmatprep.subr.mxu0 0.0
      %435 = vmatpush2.msra.mxu0 0.0
      %436 = vmatprep.subr.mxu0 0.0
      %437 = vmatpush2.msra.mxu0 0.0
      %438 = vmatprep.mubr.f32.mxu0 0.0
      %439 = vmatmul.mubr.f32.gmra.mxu0 %v372
      %v440 = vpop.f32.mrf.mxu0
      %v441 = vadd.f32 0.0, %v440
      %v442 = vpop.f32.mrf.mxu0
      %443 = vdwg.mxu0
      %v444 = vlaneseq
      %v445 = vshrl.u32 %v444, 7
      %v446 = vsub.s32 0, %v445
      %v447 = vrot.slane %v370, %v446
      %v448 = vmul.f32 %v359, %v447
      %vm449 = vcmask 125952
      %v450 = vsel %vm449, %v448, 0.0
      %451 = vadd.xlane.f32.xlu0 %v450
      %v452 = vpop.xlane.xlu0 %451
      %v453 = vrcp.pop %v452
      %v454 = vmul.f32 %v441, %v453
      %455 = vxpose.xlu0.b32.start [1/16] %v366, 128
      %456 = vxpose.xlu0.b32.cont [2/16] 0.0, 128
      %457 = vxpose.xlu0.b32.cont [3/16] 0.0, 128
      %458 = vxpose.xlu0.b32.cont [4/16] 0.0, 128
      %459 = vxpose.xlu0.b32.cont [5/16] 0.0, 128
      %460 = vxpose.xlu0.b32.cont [6/16] 0.0, 128
      %461 = vxpose.xlu0.b32.cont [7/16] 0.0, 128
      %462 = vxpose.xlu0.b32.cont [8/16] 0.0, 128
      %463 = vxpose.xlu0.b32.cont [9/16] 0.0, 128
      %464 = vxpose.xlu0.b32.cont [10/16] 0.0, 128
      %465 = vxpose.xlu0.b32.cont [11/16] 0.0, 128
      %466 = vxpose.xlu0.b32.cont [12/16] 0.0, 128
      %467 = vxpose.xlu0.b32.cont [13/16] 0.0, 128
      %468 = vxpose.xlu0.b32.cont [14/16] 0.0, 128
      %469 = vxpose.xlu0.b32.cont [15/16] 0.0, 128
      %470 = vxpose.xlu0.b32.end [16/16] 0.0, 128
      %v471 = vpop.trf.xlu0
      %v472 = vpop.trf.xlu0
      %v473 = vpop.trf.xlu0
      %v474 = vpop.trf.xlu0
      %v475 = vpop.trf.xlu0
      %v476 = vpop.trf.xlu0
      %v477 = vpop.trf.xlu0
      %v478 = vpop.trf.xlu0
      %v479 = vpop.trf.xlu0
      %v480 = vpop.trf.xlu0
      %v481 = vpop.trf.xlu0
      %v482 = vpop.trf.xlu0
      %v483 = vpop.trf.xlu0
      %v484 = vpop.trf.xlu0
      %v485 = vpop.trf.xlu0
      %v486 = vpop.trf.xlu0
      %v488 = vsel %vm305, %v471, 0
      %v491 = vsel %vm305, %v472, 0
      %vm493 = vcmask 1043456
      %v495 = vsel %vm493, %v367, 0
      %497 = vmatprep.subr.mxu0 0.0
      %498 = vmatpush1.msra.mxu0 0.0
      %499 = vmatprep.subr.mxu0 0.0
      %500 = vmatpush1.msra.mxu0 0.0
      %501 = vmatprep.subr.mxu0 0.0
      %502 = vmatpush1.msra.mxu0 0.0
      %503 = vmatprep.subr.mxu0 0.0
      %504 = vmatpush1.msra.mxu0 0.0
      %505 = vmatprep.subr.mxu0 0.0
      %506 = vmatpush1.msra.mxu0 0.0
      %507 = vmatprep.subr.mxu0 0.0
      %508 = vmatpush1.msra.mxu0 0.0
      %509 = vmatprep.subr.mxu0 0.0
      %510 = vmatpush1.msra.mxu0 0.0
      %511 = vmatprep.subr.mxu0 0.0
      %512 = vmatpush1.msra.mxu0 0.0
      %513 = vmatprep.subr.mxu0 0.0
      %514 = vmatpush1.msra.mxu0 0.0
      %515 = vmatprep.subr.mxu0 0.0
      %516 = vmatpush1.msra.mxu0 0.0
      %517 = vmatprep.subr.mxu0 0.0
      %518 = vmatpush1.msra.mxu0 0.0
      %519 = vmatprep.subr.mxu0 0.0
      %520 = vmatpush1.msra.mxu0 0.0
      %521 = vmatprep.subr.mxu0 0.0
      %522 = vmatpush1.msra.mxu0 0.0
      %523 = vmatprep.subr.mxu0 0.0
      %524 = vmatpush1.msra.mxu0 0.0
      %525 = vmatprep.subr.mxu0 0.0
      %526 = vmatpush1.msra.mxu0 0.0
      %527 = vmatprep.subr.mxu0 0.0
      %528 = vmatpush1.msra.mxu0 %v495
      %529 = vmatprep.subr.mxu0 0.0
      %530 = vmatpush2.msra.mxu0 0.0
      %531 = vmatprep.subr.mxu0 0.0
      %532 = vmatpush2.msra.mxu0 0.0
      %533 = vmatprep.subr.mxu0 0.0
      %534 = vmatpush2.msra.mxu0 0.0
      %535 = vmatprep.subr.mxu0 0.0
      %536 = vmatpush2.msra.mxu0 0.0
      %537 = vmatprep.subr.mxu0 0.0
      %538 = vmatpush2.msra.mxu0 0.0
      %539 = vmatprep.subr.mxu0 0.0
      %540 = vmatpush2.msra.mxu0 0.0
      %541 = vmatprep.subr.mxu0 0.0
      %542 = vmatpush2.msra.mxu0 0.0
      %543 = vmatprep.subr.mxu0 0.0
      %544 = vmatpush2.msra.mxu0 0.0
      %545 = vmatprep.subr.mxu0 0.0
      %546 = vmatpush2.msra.mxu0 0.0
      %547 = vmatprep.subr.mxu0 0.0
      %548 = vmatpush2.msra.mxu0 0.0
      %549 = vmatprep.subr.mxu0 0.0
      %550 = vmatpush2.msra.mxu0 0.0
      %551 = vmatprep.subr.mxu0 0.0
      %552 = vmatpush2.msra.mxu0 0.0
      %553 = vmatprep.subr.mxu0 0.0
      %554 = vmatpush2.msra.mxu0 0.0
      %555 = vmatprep.subr.mxu0 0.0
      %556 = vmatpush2.msra.mxu0 0.0
      %557 = vmatprep.subr.mxu0 0.0
      %558 = vmatpush2.msra.mxu0 0.0
      %559 = vmatprep.subr.mxu0 0.0
      %560 = vmatpush2.msra.mxu0 0.0
      %561 = vmatprep.mubr.f32.mxu0 0.0
      %562 = vmatmul.mubr.f32.gmra.mxu0 %v488
      %v563 = vpop.f32.mrf.mxu0
      %v564 = vadd.f32 0.0, %v563
      %v565 = vpop.f32.mrf.mxu0
      %566 = vmatprep.mubr.f32.mxu0 0.0
      %567 = vmatmul.mubr.f32.gmra.mxu0 %v491
      %v568 = vpop.f32.mrf.mxu0
      %v569 = vadd.f32 0.0, %v568
      %v570 = vpop.f32.mrf.mxu0
      %571 = vdwg.mxu0
      %v572 = vadd.f32 %v368, %v564
      %v573 = vadd.f32 %v369, %v569
      %574 = vst.msk [vmem:[#allocation2] sm:$0xff] %vm228, %v572
      %575 = vst.msk [vmem:[#allocation2 + $0x8] sm:$0xff] %vm228, %v573
      %v576 = vsel %vm449, %v366, 0.0
      %v577 = vrot.slane %v576, 4
      %v578 = vadd.f32 %v576, %v577
      %v579 = vrot.slane %v578, 2
      %v580 = vadd.f32 %v578, %v579
      %v581 = vrot.slane %v580, 1
      %v582 = vadd.f32 %v580, %v581
      %v583 = vadd.f32 %v370, %v582
      %vm584 = vcmask 122880
      %585 = vst.msk [vmem:[#allocation3] sm:$0x1] %vm584, %v583
      %v587 = vlaneseq
      %v588 = vshrl.u32 %v587, 7
      %v589 = vsub.s32 0, %v588
      %v590 = vrot.slane %v241, %v589
      %v592 = vmul.f32 %v590, %v454
      %v593 = vsub.f32 1.0, %v241
      %v595 = vlaneseq
      %v596 = vshrl.u32 %v595, 7
      %v597 = vsub.s32 0, %v596
      %v598 = vrot.slane %v593, %v597
      %v600 = vmul.f32 %v598, %v348
      %v601 = vadd.f32 %v592, %v600
      %v603 = vunpack.c.l.b16 %v242
      %v604 = vpack.c.b16 %v603, %v603
      %605 = vrot.lane.b32.xlu0 %v604, 112
      %v606 = vpop.permute.xlu0 %605
      %v608 = vunpack.c.l.b16 %v243
      %v609 = vpack.c.b16 %v608, %v608
      %610 = vrot.lane.b32.xlu0 %v609, 112
      %v611 = vpop.permute.xlu0 %610
      %v613 = vsel %vm228, %v606, 0
      %v616 = vsel %vm228, %v611, 0
      %618 = vmatprep.subr.bf16.mxu0 0
      %619 = vmatpush1.bf16.xpose.msra.mxu0 0
      %620 = vmatprep.subr.bf16.mxu0 0
      %621 = vmatpush1.bf16.xpose.msra.mxu0 0
      %622 = vmatprep.subr.bf16.mxu0 0
      %623 = vmatpush1.bf16.xpose.msra.mxu0 0
      %624 = vmatprep.subr.bf16.mxu0 0
      %625 = vmatpush1.bf16.xpose.msra.mxu0 0
      %626 = vmatprep.subr.bf16.mxu0 0
      %627 = vmatpush1.bf16.xpose.msra.mxu0 0
      %628 = vmatprep.subr.bf16.mxu0 0
      %629 = vmatpush1.bf16.xpose.msra.mxu0 0
      %630 = vmatprep.subr.bf16.mxu0 0
      %631 = vmatpush1.bf16.xpose.msra.mxu0 0
      %632 = vmatprep.subr.bf16.mxu0 0
      %633 = vmatpush1.bf16.xpose.msra.mxu0 %v616
      %634 = vmatprep.subr.bf16.mxu0 0
      %635 = vmatpush2.bf16.xpose.msra.mxu0 0
      %636 = vmatprep.subr.bf16.mxu0 0
      %637 = vmatpush2.bf16.xpose.msra.mxu0 0
      %638 = vmatprep.subr.bf16.mxu0 0
      %639 = vmatpush2.bf16.xpose.msra.mxu0 0
      %640 = vmatprep.subr.bf16.mxu0 0
      %641 = vmatpush2.bf16.xpose.msra.mxu0 0
      %642 = vmatprep.subr.bf16.mxu0 0
      %643 = vmatpush2.bf16.xpose.msra.mxu0 0
      %644 = vmatprep.subr.bf16.mxu0 0
      %645 = vmatpush2.bf16.xpose.msra.mxu0 0
      %646 = vmatprep.subr.bf16.mxu0 0
      %647 = vmatpush2.bf16.xpose.msra.mxu0 0
      %648 = vmatprep.subr.bf16.mxu0 0
      %649 = vmatpush2.bf16.xpose.msra.mxu0 0
      %650 = vmatprep.mubr.bf16.mxu0 0
      %651 = vmatmul.mubr.bf16.gmra.mxu0 %v613
      %v652 = vpop.f32.mrf.mxu0
      %v653 = vadd.f32 0.0, %v652
      %v654 = vpop.f32.mrf.mxu0
      %v655 = vpop.f32.mrf.mxu0
      %v656 = vpop.f32.mrf.mxu0
      %657 = vdwg.mxu0
      %v658 = vmul.f32 %v653, 0.25
      %v659 = vsel %vm292, %v658, -inf
      %660 = vmax.xlane.f32.xlu0 %v659
      %v661 = vpop.xlane.xlu0 %660
      %v662 = vsub.f32 %v658, %v661
      %v663 = vmul.f32 %v662, 1.442695
      %v664 = vpow.pop %v663
      %v665 = vsel %vm292, %v664, 0.0
      %666 = vadd.xlane.f32.xlu0 %v665
      %v667 = vpop.xlane.xlu0 %666
      %v668 = vrcp.pop %v667
      %v669 = vmul.f32 %v664, %v668
      %v670 = vpack.c.bf16 %v669, %v669
      %v672 = vunpack.c.l.b16 %v244
      %v673 = vpack.c.b16 %v672, %v672
      %674 = vrot.lane.b32.xlu0 %v673, 112
      %v675 = vpop.permute.xlu0 %674
      %v677 = vsel %vm305, %v670, 0
      %v680 = vsel %vm309, %v675, 0
      %682 = vmatprep.subr.bf16.mxu0 0
      %683 = vmatpush1.bf16.msra.mxu0 0
      %684 = vmatprep.subr.bf16.mxu0 0
      %685 = vmatpush1.bf16.msra.mxu0 0
      %686 = vmatprep.subr.bf16.mxu0 0
      %687 = vmatpush1.bf16.msra.mxu0 0
      %688 = vmatprep.subr.bf16.mxu0 0
      %689 = vmatpush1.bf16.msra.mxu0 0
      %690 = vmatprep.subr.bf16.mxu0 0
      %691 = vmatpush1.bf16.msra.mxu0 0
      %692 = vmatprep.subr.bf16.mxu0 0
      %693 = vmatpush1.bf16.msra.mxu0 0
      %694 = vmatprep.subr.bf16.mxu0 0
      %695 = vmatpush1.bf16.msra.mxu0 0
      %696 = vmatprep.subr.bf16.mxu0 0
      %697 = vmatpush1.bf16.msra.mxu0 %v680
      %698 = vmatprep.subr.bf16.mxu0 0
      %699 = vmatpush2.bf16.msra.mxu0 0
      %700 = vmatprep.subr.bf16.mxu0 0
      %701 = vmatpush2.bf16.msra.mxu0 0
      %702 = vmatprep.subr.bf16.mxu0 0
      %703 = vmatpush2.bf16.msra.mxu0 0
      %704 = vmatprep.subr.bf16.mxu0 0
      %705 = vmatpush2.bf16.msra.mxu0 0
      %706 = vmatprep.subr.bf16.mxu0 0
      %707 = vmatpush2.bf16.msra.mxu0 0
      %708 = vmatprep.subr.bf16.mxu0 0
      %709 = vmatpush2.bf16.msra.mxu0 0
      %710 = vmatprep.subr.bf16.mxu0 0
      %711 = vmatpush2.bf16.msra.mxu0 0
      %712 = vmatprep.subr.bf16.mxu0 0
      %713 = vmatpush2.bf16.msra.mxu0 0
      %714 = vmatprep.mubr.bf16.mxu0 0
      %715 = vmatmul.mubr.bf16.gmra.mxu0 %v677
      %v716 = vpop.f32.mrf.mxu0
      %v717 = vadd.f32 0.0, %v716
      %v718 = vpop.f32.mrf.mxu0
      %v719 = vpop.f32.mrf.mxu0
      %v720 = vpop.f32.mrf.mxu0
      %721 = vdwg.mxu0
      %v722 = vld [vmem:[#allocation2 + $0x10] sm:$0xff]
      %v723 = vld [vmem:[#allocation2 + $0x18] sm:$0xff]
      %v724 = vld [vmem:[#allocation3 + $0x1] sm:$0x1]
      %725 = vrot.lane.b32.xlu0 %v359, 112
      %v726 = vpop.permute.xlu0 %725
      %v727 = vsel %vm228, %v726, 0
      %729 = vmatprep.subr.mxu0 0.0
      %730 = vmatpush1.msra.mxu0 0.0
      %731 = vmatprep.subr.mxu0 0.0
      %732 = vmatpush1.msra.mxu0 0.0
      %733 = vmatprep.subr.mxu0 0.0
      %734 = vmatpush1.msra.mxu0 0.0
      %735 = vmatprep.subr.mxu0 0.0
      %736 = vmatpush1.msra.mxu0 0.0
      %737 = vmatprep.subr.mxu0 0.0
      %738 = vmatpush1.msra.mxu0 0.0
      %739 = vmatprep.subr.mxu0 0.0
      %740 = vmatpush1.msra.mxu0 0.0
      %741 = vmatprep.subr.mxu0 0.0
      %742 = vmatpush1.msra.mxu0 0.0
      %743 = vmatprep.subr.mxu0 0.0
      %744 = vmatpush1.msra.mxu0 0.0
      %745 = vmatprep.subr.mxu0 0.0
      %746 = vmatpush1.msra.mxu0 0.0
      %747 = vmatprep.subr.mxu0 0.0
      %748 = vmatpush1.msra.mxu0 0.0
      %749 = vmatprep.subr.mxu0 0.0
      %750 = vmatpush1.msra.mxu0 0.0
      %751 = vmatprep.subr.mxu0 0.0
      %752 = vmatpush1.msra.mxu0 0.0
      %753 = vmatprep.subr.mxu0 0.0
      %754 = vmatpush1.msra.mxu0 0.0
      %755 = vmatprep.subr.mxu0 0.0
      %756 = vmatpush1.msra.mxu0 0.0
      %757 = vmatprep.subr.mxu0 0.0
      %758 = vmatpush1.msra.mxu0 %v723
      %759 = vmatprep.subr.mxu0 0.0
      %760 = vmatpush1.msra.mxu0 %v722
      %761 = vmatprep.subr.mxu0 0.0
      %762 = vmatpush2.msra.mxu0 0.0
      %763 = vmatprep.subr.mxu0 0.0
      %764 = vmatpush2.msra.mxu0 0.0
      %765 = vmatprep.subr.mxu0 0.0
      %766 = vmatpush2.msra.mxu0 0.0
      %767 = vmatprep.subr.mxu0 0.0
      %768 = vmatpush2.msra.mxu0 0.0
      %769 = vmatprep.subr.mxu0 0.0
      %770 = vmatpush2.msra.mxu0 0.0
      %771 = vmatprep.subr.mxu0 0.0
      %772 = vmatpush2.msra.mxu0 0.0
      %773 = vmatprep.subr.mxu0 0.0
      %774 = vmatpush2.msra.mxu0 0.0
      %775 = vmatprep.subr.mxu0 0.0
      %776 = vmatpush2.msra.mxu0 0.0
      %777 = vmatprep.subr.mxu0 0.0
      %778 = vmatpush2.msra.mxu0 0.0
      %779 = vmatprep.subr.mxu0 0.0
      %780 = vmatpush2.msra.mxu0 0.0
      %781 = vmatprep.subr.mxu0 0.0
      %782 = vmatpush2.msra.mxu0 0.0
      %783 = vmatprep.subr.mxu0 0.0
      %784 = vmatpush2.msra.mxu0 0.0
      %785 = vmatprep.subr.mxu0 0.0
      %786 = vmatpush2.msra.mxu0 0.0
      %787 = vmatprep.subr.mxu0 0.0
      %788 = vmatpush2.msra.mxu0 0.0
      %789 = vmatprep.subr.mxu0 0.0
      %790 = vmatpush2.msra.mxu0 0.0
      %791 = vmatprep.subr.mxu0 0.0
      %792 = vmatpush2.msra.mxu0 0.0
      %793 = vmatprep.mubr.f32.mxu0 0.0
      %794 = vmatmul.mubr.f32.gmra.mxu0 %v727
      %v795 = vpop.f32.mrf.mxu0
      %v796 = vadd.f32 0.0, %v795
      %v797 = vpop.f32.mrf.mxu0
      %798 = vdwg.mxu0
      %v799 = vlaneseq
      %v800 = vshrl.u32 %v799, 7
      %v801 = vsub.s32 0, %v800
      %v802 = vrot.slane %v724, %v801
      %804 = vrot.lane.b32.xlu0 %v802, 16
      %v805 = vpop.permute.xlu0 %804
      %v807 = vmul.f32 %v359, %v805
      %809 = vrot.lane.b32.xlu0 %v807, 112
      %v810 = vpop.permute.xlu0 %809
      %v812 = vsel %vm449, %v810, 0.0
      %813 = vadd.xlane.f32.xlu0 %v812
      %v814 = vpop.xlane.xlu0 %813
      %v815 = vrcp.pop %v814
      %v816 = vmul.f32 %v796, %v815
      %818 = vrot.lane.b32.xlu0 %v366, 112
      %v819 = vpop.permute.xlu0 %818
      %821 = vxpose.xlu0.b32.start [1/16] %v819, 128
      %822 = vxpose.xlu0.b32.cont [2/16] 0.0, 128
      %823 = vxpose.xlu0.b32.cont [3/16] 0.0, 128
      %824 = vxpose.xlu0.b32.cont [4/16] 0.0, 128
      %825 = vxpose.xlu0.b32.cont [5/16] 0.0, 128
      %826 = vxpose.xlu0.b32.cont [6/16] 0.0, 128
      %827 = vxpose.xlu0.b32.cont [7/16] 0.0, 128
      %828 = vxpose.xlu0.b32.cont [8/16] 0.0, 128
      %829 = vxpose.xlu0.b32.cont [9/16] 0.0, 128
      %830 = vxpose.xlu0.b32.cont [10/16] 0.0, 128
      %831 = vxpose.xlu0.b32.cont [11/16] 0.0, 128
      %832 = vxpose.xlu0.b32.cont [12/16] 0.0, 128
      %833 = vxpose.xlu0.b32.cont [13/16] 0.0, 128
      %834 = vxpose.xlu0.b32.cont [14/16] 0.0, 128
      %835 = vxpose.xlu0.b32.cont [15/16] 0.0, 128
      %836 = vxpose.xlu0.b32.end [16/16] 0.0, 128
      %v837 = vpop.trf.xlu0
      %v838 = vpop.trf.xlu0
      %v839 = vpop.trf.xlu0
      %v840 = vpop.trf.xlu0
      %v841 = vpop.trf.xlu0
      %v842 = vpop.trf.xlu0
      %v843 = vpop.trf.xlu0
      %v844 = vpop.trf.xlu0
      %v845 = vpop.trf.xlu0
      %v846 = vpop.trf.xlu0
      %v847 = vpop.trf.xlu0
      %v848 = vpop.trf.xlu0
      %v849 = vpop.trf.xlu0
      %v850 = vpop.trf.xlu0
      %v851 = vpop.trf.xlu0
      %v852 = vpop.trf.xlu0
      %853 = vrot.lane.b32.xlu0 %v367, 112
      %v854 = vpop.permute.xlu0 %853
      %v856 = vsel %vm305, %v837, 0
      %v859 = vsel %vm305, %v838, 0
      %v861 = vsel %vm493, %v854, 0
      %863 = vmatprep.subr.mxu0 0.0
      %864 = vmatpush1.msra.mxu0 0.0
      %865 = vmatprep.subr.mxu0 0.0
      %866 = vmatpush1.msra.mxu0 0.0
      %867 = vmatprep.subr.mxu0 0.0
      %868 = vmatpush1.msra.mxu0 0.0
      %869 = vmatprep.subr.mxu0 0.0
      %870 = vmatpush1.msra.mxu0 0.0
      %871 = vmatprep.subr.mxu0 0.0
      %872 = vmatpush1.msra.mxu0 0.0
      %873 = vmatprep.subr.mxu0 0.0
      %874 = vmatpush1.msra.mxu0 0.0
      %875 = vmatprep.subr.mxu0 0.0
      %876 = vmatpush1.msra.mxu0 0.0
      %877 = vmatprep.subr.mxu0 0.0
      %878 = vmatpush1.msra.mxu0 0.0
      %879 = vmatprep.subr.mxu0 0.0
      %880 = vmatpush1.msra.mxu0 0.0
      %881 = vmatprep.subr.mxu0 0.0
      %882 = vmatpush1.msra.mxu0 0.0
      %883 = vmatprep.subr.mxu0 0.0
      %884 = vmatpush1.msra.mxu0 0.0
      %885 = vmatprep.subr.mxu0 0.0
      %886 = vmatpush1.msra.mxu0 0.0
      %887 = vmatprep.subr.mxu0 0.0
      %888 = vmatpush1.msra.mxu0 0.0
      %889 = vmatprep.subr.mxu0 0.0
      %890 = vmatpush1.msra.mxu0 0.0
      %891 = vmatprep.subr.mxu0 0.0
      %892 = vmatpush1.msra.mxu0 0.0
      %893 = vmatprep.subr.mxu0 0.0
      %894 = vmatpush1.msra.mxu0 %v861
      %895 = vmatprep.subr.mxu0 0.0
      %896 = vmatpush2.msra.mxu0 0.0
      %897 = vmatprep.subr.mxu0 0.0
      %898 = vmatpush2.msra.mxu0 0.0
      %899 = vmatprep.subr.mxu0 0.0
      %900 = vmatpush2.msra.mxu0 0.0
      %901 = vmatprep.subr.mxu0 0.0
      %902 = vmatpush2.msra.mxu0 0.0
      %903 = vmatprep.subr.mxu0 0.0
      %904 = vmatpush2.msra.mxu0 0.0
      %905 = vmatprep.subr.mxu0 0.0
      %906 = vmatpush2.msra.mxu0 0.0
      %907 = vmatprep.subr.mxu0 0.0
      %908 = vmatpush2.msra.mxu0 0.0
      %909 = vmatprep.subr.mxu0 0.0
      %910 = vmatpush2.msra.mxu0 0.0
      %911 = vmatprep.subr.mxu0 0.0
      %912 = vmatpush2.msra.mxu0 0.0
      %913 = vmatprep.subr.mxu0 0.0
      %914 = vmatpush2.msra.mxu0 0.0
      %915 = vmatprep.subr.mxu0 0.0
      %916 = vmatpush2.msra.mxu0 0.0
      %917 = vmatprep.subr.mxu0 0.0
      %918 = vmatpush2.msra.mxu0 0.0
      %919 = vmatprep.subr.mxu0 0.0
      %920 = vmatpush2.msra.mxu0 0.0
      %921 = vmatprep.subr.mxu0 0.0
      %922 = vmatpush2.msra.mxu0 0.0
      %923 = vmatprep.subr.mxu0 0.0
      %924 = vmatpush2.msra.mxu0 0.0
      %925 = vmatprep.subr.mxu0 0.0
      %926 = vmatpush2.msra.mxu0 0.0
      %927 = vmatprep.mubr.f32.mxu0 0.0
      %928 = vmatmul.mubr.f32.gmra.mxu0 %v856
      %v929 = vpop.f32.mrf.mxu0
      %v930 = vadd.f32 0.0, %v929
      %v931 = vpop.f32.mrf.mxu0
      %932 = vmatprep.mubr.f32.mxu0 0.0
      %933 = vmatmul.mubr.f32.gmra.mxu0 %v859
      %v934 = vpop.f32.mrf.mxu0
      %v935 = vadd.f32 0.0, %v934
      %v936 = vpop.f32.mrf.mxu0
      %937 = vdwg.mxu0
      %v938 = vadd.f32 %v722, %v930
      %v939 = vadd.f32 %v723, %v935
      %940 = vst.msk [vmem:[#allocation2 + $0x10] sm:$0xff] %vm228, %v938
      %941 = vst.msk [vmem:[#allocation2 + $0x18] sm:$0xff] %vm228, %v939
      %vm942 = vcmask 257152
      %v943 = vsel %vm942, %v366, 0.0
      %v944 = vrot.slane %v943, 4
      %v945 = vadd.f32 %v943, %v944
      %v946 = vrot.slane %v945, 2
      %v947 = vadd.f32 %v945, %v946
      %v948 = vrot.slane %v947, 1
      %v949 = vadd.f32 %v947, %v948
      %951 = vrot.lane.b32.xlu0 %v949, 112
      %v952 = vpop.permute.xlu0 %951
      %v954 = vadd.f32 %v724, %v952
      %955 = vst.msk [vmem:[#allocation3 + $0x1] sm:$0x1] %vm584, %v954
      %957 = vrot.lane.b32.xlu0 %v816, 16
      %v958 = vpop.permute.xlu0 %957
      %v960 = vmul.f32 %v590, %v958
      %962 = vrot.lane.b32.xlu0 %v717, 16
      %v963 = vpop.permute.xlu0 %962
      %v965 = vmul.f32 %v598, %v963
      %v966 = vadd.f32 %v960, %v965
      %v967 = vsel %vm228, %v601, %v966
      %v968 = vpack.c.bf16 %v967, %v967
      %vm969 = vcmask 254976
      %970 = vst.msk [vmem:[%s226] sm:$0x3] %vm969, %v968
      %v971 = vld [vmem:[%s214] sm:$0xc]
      %v972 = vld [vmem:[%s218] sm:$0xc]
      %v973 = vld [vmem:[%s222] sm:$0xc]
      %v975 = vunpack.c.l.b16 %v971
      %v976 = vpack.c.b16 %v975, %v975
      %v977 = vrot.slane %v976, 2
      %v979 = vunpack.c.l.b16 %v972
      %v980 = vpack.c.b16 %v979, %v979
      %v981 = vrot.slane %v980, 2
      %v983 = vsel %vm228, %v977, 0
      %v986 = vsel %vm228, %v981, 0
      %988 = vmatprep.subr.bf16.mxu0 0
      %989 = vmatpush1.bf16.xpose.msra.mxu0 0
      %990 = vmatprep.subr.bf16.mxu0 0
      %991 = vmatpush1.bf16.xpose.msra.mxu0 0
      %992 = vmatprep.subr.bf16.mxu0 0
      %993 = vmatpush1.bf16.xpose.msra.mxu0 0
      %994 = vmatprep.subr.bf16.mxu0 0
      %995 = vmatpush1.bf16.xpose.msra.mxu0 0
      %996 = vmatprep.subr.bf16.mxu0 0
      %997 = vmatpush1.bf16.xpose.msra.mxu0 0
      %998 = vmatprep.subr.bf16.mxu0 0
      %999 = vmatpush1.bf16.xpose.msra.mxu0 0
      %1000 = vmatprep.subr.bf16.mxu0 0
      %1001 = vmatpush1.bf16.xpose.msra.mxu0 0
      %1002 = vmatprep.subr.bf16.mxu0 0
      %1003 = vmatpush1.bf16.xpose.msra.mxu0 %v986
      %1004 = vmatprep.subr.bf16.mxu0 0
      %1005 = vmatpush2.bf16.xpose.msra.mxu0 0
      %1006 = vmatprep.subr.bf16.mxu0 0
      %1007 = vmatpush2.bf16.xpose.msra.mxu0 0
      %1008 = vmatprep.subr.bf16.mxu0 0
      %1009 = vmatpush2.bf16.xpose.msra.mxu0 0
      %1010 = vmatprep.subr.bf16.mxu0 0
      %1011 = vmatpush2.bf16.xpose.msra.mxu0 0
      %1012 = vmatprep.subr.bf16.mxu0 0
      %1013 = vmatpush2.bf16.xpose.msra.mxu0 0
      %1014 = vmatprep.subr.bf16.mxu0 0
      %1015 = vmatpush2.bf16.xpose.msra.mxu0 0
      %1016 = vmatprep.subr.bf16.mxu0 0
      %1017 = vmatpush2.bf16.xpose.msra.mxu0 0
      %1018 = vmatprep.subr.bf16.mxu0 0
      %1019 = vmatpush2.bf16.xpose.msra.mxu0 0
      %1020 = vmatprep.mubr.bf16.mxu0 0
      %1021 = vmatmul.mubr.bf16.gmra.mxu0 %v983
      %v1022 = vpop.f32.mrf.mxu0
      %v1023 = vadd.f32 0.0, %v1022
      %v1024 = vpop.f32.mrf.mxu0
      %v1025 = vpop.f32.mrf.mxu0
      %v1026 = vpop.f32.mrf.mxu0
      %1027 = vdwg.mxu0
      %v1028 = vmul.f32 %v1023, 0.25
      %v1029 = vsel %vm292, %v1028, -inf
      %1030 = vmax.xlane.f32.xlu0 %v1029
      %v1031 = vpop.xlane.xlu0 %1030
      %v1032 = vsub.f32 %v1028, %v1031
      %v1033 = vmul.f32 %v1032, 1.442695
      %v1034 = vpow.pop %v1033
      %v1035 = vsel %vm292, %v1034, 0.0
      %1036 = vadd.xlane.f32.xlu0 %v1035
      %v1037 = vpop.xlane.xlu0 %1036
      %v1038 = vrcp.pop %v1037
      %v1039 = vmul.f32 %v1034, %v1038
      %v1040 = vpack.c.bf16 %v1039, %v1039
      %v1042 = vunpack.c.l.b16 %v973
      %v1043 = vpack.c.b16 %v1042, %v1042
      %v1044 = vrot.slane %v1043, 2
      %v1046 = vsel %vm305, %v1040, 0
      %v1049 = vsel %vm309, %v1044, 0
      %1051 = vmatprep.subr.bf16.mxu0 0
      %1052 = vmatpush1.bf16.msra.mxu0 0
      %1053 = vmatprep.subr.bf16.mxu0 0
      %1054 = vmatpush1.bf16.msra.mxu0 0
      %1055 = vmatprep.subr.bf16.mxu0 0
      %1056 = vmatpush1.bf16.msra.mxu0 0
      %1057 = vmatprep.subr.bf16.mxu0 0
      %1058 = vmatpush1.bf16.msra.mxu0 0
      %1059 = vmatprep.subr.bf16.mxu0 0
      %1060 = vmatpush1.bf16.msra.mxu0 0
      %1061 = vmatprep.subr.bf16.mxu0 0
      %1062 = vmatpush1.bf16.msra.mxu0 0
      %1063 = vmatprep.subr.bf16.mxu0 0
      %1064 = vmatpush1.bf16.msra.mxu0 0
      %1065 = vmatprep.subr.bf16.mxu0 0
      %1066 = vmatpush1.bf16.msra.mxu0 %v1049
      %1067 = vmatprep.subr.bf16.mxu0 0
      %1068 = vmatpush2.bf16.msra.mxu0 0
      %1069 = vmatprep.subr.bf16.mxu0 0
      %1070 = vmatpush2.bf16.msra.mxu0 0
      %1071 = vmatprep.subr.bf16.mxu0 0
      %1072 = vmatpush2.bf16.msra.mxu0 0
      %1073 = vmatprep.subr.bf16.mxu0 0
      %1074 = vmatpush2.bf16.msra.mxu0 0
      %1075 = vmatprep.subr.bf16.mxu0 0
      %1076 = vmatpush2.bf16.msra.mxu0 0
      %1077 = vmatprep.subr.bf16.mxu0 0
      %1078 = vmatpush2.bf16.msra.mxu0 0
      %1079 = vmatprep.subr.bf16.mxu0 0
      %1080 = vmatpush2.bf16.msra.mxu0 0
      %1081 = vmatprep.subr.bf16.mxu0 0
      %1082 = vmatpush2.bf16.msra.mxu0 0
      %1083 = vmatprep.mubr.bf16.mxu0 0
      %1084 = vmatmul.mubr.bf16.gmra.mxu0 %v1046
      %v1085 = vpop.f32.mrf.mxu0
      %v1086 = vadd.f32 0.0, %v1085
      %v1087 = vpop.f32.mrf.mxu0
      %v1088 = vpop.f32.mrf.mxu0
      %v1089 = vpop.f32.mrf.mxu0
      %1090 = vdwg.mxu0
      %v1091 = vunpack.c.l.bf16 %v971
      %vm1092 = vcmp.gt.f32.partialorder %v1091, 0.0
      %v1093 = vadd.f32 %v1091, 1.0
      %v1094 = vmin.f32 %v1091, 0.0
      %v1095 = vmul.f32 %v1094, 1.442695
      %v1096 = vpow.pop %v1095
      %v1097 = vsel %vm1092, %v1093, %v1096
      %v1098 = vunpack.c.l.bf16 %v972
      %vm1099 = vcmp.gt.f32.partialorder %v1098, 0.0
      %v1100 = vadd.f32 %v1098, 1.0
      %v1101 = vmin.f32 %v1098, 0.0
      %v1102 = vmul.f32 %v1101, 1.442695
      %v1103 = vpow.pop %v1102
      %v1104 = vsel %vm1099, %v1100, %v1103
      %v1105 = vunpack.c.l.bf16 %v973
      %v1106 = vld [vmem:[#allocation2] sm:$0xff]
      %v1107 = vld [vmem:[#allocation2 + $0x8] sm:$0xff]
      %v1108 = vld [vmem:[#allocation3] sm:$0x1]
      %v1110 = vrot.slane %v1097, 4
      %v1111 = vsel %vm228, %v1110, 0
      %1113 = vmatprep.subr.mxu0 0.0
      %1114 = vmatpush1.msra.mxu0 0.0
      %1115 = vmatprep.subr.mxu0 0.0
      %1116 = vmatpush1.msra.mxu0 0.0
      %1117 = vmatprep.subr.mxu0 0.0
      %1118 = vmatpush1.msra.mxu0 0.0
      %1119 = vmatprep.subr.mxu0 0.0
      %1120 = vmatpush1.msra.mxu0 0.0
      %1121 = vmatprep.subr.mxu0 0.0
      %1122 = vmatpush1.msra.mxu0 0.0
      %1123 = vmatprep.subr.mxu0 0.0
      %1124 = vmatpush1.msra.mxu0 0.0
      %1125 = vmatprep.subr.mxu0 0.0
      %1126 = vmatpush1.msra.mxu0 0.0
      %1127 = vmatprep.subr.mxu0 0.0
      %1128 = vmatpush1.msra.mxu0 0.0
      %1129 = vmatprep.subr.mxu0 0.0
      %1130 = vmatpush1.msra.mxu0 0.0
      %1131 = vmatprep.subr.mxu0 0.0
      %1132 = vmatpush1.msra.mxu0 0.0
      %1133 = vmatprep.subr.mxu0 0.0
      %1134 = vmatpush1.msra.mxu0 0.0
      %1135 = vmatprep.subr.mxu0 0.0
      %1136 = vmatpush1.msra.mxu0 0.0
      %1137 = vmatprep.subr.mxu0 0.0
      %1138 = vmatpush1.msra.mxu0 0.0
      %1139 = vmatprep.subr.mxu0 0.0
      %1140 = vmatpush1.msra.mxu0 0.0
      %1141 = vmatprep.subr.mxu0 0.0
      %1142 = vmatpush1.msra.mxu0 %v1107
      %1143 = vmatprep.subr.mxu0 0.0
      %1144 = vmatpush1.msra.mxu0 %v1106
      %1145 = vmatprep.subr.mxu0 0.0
      %1146 = vmatpush2.msra.mxu0 0.0
      %1147 = vmatprep.subr.mxu0 0.0
      %1148 = vmatpush2.msra.mxu0 0.0
      %1149 = vmatprep.subr.mxu0 0.0
      %1150 = vmatpush2.msra.mxu0 0.0
      %1151 = vmatprep.subr.mxu0 0.0
      %1152 = vmatpush2.msra.mxu0 0.0
      %1153 = vmatprep.subr.mxu0 0.0
      %1154 = vmatpush2.msra.mxu0 0.0
      %1155 = vmatprep.subr.mxu0 0.0
      %1156 = vmatpush2.msra.mxu0 0.0
      %1157 = vmatprep.subr.mxu0 0.0
      %1158 = vmatpush2.msra.mxu0 0.0
      %1159 = vmatprep.subr.mxu0 0.0
      %1160 = vmatpush2.msra.mxu0 0.0
      %1161 = vmatprep.subr.mxu0 0.0
      %1162 = vmatpush2.msra.mxu0 0.0
      %1163 = vmatprep.subr.mxu0 0.0
      %1164 = vmatpush2.msra.mxu0 0.0
      %1165 = vmatprep.subr.mxu0 0.0
      %1166 = vmatpush2.msra.mxu0 0.0
      %1167 = vmatprep.subr.mxu0 0.0
      %1168 = vmatpush2.msra.mxu0 0.0
      %1169 = vmatprep.subr.mxu0 0.0
      %1170 = vmatpush2.msra.mxu0 0.0
      %1171 = vmatprep.subr.mxu0 0.0
      %1172 = vmatpush2.msra.mxu0 0.0
      %1173 = vmatprep.subr.mxu0 0.0
      %1174 = vmatpush2.msra.mxu0 0.0
      %1175 = vmatprep.subr.mxu0 0.0
      %1176 = vmatpush2.msra.mxu0 0.0
      %1177 = vmatprep.mubr.f32.mxu0 0.0
      %1178 = vmatmul.mubr.f32.gmra.mxu0 %v1111
      %v1179 = vpop.f32.mrf.mxu0
      %v1180 = vadd.f32 0.0, %v1179
      %v1181 = vpop.f32.mrf.mxu0
      %1182 = vdwg.mxu0
      %v1183 = vlaneseq
      %v1184 = vshrl.u32 %v1183, 7
      %v1185 = vsub.s32 0, %v1184
      %v1186 = vrot.slane %v1108, %v1185
      %v1187 = vmul.f32 %v1097, %v1186
      %vm1188 = vcmask 130052
      %v1189 = vsel %vm1188, %v1187, 0.0
      %1190 = vadd.xlane.f32.xlu0 %v1189
      %v1191 = vpop.xlane.xlu0 %1190
      %v1192 = vrcp.pop %v1191
      %v1194 = vrot.slane %v1192, 4
      %v1196 = vmul.f32 %v1180, %v1194
      %v1198 = vrot.slane %v1104, 4
      %1200 = vxpose.xlu0.b32.start [1/16] %v1198, 128
      %1201 = vxpose.xlu0.b32.cont [2/16] 0.0, 128
      %1202 = vxpose.xlu0.b32.cont [3/16] 0.0, 128
      %1203 = vxpose.xlu0.b32.cont [4/16] 0.0, 128
      %1204 = vxpose.xlu0.b32.cont [5/16] 0.0, 128
      %1205 = vxpose.xlu0.b32.cont [6/16] 0.0, 128
      %1206 = vxpose.xlu0.b32.cont [7/16] 0.0, 128
      %1207 = vxpose.xlu0.b32.cont [8/16] 0.0, 128
      %1208 = vxpose.xlu0.b32.cont [9/16] 0.0, 128
      %1209 = vxpose.xlu0.b32.cont [10/16] 0.0, 128
      %1210 = vxpose.xlu0.b32.cont [11/16] 0.0, 128
      %1211 = vxpose.xlu0.b32.cont [12/16] 0.0, 128
      %1212 = vxpose.xlu0.b32.cont [13/16] 0.0, 128
      %1213 = vxpose.xlu0.b32.cont [14/16] 0.0, 128
      %1214 = vxpose.xlu0.b32.cont [15/16] 0.0, 128
      %1215 = vxpose.xlu0.b32.end [16/16] 0.0, 128
      %v1216 = vpop.trf.xlu0
      %v1217 = vpop.trf.xlu0
      %v1218 = vpop.trf.xlu0
      %v1219 = vpop.trf.xlu0
      %v1220 = vpop.trf.xlu0
      %v1221 = vpop.trf.xlu0
      %v1222 = vpop.trf.xlu0
      %v1223 = vpop.trf.xlu0
      %v1224 = vpop.trf.xlu0
      %v1225 = vpop.trf.xlu0
      %v1226 = vpop.trf.xlu0
      %v1227 = vpop.trf.xlu0
      %v1228 = vpop.trf.xlu0
      %v1229 = vpop.trf.xlu0
      %v1230 = vpop.trf.xlu0
      %v1231 = vpop.trf.xlu0
      %v1233 = vrot.slane %v1105, 4
      %v1235 = vsel %vm305, %v1216, 0
      %v1238 = vsel %vm305, %v1217, 0
      %v1240 = vsel %vm493, %v1233, 0
      %1242 = vmatprep.subr.mxu0 0.0
      %1243 = vmatpush1.msra.mxu0 0.0
      %1244 = vmatprep.subr.mxu0 0.0
      %1245 = vmatpush1.msra.mxu0 0.0
      %1246 = vmatprep.subr.mxu0 0.0
      %1247 = vmatpush1.msra.mxu0 0.0
      %1248 = vmatprep.subr.mxu0 0.0
      %1249 = vmatpush1.msra.mxu0 0.0
      %1250 = vmatprep.subr.mxu0 0.0
      %1251 = vmatpush1.msra.mxu0 0.0
      %1252 = vmatprep.subr.mxu0 0.0
      %1253 = vmatpush1.msra.mxu0 0.0
      %1254 = vmatprep.subr.mxu0 0.0
      %1255 = vmatpush1.msra.mxu0 0.0
      %1256 = vmatprep.subr.mxu0 0.0
      %1257 = vmatpush1.msra.mxu0 0.0
      %1258 = vmatprep.subr.mxu0 0.0
      %1259 = vmatpush1.msra.mxu0 0.0
      %1260 = vmatprep.subr.mxu0 0.0
      %1261 = vmatpush1.msra.mxu0 0.0
      %1262 = vmatprep.subr.mxu0 0.0
      %1263 = vmatpush1.msra.mxu0 0.0
      %1264 = vmatprep.subr.mxu0 0.0
      %1265 = vmatpush1.msra.mxu0 0.0
      %1266 = vmatprep.subr.mxu0 0.0
      %1267 = vmatpush1.msra.mxu0 0.0
      %1268 = vmatprep.subr.mxu0 0.0
      %1269 = vmatpush1.msra.mxu0 0.0
      %1270 = vmatprep.subr.mxu0 0.0
      %1271 = vmatpush1.msra.mxu0 0.0
      %1272 = vmatprep.subr.mxu0 0.0
      %1273 = vmatpush1.msra.mxu0 %v1240
      %1274 = vmatprep.subr.mxu0 0.0
      %1275 = vmatpush2.msra.mxu0 0.0
      %1276 = vmatprep.subr.mxu0 0.0
      %1277 = vmatpush2.msra.mxu0 0.0
      %1278 = vmatprep.subr.mxu0 0.0
      %1279 = vmatpush2.msra.mxu0 0.0
      %1280 = vmatprep.subr.mxu0 0.0
      %1281 = vmatpush2.msra.mxu0 0.0
      %1282 = vmatprep.subr.mxu0 0.0
      %1283 = vmatpush2.msra.mxu0 0.0
      %1284 = vmatprep.subr.mxu0 0.0
      %1285 = vmatpush2.msra.mxu0 0.0
      %1286 = vmatprep.subr.mxu0 0.0
      %1287 = vmatpush2.msra.mxu0 0.0
      %1288 = vmatprep.subr.mxu0 0.0
      %1289 = vmatpush2.msra.mxu0 0.0
      %1290 = vmatprep.subr.mxu0 0.0
      %1291 = vmatpush2.msra.mxu0 0.0
      %1292 = vmatprep.subr.mxu0 0.0
      %1293 = vmatpush2.msra.mxu0 0.0
      %1294 = vmatprep.subr.mxu0 0.0
      %1295 = vmatpush2.msra.mxu0 0.0
      %1296 = vmatprep.subr.mxu0 0.0
      %1297 = vmatpush2.msra.mxu0 0.0
      %1298 = vmatprep.subr.mxu0 0.0
      %1299 = vmatpush2.msra.mxu0 0.0
      %1300 = vmatprep.subr.mxu0 0.0
      %1301 = vmatpush2.msra.mxu0 0.0
      %1302 = vmatprep.subr.mxu0 0.0
      %1303 = vmatpush2.msra.mxu0 0.0
      %1304 = vmatprep.subr.mxu0 0.0
      %1305 = vmatpush2.msra.mxu0 0.0
      %1306 = vmatprep.mubr.f32.mxu0 0.0
      %1307 = vmatmul.mubr.f32.gmra.mxu0 %v1235
      %v1308 = vpop.f32.mrf.mxu0
      %v1309 = vadd.f32 0.0, %v1308
      %v1310 = vpop.f32.mrf.mxu0
      %1311 = vmatprep.mubr.f32.mxu0 0.0
      %1312 = vmatmul.mubr.f32.gmra.mxu0 %v1238
      %v1313 = vpop.f32.mrf.mxu0
      %v1314 = vadd.f32 0.0, %v1313
      %v1315 = vpop.f32.mrf.mxu0
      %1316 = vdwg.mxu0
      %v1317 = vadd.f32 %v1106, %v1309
      %v1318 = vadd.f32 %v1107, %v1314
      %1319 = vst.msk [vmem:[#allocation2] sm:$0xff] %vm228, %v1317
      %1320 = vst.msk [vmem:[#allocation2 + $0x8] sm:$0xff] %vm228, %v1318
      %v1321 = vsel %vm449, %v1198, 0.0
      %v1322 = vrot.slane %v1321, 4
      %v1323 = vadd.f32 %v1321, %v1322
      %v1324 = vrot.slane %v1323, 2
      %v1325 = vadd.f32 %v1323, %v1324
      %v1326 = vrot.slane %v1325, 1
      %v1327 = vadd.f32 %v1325, %v1326
      %v1328 = vadd.f32 %v1108, %v1327
      %1329 = vst.msk [vmem:[#allocation3] sm:$0x1] %vm584, %v1328
      %v1330 = vmul.f32 %v590, %v1196
      %v1331 = vmul.f32 %v598, %v1086
      %v1332 = vadd.f32 %v1330, %v1331
      %1333 = vrot.lane.b32.xlu0 %v977, 112
      %v1334 = vpop.permute.xlu0 %1333
      %1335 = vrot.lane.b32.xlu0 %v981, 112
      %v1336 = vpop.permute.xlu0 %1335
      %v1338 = vsel %vm228, %v1334, 0
      %v1341 = vsel %vm228, %v1336, 0
      %1343 = vmatprep.subr.bf16.mxu0 0
      %1344 = vmatpush1.bf16.xpose.msra.mxu0 0
      %1345 = vmatprep.subr.bf16.mxu0 0
      %1346 = vmatpush1.bf16.xpose.msra.mxu0 0
      %1347 = vmatprep.subr.bf16.mxu0 0
      %1348 = vmatpush1.bf16.xpose.msra.mxu0 0
      %1349 = vmatprep.subr.bf16.mxu0 0
      %1350 = vmatpush1.bf16.xpose.msra.mxu0 0
      %1351 = vmatprep.subr.bf16.mxu0 0
      %1352 = vmatpush1.bf16.xpose.msra.mxu0 0
      %1353 = vmatprep.subr.bf16.mxu0 0
      %1354 = vmatpush1.bf16.xpose.msra.mxu0 0
      %1355 = vmatprep.subr.bf16.mxu0 0
      %1356 = vmatpush1.bf16.xpose.msra.mxu0 0
      %1357 = vmatprep.subr.bf16.mxu0 0
      %1358 = vmatpush1.bf16.xpose.msra.mxu0 %v1341
      %1359 = vmatprep.subr.bf16.mxu0 0
      %1360 = vmatpush2.bf16.xpose.msra.mxu0 0
      %1361 = vmatprep.subr.bf16.mxu0 0
      %1362 = vmatpush2.bf16.xpose.msra.mxu0 0
      %1363 = vmatprep.subr.bf16.mxu0 0
      %1364 = vmatpush2.bf16.xpose.msra.mxu0 0
      %1365 = vmatprep.subr.bf16.mxu0 0
      %1366 = vmatpush2.bf16.xpose.msra.mxu0 0
      %1367 = vmatprep.subr.bf16.mxu0 0
      %1368 = vmatpush2.bf16.xpose.msra.mxu0 0
      %1369 = vmatprep.subr.bf16.mxu0 0
      %1370 = vmatpush2.bf16.xpose.msra.mxu0 0
      %1371 = vmatprep.subr.bf16.mxu0 0
      %1372 = vmatpush2.bf16.xpose.msra.mxu0 0
      %1373 = vmatprep.subr.bf16.mxu0 0
      %1374 = vmatpush2.bf16.xpose.msra.mxu0 0
      %1375 = vmatprep.mubr.bf16.mxu0 0
      %1376 = vmatmul.mubr.bf16.gmra.mxu0 %v1338
      %v1377 = vpop.f32.mrf.mxu0
      %v1378 = vadd.f32 0.0, %v1377
      %v1379 = vpop.f32.mrf.mxu0
      %v1380 = vpop.f32.mrf.mxu0
      %v1381 = vpop.f32.mrf.mxu0
      %1382 = vdwg.mxu0
      %v1383 = vmul.f32 %v1378, 0.25
      %v1384 = vsel %vm292, %v1383, -inf
      %1385 = vmax.xlane.f32.xlu0 %v1384
      %v1386 = vpop.xlane.xlu0 %1385
      %v1387 = vsub.f32 %v1383, %v1386
      %v1388 = vmul.f32 %v1387, 1.442695
      %v1389 = vpow.pop %v1388
      %v1390 = vsel %vm292, %v1389, 0.0
      %1391 = vadd.xlane.f32.xlu0 %v1390
      %v1392 = vpop.xlane.xlu0 %1391
      %v1393 = vrcp.pop %v1392
      %v1394 = vmul.f32 %v1389, %v1393
      %v1395 = vpack.c.bf16 %v1394, %v1394
      %1396 = vrot.lane.b32.xlu0 %v1044, 112
      %v1397 = vpop.permute.xlu0 %1396
      %v1399 = vsel %vm305, %v1395, 0
      %v1402 = vsel %vm309, %v1397, 0
      %1404 = vmatprep.subr.bf16.mxu0 0
      %1405 = vmatpush1.bf16.msra.mxu0 0
      %1406 = vmatprep.subr.bf16.mxu0 0
      %1407 = vmatpush1.bf16.msra.mxu0 0
      %1408 = vmatprep.subr.bf16.mxu0 0
      %1409 = vmatpush1.bf16.msra.mxu0 0
      %1410 = vmatprep.subr.bf16.mxu0 0
      %1411 = vmatpush1.bf16.msra.mxu0 0
      %1412 = vmatprep.subr.bf16.mxu0 0
      %1413 = vmatpush1.bf16.msra.mxu0 0
      %1414 = vmatprep.subr.bf16.mxu0 0
      %1415 = vmatpush1.bf16.msra.mxu0 0
      %1416 = vmatprep.subr.bf16.mxu0 0
      %1417 = vmatpush1.bf16.msra.mxu0 0
      %1418 = vmatprep.subr.bf16.mxu0 0
      %1419 = vmatpush1.bf16.msra.mxu0 %v1402
      %1420 = vmatprep.subr.bf16.mxu0 0
      %1421 = vmatpush2.bf16.msra.mxu0 0
      %1422 = vmatprep.subr.bf16.mxu0 0
      %1423 = vmatpush2.bf16.msra.mxu0 0
      %1424 = vmatprep.subr.bf16.mxu0 0
      %1425 = vmatpush2.bf16.msra.mxu0 0
      %1426 = vmatprep.subr.bf16.mxu0 0
      %1427 = vmatpush2.bf16.msra.mxu0 0
      %1428 = vmatprep.subr.bf16.mxu0 0
      %1429 = vmatpush2.bf16.msra.mxu0 0
      %1430 = vmatprep.subr.bf16.mxu0 0
      %1431 = vmatpush2.bf16.msra.mxu0 0
      %1432 = vmatprep.subr.bf16.mxu0 0
      %1433 = vmatpush2.bf16.msra.mxu0 0
      %1434 = vmatprep.subr.bf16.mxu0 0
      %1435 = vmatpush2.bf16.msra.mxu0 0
      %1436 = vmatprep.mubr.bf16.mxu0 0
      %1437 = vmatmul.mubr.bf16.gmra.mxu0 %v1399
      %v1438 = vpop.f32.mrf.mxu0
      %v1439 = vadd.f32 0.0, %v1438
      %v1440 = vpop.f32.mrf.mxu0
      %v1441 = vpop.f32.mrf.mxu0
      %v1442 = vpop.f32.mrf.mxu0
      %1443 = vdwg.mxu0
      %v1444 = vld [vmem:[#allocation2 + $0x10] sm:$0xff]
      %v1445 = vld [vmem:[#allocation2 + $0x18] sm:$0xff]
      %v1446 = vld [vmem:[#allocation3 + $0x1] sm:$0x1]
      %1447 = vrot.lane.b32.xlu0 %v1110, 112
      %v1448 = vpop.permute.xlu0 %1447
      %v1449 = vsel %vm228, %v1448, 0
      %1451 = vmatprep.subr.mxu0 0.0
      %1452 = vmatpush1.msra.mxu0 0.0
      %1453 = vmatprep.subr.mxu0 0.0
      %1454 = vmatpush1.msra.mxu0 0.0
      %1455 = vmatprep.subr.mxu0 0.0
      %1456 = vmatpush1.msra.mxu0 0.0
      %1457 = vmatprep.subr.mxu0 0.0
      %1458 = vmatpush1.msra.mxu0 0.0
      %1459 = vmatprep.subr.mxu0 0.0
      %1460 = vmatpush1.msra.mxu0 0.0
      %1461 = vmatprep.subr.mxu0 0.0
      %1462 = vmatpush1.msra.mxu0 0.0
      %1463 = vmatprep.subr.mxu0 0.0
      %1464 = vmatpush1.msra.mxu0 0.0
      %1465 = vmatprep.subr.mxu0 0.0
      %1466 = vmatpush1.msra.mxu0 0.0
      %1467 = vmatprep.subr.mxu0 0.0
      %1468 = vmatpush1.msra.mxu0 0.0
      %1469 = vmatprep.subr.mxu0 0.0
      %1470 = vmatpush1.msra.mxu0 0.0
      %1471 = vmatprep.subr.mxu0 0.0
      %1472 = vmatpush1.msra.mxu0 0.0
      %1473 = vmatprep.subr.mxu0 0.0
      %1474 = vmatpush1.msra.mxu0 0.0
      %1475 = vmatprep.subr.mxu0 0.0
      %1476 = vmatpush1.msra.mxu0 0.0
      %1477 = vmatprep.subr.mxu0 0.0
      %1478 = vmatpush1.msra.mxu0 0.0
      %1479 = vmatprep.subr.mxu0 0.0
      %1480 = vmatpush1.msra.mxu0 %v1445
      %1481 = vmatprep.subr.mxu0 0.0
      %1482 = vmatpush1.msra.mxu0 %v1444
      %1483 = vmatprep.subr.mxu0 0.0
      %1484 = vmatpush2.msra.mxu0 0.0
      %1485 = vmatprep.subr.mxu0 0.0
      %1486 = vmatpush2.msra.mxu0 0.0
      %1487 = vmatprep.subr.mxu0 0.0
      %1488 = vmatpush2.msra.mxu0 0.0
      %1489 = vmatprep.subr.mxu0 0.0
      %1490 = vmatpush2.msra.mxu0 0.0
      %1491 = vmatprep.subr.mxu0 0.0
      %1492 = vmatpush2.msra.mxu0 0.0
      %1493 = vmatprep.subr.mxu0 0.0
      %1494 = vmatpush2.msra.mxu0 0.0
      %1495 = vmatprep.subr.mxu0 0.0
      %1496 = vmatpush2.msra.mxu0 0.0
      %1497 = vmatprep.subr.mxu0 0.0
      %1498 = vmatpush2.msra.mxu0 0.0
      %1499 = vmatprep.subr.mxu0 0.0
      %1500 = vmatpush2.msra.mxu0 0.0
      %1501 = vmatprep.subr.mxu0 0.0
      %1502 = vmatpush2.msra.mxu0 0.0
      %1503 = vmatprep.subr.mxu0 0.0
      %1504 = vmatpush2.msra.mxu0 0.0
      %1505 = vmatprep.subr.mxu0 0.0
      %1506 = vmatpush2.msra.mxu0 0.0
      %1507 = vmatprep.subr.mxu0 0.0
      %1508 = vmatpush2.msra.mxu0 0.0
      %1509 = vmatprep.subr.mxu0 0.0
      %1510 = vmatpush2.msra.mxu0 0.0
      %1511 = vmatprep.subr.mxu0 0.0
      %1512 = vmatpush2.msra.mxu0 0.0
      %1513 = vmatprep.subr.mxu0 0.0
      %1514 = vmatpush2.msra.mxu0 0.0
      %1515 = vmatprep.mubr.f32.mxu0 0.0
      %1516 = vmatmul.mubr.f32.gmra.mxu0 %v1449
      %v1517 = vpop.f32.mrf.mxu0
      %v1518 = vadd.f32 0.0, %v1517
      %v1519 = vpop.f32.mrf.mxu0
      %1520 = vdwg.mxu0
      %v1521 = vlaneseq
      %v1522 = vshrl.u32 %v1521, 7
      %v1523 = vsub.s32 0, %v1522
      %v1524 = vrot.slane %v1446, %v1523
      %1526 = vrot.lane.b32.xlu0 %v1524, 16
      %v1527 = vpop.permute.xlu0 %1526
      %v1529 = vmul.f32 %v1097, %v1527
      %1531 = vrot.lane.b32.xlu0 %v1529, 112
      %v1532 = vpop.permute.xlu0 %1531
      %v1534 = vsel %vm1188, %v1532, 0.0
      %1535 = vadd.xlane.f32.xlu0 %v1534
      %v1536 = vpop.xlane.xlu0 %1535
      %v1537 = vrcp.pop %v1536
      %v1539 = vrot.slane %v1537, 4
      %v1541 = vmul.f32 %v1518, %v1539
      %1542 = vrot.lane.b32.xlu0 %v1198, 112
      %v1543 = vpop.permute.xlu0 %1542
      %1545 = vxpose.xlu0.b32.start [1/16] %v1543, 128
      %1546 = vxpose.xlu0.b32.cont [2/16] 0.0, 128
      %1547 = vxpose.xlu0.b32.cont [3/16] 0.0, 128
      %1548 = vxpose.xlu0.b32.cont [4/16] 0.0, 128
      %1549 = vxpose.xlu0.b32.cont [5/16] 0.0, 128
      %1550 = vxpose.xlu0.b32.cont [6/16] 0.0, 128
      %1551 = vxpose.xlu0.b32.cont [7/16] 0.0, 128
      %1552 = vxpose.xlu0.b32.cont [8/16] 0.0, 128
      %1553 = vxpose.xlu0.b32.cont [9/16] 0.0, 128
      %1554 = vxpose.xlu0.b32.cont [10/16] 0.0, 128
      %1555 = vxpose.xlu0.b32.cont [11/16] 0.0, 128
      %1556 = vxpose.xlu0.b32.cont [12/16] 0.0, 128
      %1557 = vxpose.xlu0.b32.cont [13/16] 0.0, 128
      %1558 = vxpose.xlu0.b32.cont [14/16] 0.0, 128
      %1559 = vxpose.xlu0.b32.cont [15/16] 0.0, 128
      %1560 = vxpose.xlu0.b32.end [16/16] 0.0, 128
      %v1561 = vpop.trf.xlu0
      %v1562 = vpop.trf.xlu0
      %v1563 = vpop.trf.xlu0
      %v1564 = vpop.trf.xlu0
      %v1565 = vpop.trf.xlu0
      %v1566 = vpop.trf.xlu0
      %v1567 = vpop.trf.xlu0
      %v1568 = vpop.trf.xlu0
      %v1569 = vpop.trf.xlu0
      %v1570 = vpop.trf.xlu0
      %v1571 = vpop.trf.xlu0
      %v1572 = vpop.trf.xlu0
      %v1573 = vpop.trf.xlu0
      %v1574 = vpop.trf.xlu0
      %v1575 = vpop.trf.xlu0
      %v1576 = vpop.trf.xlu0
      %1577 = vrot.lane.b32.xlu0 %v1233, 112
      %v1578 = vpop.permute.xlu0 %1577
      %v1580 = vsel %vm305, %v1561, 0
      %v1583 = vsel %vm305, %v1562, 0
      %v1585 = vsel %vm493, %v1578, 0
      %1587 = vmatprep.subr.mxu0 0.0
      %1588 = vmatpush1.msra.mxu0 0.0
      %1589 = vmatprep.subr.mxu0 0.0
      %1590 = vmatpush1.msra.mxu0 0.0
      %1591 = vmatprep.subr.mxu0 0.0
      %1592 = vmatpush1.msra.mxu0 0.0
      %1593 = vmatprep.subr.mxu0 0.0
      %1594 = vmatpush1.msra.mxu0 0.0
      %1595 = vmatprep.subr.mxu0 0.0
      %1596 = vmatpush1.msra.mxu0 0.0
      %1597 = vmatprep.subr.mxu0 0.0
      %1598 = vmatpush1.msra.mxu0 0.0
      %1599 = vmatprep.subr.mxu0 0.0
      %1600 = vmatpush1.msra.mxu0 0.0
      %1601 = vmatprep.subr.mxu0 0.0
      %1602 = vmatpush1.msra.mxu0 0.0
      %1603 = vmatprep.subr.mxu0 0.0
      %1604 = vmatpush1.msra.mxu0 0.0
      %1605 = vmatprep.subr.mxu0 0.0
      %1606 = vmatpush1.msra.mxu0 0.0
      %1607 = vmatprep.subr.mxu0 0.0
      %1608 = vmatpush1.msra.mxu0 0.0
      %1609 = vmatprep.subr.mxu0 0.0
      %1610 = vmatpush1.msra.mxu0 0.0
      %1611 = vmatprep.subr.mxu0 0.0
      %1612 = vmatpush1.msra.mxu0 0.0
      %1613 = vmatprep.subr.mxu0 0.0
      %1614 = vmatpush1.msra.mxu0 0.0
      %1615 = vmatprep.subr.mxu0 0.0
      %1616 = vmatpush1.msra.mxu0 0.0
      %1617 = vmatprep.subr.mxu0 0.0
      %1618 = vmatpush1.msra.mxu0 %v1585
      %1619 = vmatprep.subr.mxu0 0.0
      %1620 = vmatpush2.msra.mxu0 0.0
      %1621 = vmatprep.subr.mxu0 0.0
      %1622 = vmatpush2.msra.mxu0 0.0
      %1623 = vmatprep.subr.mxu0 0.0
      %1624 = vmatpush2.msra.mxu0 0.0
      %1625 = vmatprep.subr.mxu0 0.0
      %1626 = vmatpush2.msra.mxu0 0.0
      %1627 = vmatprep.subr.mxu0 0.0
      %1628 = vmatpush2.msra.mxu0 0.0
      %1629 = vmatprep.subr.mxu0 0.0
      %1630 = vmatpush2.msra.mxu0 0.0
      %1631 = vmatprep.subr.mxu0 0.0
      %1632 = vmatpush2.msra.mxu0 0.0
      %1633 = vmatprep.subr.mxu0 0.0
      %1634 = vmatpush2.msra.mxu0 0.0
      %1635 = vmatprep.subr.mxu0 0.0
      %1636 = vmatpush2.msra.mxu0 0.0
      %1637 = vmatprep.subr.mxu0 0.0
      %1638 = vmatpush2.msra.mxu0 0.0
      %1639 = vmatprep.subr.mxu0 0.0
      %1640 = vmatpush2.msra.mxu0 0.0
      %1641 = vmatprep.subr.mxu0 0.0
      %1642 = vmatpush2.msra.mxu0 0.0
      %1643 = vmatprep.subr.mxu0 0.0
      %1644 = vmatpush2.msra.mxu0 0.0
      %1645 = vmatprep.subr.mxu0 0.0
      %1646 = vmatpush2.msra.mxu0 0.0
      %1647 = vmatprep.subr.mxu0 0.0
      %1648 = vmatpush2.msra.mxu0 0.0
      %1649 = vmatprep.subr.mxu0 0.0
      %1650 = vmatpush2.msra.mxu0 0.0
      %1651 = vmatprep.mubr.f32.mxu0 0.0
      %1652 = vmatmul.mubr.f32.gmra.mxu0 %v1580
      %v1653 = vpop.f32.mrf.mxu0
      %v1654 = vadd.f32 0.0, %v1653
      %v1655 = vpop.f32.mrf.mxu0
      %1656 = vmatprep.mubr.f32.mxu0 0.0
      %1657 = vmatmul.mubr.f32.gmra.mxu0 %v1583
      %v1658 = vpop.f32.mrf.mxu0
      %v1659 = vadd.f32 0.0, %v1658
      %v1660 = vpop.f32.mrf.mxu0
      %1661 = vdwg.mxu0
      %v1662 = vadd.f32 %v1444, %v1654
      %v1663 = vadd.f32 %v1445, %v1659
      %1664 = vst.msk [vmem:[#allocation2 + $0x10] sm:$0xff] %vm228, %v1662
      %1665 = vst.msk [vmem:[#allocation2 + $0x18] sm:$0xff] %vm228, %v1663
      %v1666 = vsel %vm942, %v1198, 0.0
      %v1667 = vrot.slane %v1666, 4
      %v1668 = vadd.f32 %v1666, %v1667
      %v1669 = vrot.slane %v1668, 2
      %v1670 = vadd.f32 %v1668, %v1669
      %v1671 = vrot.slane %v1670, 1
      %v1672 = vadd.f32 %v1670, %v1671
      %1674 = vrot.lane.b32.xlu0 %v1672, 112
      %v1675 = vpop.permute.xlu0 %1674
      %v1677 = vadd.f32 %v1446, %v1675
      %1678 = vst.msk [vmem:[#allocation3 + $0x1] sm:$0x1] %vm584, %v1677
      %1680 = vrot.lane.b32.xlu0 %v1541, 16
      %v1681 = vpop.permute.xlu0 %1680
      %v1683 = vmul.f32 %v590, %v1681
      %1685 = vrot.lane.b32.xlu0 %v1439, 16
      %v1686 = vpop.permute.xlu0 %1685
      %v1688 = vmul.f32 %v598, %v1686
      %v1689 = vadd.f32 %v1683, %v1688
      %v1690 = vsel %vm228, %v1332, %v1689
      %v1691 = vpack.c.bf16 %v1690, %v1690
      %v1693 = vunpack.c.l.b16 %v1691
      %v1694 = vpack.c.b16 %v1693, %v1693
      %v1695 = vrot.slane %v1694, 6
      %vm1697 = vcmask 257026
      %1698 = vst.msk [vmem:[%s226] sm:$0xc] %vm1697, %v1695
      %p1699 = scmp.lt.s32.totalorder %s15, 1
      %s1700 = scalar_select %p1699, %s15, 1
      %s1701 = smul.addr %s1700, 4
      %s1702 = scalar_lea.vmem %s4, %s1701
      // Predicated region
      $region37: #{mod_infini_transformer_forward.5} parent=35 // pred_check
        %p1703 = pneg %p132
      $region38: #{mod_infini_transformer_forward.5} parent=35 // pred_check_branch
        %1705 = sbr.rel (%p1703) target = $region40
      $region39: #{mod_infini_transformer_forward.5} parent=35 // pred_region
        _
      $region40: #{mod_infini_transformer_forward.5} parent=35 // pred_fallthru
        _
    $region36: #{mod_infini_transformer_forward.5} parent=5 // pred_fallthru
      _
    %p1706 = scmp.le.s32.totalorder 2, %s10
    // Predicated region
    $region41: #{mod_infini_transformer_forward.5} parent=5 // pred_check
      %p1707 = pneg %p1706
    $region42: #{mod_infini_transformer_forward.5} parent=5 // pred_check_branch
      %1709 = sbr.rel (%p1707) target = $region44
    $region43: #{mod_infini_transformer_forward.5} parent=5 // pred_region
      %s1710 = ssub.s32 %s10, 2
      // Predicated region
      $region45: #{mod_infini_transformer_forward.5} parent=43 // pred_check
        %p1711 = pneg %p138
      $region46: #{mod_infini_transformer_forward.5} parent=43 // pred_check_branch
        %1713 = sbr.rel (%p1711) target = $region48
      $region47: #{mod_infini_transformer_forward.5} parent=43 // pred_region
        %p1714 = scmp.lt.s32.totalorder %s16, 1
        %s1715 = scalar_select %p1714, %s16, 1
        %s1716 = smul.addr %s1715, 4
        %s1717 = scalar_lea.vmem %s4, %s1716
      $region48: #{mod_infini_transformer_forward.5} parent=43 // pred_fallthru
        _
    $region44: #{mod_infini_transformer_forward.5} parent=5 // pred_fallthru
      _
  $region6: #{mod_infini_transformer_forward.5} parent=0 // loop_footer
    %s14 = sadd.s32 1, %s10
  $region7: #{mod_infini_transformer_forward.5} parent=0 // loop_footer_branch
    %9 = sbr.rel target = $region3
  $region8: #{mod_infini_transformer_forward.5} parent=0 // loop_exit
    _

// kernel: mod_infini_transformer_forward.7
$region0: #{mod_infini_transformer_forward.7}
  #allocation0 [shape = 'u32[]', space=smem, size = 0x4, offset = 0x4, fixed_abs, tag = 'smem constant byte address 0x4 - core index']
  #allocation1 [shape = 'u32[144,128]{1,0:T(1,128)}', space=vmem, size = 0x12000, scoped, tag = 'internal scratch']
  %s0 = inlined_call_operand.vmem [shape: f32[32,32], index: 0, kind: input, shape index: {}]
  %s1 = inlined_call_operand.vmem [shape: f32[1,32], index: 1, kind: input, shape index: {}]
  %s2 = inlined_call_operand.vmem [shape: f32[1,32], index: 2, kind: input, shape index: {}]
  %s3 = inlined_call_operand.hbm [shape: f32[32,32], index: 3, kind: output, shape index: {}]
  %s4 = sld [smem:[#allocation0]]
  $region22: #{mod_infini_transformer_forward.7} parent=0
    _
  %s6 = ssub.s32 1, %s4
  %s7 = scalar_select 0, %s6, %s4
  $region1: #{mod_infini_transformer_forward.7} parent=0
    #allocation2 [shape = 'u8[16384]{0}', space=vmem, size = 0x4000, scoped, tag = 'output window, operand 0, single buffered']
    #allocation3 [shape = 's32[1]{0}', space=sflag, size = 0x4, scoped, tag = 'scoped memory for mod_infini_transformer_forward.7']
    %8 = vsyncpa [#allocation3], 0
    // Predicated region
    $region2: #{mod_infini_transformer_forward.7} parent=1 // pred_check
      _
    $region3: #{mod_infini_transformer_forward.7} parent=1 // pred_check_branch
      %10 = sbr.rel (0) target = $region5
    $region4: #{mod_infini_transformer_forward.7} parent=1 // pred_region
      _
    $region5: #{mod_infini_transformer_forward.7} parent=1 // pred_fallthru
      _
    // Predicated region
    $region6: #{mod_infini_transformer_forward.7} parent=1 // pred_check
      _
    $region7: #{mod_infini_transformer_forward.7} parent=1 // pred_check_branch
      %12 = sbr.rel (0) target = $region9
    $region8: #{mod_infini_transformer_forward.7} parent=1 // pred_region
      _
    $region9: #{mod_infini_transformer_forward.7} parent=1 // pred_fallthru
      _
    // Predicated region
    $region10: #{mod_infini_transformer_forward.7} parent=1 // pred_check
      _
    $region11: #{mod_infini_transformer_forward.7} parent=1 // pred_check_branch
      %14 = sbr.rel (0) target = $region13
    $region12: #{mod_infini_transformer_forward.7} parent=1 // pred_region
      _
    $region13: #{mod_infini_transformer_forward.7} parent=1 // pred_fallthru
      _
    %v15 = vld [vmem:[%s0] sm:$0xff]
    %v16 = vld [vmem:[%s0 + $0x8] sm:$0xff]
    %v17 = vld [vmem:[%s0 + $0x10] sm:$0xff]
    %v18 = vld [vmem:[%s0 + $0x18] sm:$0xff]
    %vm19 = vcmask 261120
    %v20 = vsel %vm19, %v15, 0.0
    %21 = vadd.xlane.f32.xlu0 %v20
    %v22 = vpop.xlane.xlu0 %21
    %v23 = vsel %vm19, %v16, 0.0
    %24 = vadd.xlane.f32.xlu0 %v23
    %v25 = vpop.xlane.xlu0 %24
    %v26 = vsel %vm19, %v17, 0.0
    %27 = vadd.xlane.f32.xlu0 %v26
    %v28 = vpop.xlane.xlu0 %27
    %v29 = vsel %vm19, %v18, 0.0
    %30 = vadd.xlane.f32.xlu0 %v29
    %v31 = vpop.xlane.xlu0 %30
    %v32 = vrcp.pop 32.0
    %v33 = vmul.f32 %v22, %v32
    %v34 = vmul.f32 %v25, %v32
    %v35 = vmul.f32 %v28, %v32
    %v36 = vmul.f32 %v31, %v32
    %v37 = vsub.f32 %v15, %v33
    %v38 = vsub.f32 %v16, %v34
    %v39 = vsub.f32 %v17, %v35
    %v40 = vsub.f32 %v18, %v36
    %v41 = vmul.f32 %v37, %v37
    %v42 = vmul.f32 %v38, %v38
    %v43 = vmul.f32 %v39, %v39
    %v44 = vmul.f32 %v40, %v40
    %v45 = vsel %vm19, %v41, 0.0
    %46 = vadd.xlane.f32.xlu0 %v45
    %v47 = vpop.xlane.xlu0 %46
    %v48 = vsel %vm19, %v42, 0.0
    %49 = vadd.xlane.f32.xlu0 %v48
    %v50 = vpop.xlane.xlu0 %49
    %v51 = vsel %vm19, %v43, 0.0
    %52 = vadd.xlane.f32.xlu0 %v51
    %v53 = vpop.xlane.xlu0 %52
    %v54 = vsel %vm19, %v44, 0.0
    %55 = vadd.xlane.f32.xlu0 %v54
    %v56 = vpop.xlane.xlu0 %55
    %v57 = vmul.f32 %v47, %v32
    %v58 = vmul.f32 %v50, %v32
    %v59 = vmul.f32 %v53, %v32
    %v60 = vmul.f32 %v56, %v32
    %v61 = vadd.f32 %v57, 1e-05
    %v62 = vadd.f32 %v58, 1e-05
    %v63 = vadd.f32 %v59, 1e-05
    %v64 = vadd.f32 %v60, 1e-05
    %v65 = vrsqrt.pop %v61
    %v66 = vrsqrt.pop %v62
    %v67 = vrsqrt.pop %v63
    %v68 = vrsqrt.pop %v64
    %v69 = vmul.f32 %v37, %v65
    %v70 = vmul.f32 %v38, %v66
    %v71 = vmul.f32 %v39, %v67
    %v72 = vmul.f32 %v40, %v68
    %v73 = vld [vmem:[%s1] sm:$0x1]
    %v75 = vlaneseq
    %v76 = vshrl.u32 %v75, 7
    %v77 = vsub.s32 0, %v76
    %v78 = vrot.slane %v73, %v77
    %v80 = vmul.f32 %v69, %v78
    %v81 = vmul.f32 %v70, %v78
    %v82 = vmul.f32 %v71, %v78
    %v83 = vmul.f32 %v72, %v78
    %v84 = vld [vmem:[%s2] sm:$0x1]
    %v86 = vlaneseq
    %v87 = vshrl.u32 %v86, 7
    %v88 = vsub.s32 0, %v87
    %v89 = vrot.slane %v84, %v88
    %v91 = vadd.f32 %v80, %v89
    %v92 = vadd.f32 %v81, %v89
    %v93 = vadd.f32 %v82, %v89
    %v94 = vadd.f32 %v83, %v89
    %95 = vst.msk [vmem:[#allocation2] sm:$0xff] %vm19, %v91
    %96 = vst.msk [vmem:[#allocation2 + $0x8] sm:$0xff] %vm19, %v92
    %97 = vst.msk [vmem:[#allocation2 + $0x10] sm:$0xff] %vm19, %v93
    %98 = vst.msk [vmem:[#allocation2 + $0x18] sm:$0xff] %vm19, %v94
    // Predicated region
    $region14: #{mod_infini_transformer_forward.7} parent=1 // pred_check
      _
    $region15: #{mod_infini_transformer_forward.7} parent=1 // pred_check_branch
      %100 = sbr.rel (0) target = $region17
    $region16: #{mod_infini_transformer_forward.7} parent=1 // pred_region
      %s102 = ssub.s32 512, 512
      %103 = vsyncadd [#allocation3], %s102
      %s104 = sshll.u32 [#allocation2], 4
      %s105 = int_to_ptr.vmem [resolvable:$true] %s104
      %110 = dma.vmem_to_hbm [thread:$0]  %s105, 512, %s3, [#allocation3], 128, 128, 8
    $region17: #{mod_infini_transformer_forward.7} parent=1 // pred_fallthru
      _
    // Predicated region
    $region18: #{mod_infini_transformer_forward.7} parent=1 // pred_check
      _
    $region19: #{mod_infini_transformer_forward.7} parent=1 // pred_check_branch
      %112 = sbr.rel (0) target = $region21
    $region20: #{mod_infini_transformer_forward.7} parent=1 // pred_region
      %113 = dma.done [#allocation3], 512
    $region21: #{mod_infini_transformer_forward.7} parent=1 // pred_fallthru
      _
    %114 = vsyncpa [#allocation3], 1

</llo_original>
